<compile_context>
chip_gen: v6e
topology: v6e:2x2x1
jax: 0.10.0
libtpu: 0.0.40
codegen_flags: <defaults>
</compile_context>

<pallas_src>
import functools
import math

import jax
import jax.numpy as jnp
from jax.experimental import pallas as pl
from jax.experimental.pallas import tpu as pltpu


# ---------------------------------------------------------------------------
# Pallas kernel: one encoder layer, one (batch, query-tile) grid point.
# ---------------------------------------------------------------------------
def _encoder_layer_kernel(n_head, d_k, d_v, tq, add_pe, eps, *refs):
    # Ref layout: [x, (pe if add_pe), 12 params, out, q_scr, k_scr, v_scr]
    if add_pe:
        x_ref, pe_ref = refs[0], refs[1]
        p0 = 2
    else:
        x_ref, pe_ref = refs[0], None
        p0 = 1
    (wqkv_ref, bqkv_ref, wo3_ref, bo_ref,
     g1_ref, be1_ref, w1_ref, bf1_ref, w2_ref, bf2_ref,
     g2_ref, be2_ref) = refs[p0:p0 + 12]
    o_ref, q_scr, k_scr, v_scr = refs[p0 + 12:]

    S, D = x_ref.shape
    H = n_head
    qt = pl.program_id(1)

    # --- fused QKV for the FULL sequence, cached once per batch element ----
    # (query-tile axis is sequential/"arbitrary", so scratch persists).
    @pl.when(qt == 0)
    def _cache_qkv():
        x_full = x_ref[...].astype(jnp.float32)
        if add_pe:
            x_full = x_full + pe_ref[...].astype(jnp.float32)
        # Single big MXU matmul: (S, D) @ (D, H*(2*dk+dv)); 1/sqrt(dk) already
        # folded into the Q columns of wqkv/bqkv host-side.  Cast to bf16
        # right after the bias add so the live intermediate is half size
        # during the statically-unrolled per-head copy loop.
        qkv = (jnp.dot(x_full.astype(jnp.bfloat16), wqkv_ref[...],
                       preferred_element_type=jnp.float32)
               + bqkv_ref[...]).astype(jnp.bfloat16)
        q_all = qkv[:, :H * d_k]
        k_all = qkv[:, H * d_k:2 * H * d_k]
        v_all = qkv[:, 2 * H * d_k:]
        # TODO(synk): for d_k/d_v < 128 these head-major (H, S, d) scratch
        # buffers pad the 64-wide lane dim; lane-dense packing would halve
        # scratch VMEM at the cost of per-head slices in the hot path.
        for h in range(H):  # static unroll; runs once per batch element only
            q_scr[h, :, :] = q_all[:, h * d_k:(h + 1) * d_k]
            k_scr[h, :, :] = k_all[:, h * d_k:(h + 1) * d_k]
            v_scr[h, :, :] = v_all[:, h * d_v:(h + 1) * d_v]

    # --- query tile (residual input) and cached Q tile ----------------------
    if tq == S:  # single-tile fast path (no dynamic slicing)
        x_q = x_ref[...].astype(jnp.float32)
        if add_pe:
            x_q = x_q + pe_ref[...].astype(jnp.float32)
        q_h = q_scr[...]                                    # (H, TQ, dk) bf16
    else:
        start = pl.multiple_of(qt * tq, tq)
        x_q = x_ref[pl.ds(start, tq), :].astype(jnp.float32)
        if add_pe:
            x_q = x_q + pe_ref[pl.ds(start, tq), :].astype(jnp.float32)
        q_h = q_scr[:, pl.ds(start, tq), :]                 # (H, TQ, dk) bf16

    # --- head-batched attention (no transposes, no head scatter) -----------
    # TODO(synk): for S >~ 1024 chunk the K/V axis with an online softmax so
    # the live score tensor is (H, TQ, TK) instead of (H, TQ, S).
    s = jnp.einsum('hqd,hkd->hqk', q_h, k_scr[...],
                   preferred_element_type=jnp.float32)       # (H, TQ, S) f32
    s = s - jnp.max(s, axis=-1, keepdims=True)
    p = jnp.exp(s)
    l = jnp.sum(p, axis=-1, keepdims=True)                   # (H, TQ, 1) f32
    ctx = jnp.einsum('hqk,hkd->hqd', p.astype(jnp.bfloat16), v_scr[...],
                     preferred_element_type=jnp.float32)     # (H, TQ, dv) f32
    # Normalize AFTER the PV matmul: (H, TQ, dv) multiplies instead of
    # (H, TQ, S); EUP reciprocal.
    ctx = ctx * pl.reciprocal(l, approx=True)
    # Output projection: Wo stored as (H, dv, D); batched einsum + sum over
    # heads replaces the lane-masked per-head scatter + concat matmul.
    attn_h = jnp.einsum('hqd,hdm->hqm', ctx.astype(jnp.bfloat16), wo3_ref[...],
                        preferred_element_type=jnp.float32)  # (H, TQ, D)
    attn = jnp.sum(attn_h, axis=0) + bo_ref[...]
    # TODO(synk): dropout layers omitted (inference/eval semantics).

    # --- residual + LayerNorm 1 (f32) ---------------------------------------
    h1 = x_q + attn
    mu = jnp.mean(h1, axis=-1, keepdims=True)
    var = jnp.mean(jnp.square(h1 - mu), axis=-1, keepdims=True)
    h1 = (h1 - mu) * jax.lax.rsqrt(var + eps) * g1_ref[...] + be1_ref[...]

    # --- position-wise feed-forward (bf16 MXU inputs, f32 accumulate) -------
    f = jnp.dot(h1.astype(jnp.bfloat16), w1_ref[...],
                preferred_element_type=jnp.float32) + bf1_ref[...]
    f = jnp.maximum(f, 0.0)
    f = jnp.dot(f.astype(jnp.bfloat16), w2_ref[...],
                preferred_element_type=jnp.float32) + bf2_ref[...]

    # --- residual + LayerNorm 2 (f32) ---------------------------------------
    h2 = h1 + f
    mu2 = jnp.mean(h2, axis=-1, keepdims=True)
    var2 = jnp.mean(jnp.square(h2 - mu2), axis=-1, keepdims=True)
    h2 = (h2 - mu2) * jax.lax.rsqrt(var2 + eps) * g2_ref[...] + be2_ref[...]

    o_ref[...] = h2.astype(o_ref.dtype)


def _vmem_budget_bytes():
    """Per-chip VMEM budget with headroom for compiler scratch/pipelining."""
    try:
        cap = pltpu.get_tpu_info().vmem_capacity_bytes
    except Exception:
        cap = 64 * 1024 * 1024  # conservative (v7x-sized) if info unavailable
    # Leave ~16 MiB headroom; never request more than ~100 MiB even on
    # 128 MiB parts (v5e/v6e), never less than 32 MiB.
    return max(32 * 1024 * 1024, min(cap - 16 * 1024 * 1024, 100 * 1024 * 1024))


def _run_encoder_layer(x, pe, layer_params, n_head, d_k, d_v, add_pe,
                       tq=None, eps=1e-5):
    B, S, D = x.shape
    vmem_limit = _vmem_budget_bytes()

    # Query-tile selection: bigger tiles on 128 MiB parts (v5e/v6e), smaller
    # on v7x; then bound the live (H, TQ, S) f32 score+prob tensors to ~1/3
    # of the budget and snap to a divisor of S.
    if tq is None:
        tq = 512 if vmem_limit >= 96 * 1024 * 1024 else 256
    while tq > 128 and 2 * n_head * tq * S * 4 > vmem_limit // 3:
        tq //= 2
    tq = min(tq, S)
    if S % tq != 0:
        # TODO(synk): ragged last query tile not handled; snap down to a
        # divisor of S (worst case tq = S for prime-ish sequence lengths).
        tq = next(d for d in range(tq, 0, -1) if S % d == 0)
    n_qt = S // tq

    kern = functools.partial(_encoder_layer_kernel,
                             n_head, d_k, d_v, tq, add_pe, eps)

    def build(use_buffered):
        # Replicated parameters: constant index_map -> fetched once, reused.
        # Single-buffered when supported (no point double-buffering a block
        # whose index never changes).
        if use_buffered:
            param_specs = [
                pl.BlockSpec(p.shape, lambda b, t, nd=p.ndim: (0,) * nd,
                             pipeline_mode=pl.Buffered(1))
                for p in layer_params
            ]
        else:
            param_specs = [
                pl.BlockSpec(p.shape, lambda b, t, nd=p.ndim: (0,) * nd)
                for p in layer_params
            ]

        # Full sequence per batch element (K/V source + query-tile slicing);
        # index_map constant along the tile axis -> DMA'd once per batch item.
        in_specs = [pl.BlockSpec((None, S, D), lambda b, t: (b, 0, 0))]
        inputs = [x]
        if add_pe:
            # Sinusoidal positional encoding: only layer 0 takes this input.
            in_specs.append(pl.BlockSpec((S, D), lambda b, t: (0, 0)))
            inputs.append(pe)
        in_specs += param_specs
        inputs += list(layer_params)

        call = pl.pallas_call(
            kern,
            out_shape=jax.ShapeDtypeStruct((B, S, D), x.dtype),
            grid=(B, n_qt),
            in_specs=in_specs,
            out_specs=pl.BlockSpec((None, tq, D), lambda b, t: (b, t, 0)),
            scratch_shapes=[
                pltpu.VMEM((n_head, S, d_k), jnp.bfloat16),        # Q (scaled)
                pltpu.VMEM((n_head, S, d_k), jnp.bfloat16),        # K
                pltpu.VMEM((n_head, S, d_v), jnp.bfloat16),        # V
            ],
            compiler_params=pltpu.CompilerParams(
                # Batch axis megacore-parallel; query-tile axis sequential so
                # the cached K/V scratch (written at tile 0) is valid later.
                # TODO(synk): for B=1 on v7x, shard heads or query tiles
                # across the two TensorCores instead.
                dimension_semantics=("parallel", "arbitrary"),
                vmem_limit_bytes=vmem_limit,
            ),
        )
        return call, inputs

    try:
        call, inputs = build(use_buffered=True)
        return call(*inputs)
    except Exception:
        # Fallback if this JAX build rejects pl.Buffered(1) for pallas_call.
        call, inputs = build(use_buffered=False)
        return call(*inputs)


# ---------------------------------------------------------------------------
# Glue: positional encoding, parameter construction, full forward.
# ---------------------------------------------------------------------------
def sinusoid_encoding_table(seq_len, d_model):
    pos = jnp.arange(seq_len, dtype=jnp.float32)[:, None]
    idx = jnp.arange(d_model, dtype=jnp.float32)[None, :]
    angle = pos / jnp.power(10000.0, 2.0 * jnp.floor(idx / 2.0) / d_model)
    is_even = (jnp.arange(d_model) % 2 == 0)[None, :]
    return jnp.where(is_even, jnp.sin(angle), jnp.cos(angle))    # (S, D)


def init_encoder_params(key, d_model, d_k, d_v, n_head, dff, n_module):
    def dense(k, fan_in, fan_out):
        kw, kb = jax.random.split(k)
        bound = 1.0 / math.sqrt(fan_in)
        w = jax.random.uniform(kw, (fan_in, fan_out), jnp.float32, -bound, bound)
        b = jax.random.uniform(kb, (1, fan_out), jnp.float32, -bound, bound)
        return w, b

    scale = 1.0 / math.sqrt(d_k)
    layers = []
    for m in range(n_module):
        ks = jax.random.split(jax.random.fold_in(key, m), 6)
        wq, bq = dense(ks[0], d_model, n_head * d_k)
        wk, bk = dense(ks[1], d_model, n_head * d_k)
        wv, bv = dense(ks[2], d_model, n_head * d_v)
        wo, bo = dense(ks[3], n_head * d_v, d_model)
        w1, bf1 = dense(ks[4], d_model, dff)
        w2, bf2 = dense(ks[5], dff, d_model)
        # Fuse QKV; fold 1/sqrt(d_k) into the Q columns; weights in bf16.
        wqkv = jnp.concatenate([wq * scale, wk, wv], axis=1).astype(jnp.bfloat16)
        bqkv = jnp.concatenate([bq * scale, bk, bv], axis=1)     # f32 bias
        # Wo reshaped head-major (H, d_v, D) for the batched output einsum.
        wo3 = wo.reshape(n_head, d_v, d_model).astype(jnp.bfloat16)
        g1 = jnp.ones((1, d_model), jnp.float32)
        be1 = jnp.zeros((1, d_model), jnp.float32)
        g2 = jnp.ones((1, d_model), jnp.float32)
        be2 = jnp.zeros((1, d_model), jnp.float32)
        layers.append((wqkv, bqkv,
                       wo3, bo,
                       g1, be1,
                       w1.astype(jnp.bfloat16), bf1,
                       w2.astype(jnp.bfloat16), bf2,
                       g2, be2))
    return layers


def encoder_self_attention_forward(x, layers, n_head, d_k, d_v, tq=None):
    B, S, D = x.shape
    pe = sinusoid_encoding_table(S, D)        # (S, D); add fused into layer 0
    h = x
    for i, layer_params in enumerate(layers):
        h = _run_encoder_layer(h, pe if i == 0 else None, layer_params,
                               n_head, d_k, d_v, add_pe=(i == 0), tq=tq)
    # TODO(synk): optionally carry the inter-layer residual stream in bf16 to
    # halve activation HBM traffic (kept f32 here to match PyTorch numerics).
    return h


# ---------------------------------------------------------------------------
if __name__ == "__main__":
    B, S = 2, 8
    d_model, d_k, d_v, n_head = 32, 8, 8, 4
    dff, n_module = 64, 2

    key = jax.random.PRNGKey(0)
    kx, kp = jax.random.split(key)
    x = jax.random.normal(kx, (B, S, d_model), jnp.float32)

    layers = init_encoder_params(kp, d_model, d_k, d_v, n_head, dff, n_module)

    out = encoder_self_attention_forward(x, layers, n_head, d_k, d_v)
    out = jax.block_until_ready(out)
    assert out.shape == (B, S, d_model)
    print("KERNEL_OK")
</pallas_src>

<mosaic_0001>
module attributes {stable_mosaic.version = 11 : i64} {
  func.func @_encoder_layer_kernel(%arg0: i32, %arg1: i32, %arg2: memref<1x8x32xf32, #tpu.memory_space<vmem>>, %arg3: memref<8x32xf32, #tpu.memory_space<vmem>>, %arg4: memref<32x96xbf16, #tpu.memory_space<vmem>>, %arg5: memref<1x96xf32, #tpu.memory_space<vmem>>, %arg6: memref<4x8x32xbf16, #tpu.memory_space<vmem>>, %arg7: memref<1x32xf32, #tpu.memory_space<vmem>>, %arg8: memref<1x32xf32, #tpu.memory_space<vmem>>, %arg9: memref<1x32xf32, #tpu.memory_space<vmem>>, %arg10: memref<32x64xbf16, #tpu.memory_space<vmem>>, %arg11: memref<1x64xf32, #tpu.memory_space<vmem>>, %arg12: memref<64x32xbf16, #tpu.memory_space<vmem>>, %arg13: memref<1x32xf32, #tpu.memory_space<vmem>>, %arg14: memref<1x32xf32, #tpu.memory_space<vmem>>, %arg15: memref<1x32xf32, #tpu.memory_space<vmem>>, %arg16: memref<1x8x32xf32, #tpu.memory_space<vmem>>, %arg17: memref<4x8x8xbf16, #tpu.memory_space<vmem>>, %arg18: memref<4x8x8xbf16, #tpu.memory_space<vmem>>, %arg19: memref<4x8x8xbf16, #tpu.memory_space<vmem>>) attributes {dimension_semantics = [#tpu.dimension_semantics<parallel>, #tpu.dimension_semantics<arbitrary>], iteration_bounds = array<i64: 2, 1>, scalar_prefetch = 0 : i64, scratch_operands = 3 : i64, tpu.core_type = #tpu.core_type<tc>, window_params = [{transform_indices = @transform_0, window_bounds = array<i64: 1, 8, 32>}, {pipeline_mode = #tpu.pipeline_mode<synchronous>, transform_indices = @transform_1, window_bounds = array<i64: 8, 32>}, {pipeline_mode = #tpu.pipeline_mode<synchronous>, transform_indices = @transform_2, window_bounds = array<i64: 32, 96>}, {pipeline_mode = #tpu.pipeline_mode<synchronous>, transform_indices = @transform_3, window_bounds = array<i64: 1, 96>}, {pipeline_mode = #tpu.pipeline_mode<synchronous>, transform_indices = @transform_4, window_bounds = array<i64: 4, 8, 32>}, {pipeline_mode = #tpu.pipeline_mode<synchronous>, transform_indices = @transform_5, window_bounds = array<i64: 1, 32>}, {pipeline_mode = #tpu.pipeline_mode<synchronous>, transform_indices = @transform_6, window_bounds = array<i64: 1, 32>}, {pipeline_mode = #tpu.pipeline_mode<synchronous>, transform_indices = @transform_7, window_bounds = array<i64: 1, 32>}, {pipeline_mode = #tpu.pipeline_mode<synchronous>, transform_indices = @transform_8, window_bounds = array<i64: 32, 64>}, {pipeline_mode = #tpu.pipeline_mode<synchronous>, transform_indices = @transform_9, window_bounds = array<i64: 1, 64>}, {pipeline_mode = #tpu.pipeline_mode<synchronous>, transform_indices = @transform_10, window_bounds = array<i64: 64, 32>}, {pipeline_mode = #tpu.pipeline_mode<synchronous>, transform_indices = @transform_11, window_bounds = array<i64: 1, 32>}, {pipeline_mode = #tpu.pipeline_mode<synchronous>, transform_indices = @transform_12, window_bounds = array<i64: 1, 32>}, {pipeline_mode = #tpu.pipeline_mode<synchronous>, transform_indices = @transform_13, window_bounds = array<i64: 1, 32>}, {transform_indices = @transform_14, window_bounds = array<i64: 1, 8, 32>}]} {
    %c0_i32 = arith.constant 0 : i32
    %0 = arith.cmpi eq, %arg1, %c0_i32 : i32
    %1 = arith.extui %0 : i1 to i32
    %c0_i32_0 = arith.constant 0 : i32
    %2 = arith.cmpi ne, %1, %c0_i32_0 : i32
    scf.if %2 {
      %c0_56 = arith.constant 0 : index
      %c0_57 = arith.constant 0 : index
      %c0_58 = arith.constant 0 : index
      %97 = vector.load %arg2[%c0_56, %c0_57, %c0_58] : memref<1x8x32xf32, #tpu.memory_space<vmem>>, vector<1x8x32xf32>
      %98 = vector.shape_cast %97 : vector<1x8x32xf32> to vector<8x32xf32>
      %c0_59 = arith.constant 0 : index
      %c0_60 = arith.constant 0 : index
      %99 = vector.load %arg3[%c0_59, %c0_60] : memref<8x32xf32, #tpu.memory_space<vmem>>, vector<8x32xf32>
      %100 = arith.addf %98, %99 : vector<8x32xf32>
      %101 = arith.truncf %100 : vector<8x32xf32> to vector<8x32xbf16>
      %c0_61 = arith.constant 0 : index
      %c0_62 = arith.constant 0 : index
      %102 = vector.load %arg4[%c0_61, %c0_62] : memref<32x96xbf16, #tpu.memory_space<vmem>>, vector<32x96xbf16>
      %cst_63 = arith.constant dense<0.000000e+00> : vector<8x96xf32>
      %103 = tpu.matmul %101, %102, %cst_63 {dimension_numbers = #tpu.dot_dimension_numbers<[1], [0], [0], [1], [0, 0, 1, 1], [], []>} : vector<8x32xbf16>, vector<32x96xbf16>, vector<8x96xf32> -> vector<8x96xf32>
      %c0_64 = arith.constant 0 : index
      %c0_65 = arith.constant 0 : index
      %104 = vector.load %arg5[%c0_64, %c0_65] : memref<1x96xf32, #tpu.memory_space<vmem>>, vector<1x96xf32>
      %105 = vector.broadcast %104 : vector<1x96xf32> to vector<8x96xf32>
      %106 = arith.addf %103, %105 : vector<8x96xf32>
      %107 = arith.truncf %106 : vector<8x96xf32> to vector<8x96xbf16>
      %108 = vector.extract_strided_slice %107 {offsets = [0, 0], sizes = [8, 32], strides = [1, 1]} : vector<8x96xbf16> to vector<8x32xbf16>
      %109 = vector.extract_strided_slice %107 {offsets = [0, 32], sizes = [8, 32], strides = [1, 1]} : vector<8x96xbf16> to vector<8x32xbf16>
      %110 = vector.extract_strided_slice %107 {offsets = [0, 64], sizes = [8, 32], strides = [1, 1]} : vector<8x96xbf16> to vector<8x32xbf16>
      %111 = vector.extract_strided_slice %108 {offsets = [0, 0], sizes = [8, 8], strides = [1, 1]} : vector<8x32xbf16> to vector<8x8xbf16>
      %c0_66 = arith.constant 0 : index
      %c0_67 = arith.constant 0 : index
      %c0_68 = arith.constant 0 : index
      %112 = vector.load %arg17[%c0_66, %c0_67, %c0_68] : memref<4x8x8xbf16, #tpu.memory_space<vmem>>, vector<1x8x8xbf16>
      %113 = vector.shape_cast %112 : vector<1x8x8xbf16> to vector<8x8xbf16>
      %114 = vector.shape_cast %111 : vector<8x8xbf16> to vector<1x8x8xbf16>
      tpu.vector_store %arg17[%c0_66, %c0_67, %c0_68], %114 {strides = array<i32>} : memref<4x8x8xbf16, #tpu.memory_space<vmem>>, vector<1x8x8xbf16>,
      %115 = vector.extract_strided_slice %109 {offsets = [0, 0], sizes = [8, 8], strides = [1, 1]} : vector<8x32xbf16> to vector<8x8xbf16>
      %c0_69 = arith.constant 0 : index
      %c0_70 = arith.constant 0 : index
      %c0_71 = arith.constant 0 : index
      %116 = vector.load %arg18[%c0_69, %c0_70, %c0_71] : memref<4x8x8xbf16, #tpu.memory_space<vmem>>, vector<1x8x8xbf16>
      %117 = vector.shape_cast %116 : vector<1x8x8xbf16> to vector<8x8xbf16>
      %118 = vector.shape_cast %115 : vector<8x8xbf16> to vector<1x8x8xbf16>
      tpu.vector_store %arg18[%c0_69, %c0_70, %c0_71], %118 {strides = array<i32>} : memref<4x8x8xbf16, #tpu.memory_space<vmem>>, vector<1x8x8xbf16>,
      %119 = vector.extract_strided_slice %110 {offsets = [0, 0], sizes = [8, 8], strides = [1, 1]} : vector<8x32xbf16> to vector<8x8xbf16>
      %c0_72 = arith.constant 0 : index
      %c0_73 = arith.constant 0 : index
      %c0_74 = arith.constant 0 : index
      %120 = vector.load %arg19[%c0_72, %c0_73, %c0_74] : memref<4x8x8xbf16, #tpu.memory_space<vmem>>, vector<1x8x8xbf16>
      %121 = vector.shape_cast %120 : vector<1x8x8xbf16> to vector<8x8xbf16>
      %122 = vector.shape_cast %119 : vector<8x8xbf16> to vector<1x8x8xbf16>
      tpu.vector_store %arg19[%c0_72, %c0_73, %c0_74], %122 {strides = array<i32>} : memref<4x8x8xbf16, #tpu.memory_space<vmem>>, vector<1x8x8xbf16>,
      %123 = vector.extract_strided_slice %108 {offsets = [0, 8], sizes = [8, 8], strides = [1, 1]} : vector<8x32xbf16> to vector<8x8xbf16>
      %c1 = arith.constant 1 : index
      %c0_75 = arith.constant 0 : index
      %c0_76 = arith.constant 0 : index
      %124 = vector.load %arg17[%c1, %c0_75, %c0_76] : memref<4x8x8xbf16, #tpu.memory_space<vmem>>, vector<1x8x8xbf16>
      %125 = vector.shape_cast %124 : vector<1x8x8xbf16> to vector<8x8xbf16>
      %126 = vector.shape_cast %123 : vector<8x8xbf16> to vector<1x8x8xbf16>
      tpu.vector_store %arg17[%c1, %c0_75, %c0_76], %126 {strides = array<i32>} : memref<4x8x8xbf16, #tpu.memory_space<vmem>>, vector<1x8x8xbf16>,
      %127 = vector.extract_strided_slice %109 {offsets = [0, 8], sizes = [8, 8], strides = [1, 1]} : vector<8x32xbf16> to vector<8x8xbf16>
      %c1_77 = arith.constant 1 : index
      %c0_78 = arith.constant 0 : index
      %c0_79 = arith.constant 0 : index
      %128 = vector.load %arg18[%c1_77, %c0_78, %c0_79] : memref<4x8x8xbf16, #tpu.memory_space<vmem>>, vector<1x8x8xbf16>
      %129 = vector.shape_cast %128 : vector<1x8x8xbf16> to vector<8x8xbf16>
      %130 = vector.shape_cast %127 : vector<8x8xbf16> to vector<1x8x8xbf16>
      tpu.vector_store %arg18[%c1_77, %c0_78, %c0_79], %130 {strides = array<i32>} : memref<4x8x8xbf16, #tpu.memory_space<vmem>>, vector<1x8x8xbf16>,
      %131 = vector.extract_strided_slice %110 {offsets = [0, 8], sizes = [8, 8], strides = [1, 1]} : vector<8x32xbf16> to vector<8x8xbf16>
      %c1_80 = arith.constant 1 : index
      %c0_81 = arith.constant 0 : index
      %c0_82 = arith.constant 0 : index
      %132 = vector.load %arg19[%c1_80, %c0_81, %c0_82] : memref<4x8x8xbf16, #tpu.memory_space<vmem>>, vector<1x8x8xbf16>
      %133 = vector.shape_cast %132 : vector<1x8x8xbf16> to vector<8x8xbf16>
      %134 = vector.shape_cast %131 : vector<8x8xbf16> to vector<1x8x8xbf16>
      tpu.vector_store %arg19[%c1_80, %c0_81, %c0_82], %134 {strides = array<i32>} : memref<4x8x8xbf16, #tpu.memory_space<vmem>>, vector<1x8x8xbf16>,
      %135 = vector.extract_strided_slice %108 {offsets = [0, 16], sizes = [8, 8], strides = [1, 1]} : vector<8x32xbf16> to vector<8x8xbf16>
      %c2 = arith.constant 2 : index
      %c0_83 = arith.constant 0 : index
      %c0_84 = arith.constant 0 : index
      %136 = vector.load %arg17[%c2, %c0_83, %c0_84] : memref<4x8x8xbf16, #tpu.memory_space<vmem>>, vector<1x8x8xbf16>
      %137 = vector.shape_cast %136 : vector<1x8x8xbf16> to vector<8x8xbf16>
      %138 = vector.shape_cast %135 : vector<8x8xbf16> to vector<1x8x8xbf16>
      tpu.vector_store %arg17[%c2, %c0_83, %c0_84], %138 {strides = array<i32>} : memref<4x8x8xbf16, #tpu.memory_space<vmem>>, vector<1x8x8xbf16>,
      %139 = vector.extract_strided_slice %109 {offsets = [0, 16], sizes = [8, 8], strides = [1, 1]} : vector<8x32xbf16> to vector<8x8xbf16>
      %c2_85 = arith.constant 2 : index
      %c0_86 = arith.constant 0 : index
      %c0_87 = arith.constant 0 : index
      %140 = vector.load %arg18[%c2_85, %c0_86, %c0_87] : memref<4x8x8xbf16, #tpu.memory_space<vmem>>, vector<1x8x8xbf16>
      %141 = vector.shape_cast %140 : vector<1x8x8xbf16> to vector<8x8xbf16>
      %142 = vector.shape_cast %139 : vector<8x8xbf16> to vector<1x8x8xbf16>
      tpu.vector_store %arg18[%c2_85, %c0_86, %c0_87], %142 {strides = array<i32>} : memref<4x8x8xbf16, #tpu.memory_space<vmem>>, vector<1x8x8xbf16>,
      %143 = vector.extract_strided_slice %110 {offsets = [0, 16], sizes = [8, 8], strides = [1, 1]} : vector<8x32xbf16> to vector<8x8xbf16>
      %c2_88 = arith.constant 2 : index
      %c0_89 = arith.constant 0 : index
      %c0_90 = arith.constant 0 : index
      %144 = vector.load %arg19[%c2_88, %c0_89, %c0_90] : memref<4x8x8xbf16, #tpu.memory_space<vmem>>, vector<1x8x8xbf16>
      %145 = vector.shape_cast %144 : vector<1x8x8xbf16> to vector<8x8xbf16>
      %146 = vector.shape_cast %143 : vector<8x8xbf16> to vector<1x8x8xbf16>
      tpu.vector_store %arg19[%c2_88, %c0_89, %c0_90], %146 {strides = array<i32>} : memref<4x8x8xbf16, #tpu.memory_space<vmem>>, vector<1x8x8xbf16>,
      %147 = vector.extract_strided_slice %108 {offsets = [0, 24], sizes = [8, 8], strides = [1, 1]} : vector<8x32xbf16> to vector<8x8xbf16>
      %c3 = arith.constant 3 : index
      %c0_91 = arith.constant 0 : index
      %c0_92 = arith.constant 0 : index
      %148 = vector.load %arg17[%c3, %c0_91, %c0_92] : memref<4x8x8xbf16, #tpu.memory_space<vmem>>, vector<1x8x8xbf16>
      %149 = vector.shape_cast %148 : vector<1x8x8xbf16> to vector<8x8xbf16>
      %150 = vector.shape_cast %147 : vector<8x8xbf16> to vector<1x8x8xbf16>
      tpu.vector_store %arg17[%c3, %c0_91, %c0_92], %150 {strides = array<i32>} : memref<4x8x8xbf16, #tpu.memory_space<vmem>>, vector<1x8x8xbf16>,
      %151 = vector.extract_strided_slice %109 {offsets = [0, 24], sizes = [8, 8], strides = [1, 1]} : vector<8x32xbf16> to vector<8x8xbf16>
      %c3_93 = arith.constant 3 : index
      %c0_94 = arith.constant 0 : index
      %c0_95 = arith.constant 0 : index
      %152 = vector.load %arg18[%c3_93, %c0_94, %c0_95] : memref<4x8x8xbf16, #tpu.memory_space<vmem>>, vector<1x8x8xbf16>
      %153 = vector.shape_cast %152 : vector<1x8x8xbf16> to vector<8x8xbf16>
      %154 = vector.shape_cast %151 : vector<8x8xbf16> to vector<1x8x8xbf16>
      tpu.vector_store %arg18[%c3_93, %c0_94, %c0_95], %154 {strides = array<i32>} : memref<4x8x8xbf16, #tpu.memory_space<vmem>>, vector<1x8x8xbf16>,
      %155 = vector.extract_strided_slice %110 {offsets = [0, 24], sizes = [8, 8], strides = [1, 1]} : vector<8x32xbf16> to vector<8x8xbf16>
      %c3_96 = arith.constant 3 : index
      %c0_97 = arith.constant 0 : index
      %c0_98 = arith.constant 0 : index
      %156 = vector.load %arg19[%c3_96, %c0_97, %c0_98] : memref<4x8x8xbf16, #tpu.memory_space<vmem>>, vector<1x8x8xbf16>
      %157 = vector.shape_cast %156 : vector<1x8x8xbf16> to vector<8x8xbf16>
      %158 = vector.shape_cast %155 : vector<8x8xbf16> to vector<1x8x8xbf16>
      tpu.vector_store %arg19[%c3_96, %c0_97, %c0_98], %158 {strides = array<i32>} : memref<4x8x8xbf16, #tpu.memory_space<vmem>>, vector<1x8x8xbf16>,
    } else {
    }
    %c0 = arith.constant 0 : index
    %c0_1 = arith.constant 0 : index
    %c0_2 = arith.constant 0 : index
    %3 = vector.load %arg2[%c0, %c0_1, %c0_2] : memref<1x8x32xf32, #tpu.memory_space<vmem>>, vector<1x8x32xf32>
    %4 = vector.shape_cast %3 : vector<1x8x32xf32> to vector<8x32xf32>
    %c0_3 = arith.constant 0 : index
    %c0_4 = arith.constant 0 : index
    %5 = vector.load %arg3[%c0_3, %c0_4] : memref<8x32xf32, #tpu.memory_space<vmem>>, vector<8x32xf32>
    %6 = arith.addf %4, %5 : vector<8x32xf32>
    %c0_5 = arith.constant 0 : index
    %c0_6 = arith.constant 0 : index
    %c0_7 = arith.constant 0 : index
    %7 = vector.load %arg17[%c0_5, %c0_6, %c0_7] : memref<4x8x8xbf16, #tpu.memory_space<vmem>>, vector<4x8x8xbf16>
    %c0_8 = arith.constant 0 : index
    %c0_9 = arith.constant 0 : index
    %c0_10 = arith.constant 0 : index
    %8 = vector.load %arg18[%c0_8, %c0_9, %c0_10] : memref<4x8x8xbf16, #tpu.memory_space<vmem>>, vector<4x8x8xbf16>
    "tpu.trace_start"() <{level = 10 : i32, message = "hqd,hkd->hqk"}> : () -> ()
    %cst = arith.constant dense<0.000000e+00> : vector<4x8x8xf32>
    %9 = tpu.matmul %7, %8, %cst {dimension_numbers = #tpu.dot_dimension_numbers<[2], [2], [1], [1], [0, 0, 0, 1, 1, 1], [0], [0]>} : vector<4x8x8xbf16>, vector<4x8x8xbf16>, vector<4x8x8xf32> -> vector<4x8x8xf32>
    "tpu.trace_stop"() : () -> ()
    %cst_11 = arith.constant dense<0xFF800000> : vector<4x8xf32>
    %10 = vector.multi_reduction <maximumf>, %9, %cst_11 [2] : vector<4x8x8xf32> to vector<4x8xf32>
    %11 = vector.shape_cast %10 : vector<4x8xf32> to vector<4x8x1xf32>
    %12 = vector.broadcast %11 : vector<4x8x1xf32> to vector<4x8x8xf32>
    %13 = arith.subf %9, %12 : vector<4x8x8xf32>
    %14 = math.exp %13 : vector<4x8x8xf32>
    %cst_12 = arith.constant dense<0.000000e+00> : vector<4x8xf32>
    %15 = vector.multi_reduction <add>, %14, %cst_12 [2] : vector<4x8x8xf32> to vector<4x8xf32>
    %16 = vector.shape_cast %15 : vector<4x8xf32> to vector<4x8x1xf32>
    %17 = arith.truncf %14 : vector<4x8x8xf32> to vector<4x8x8xbf16>
    %c0_13 = arith.constant 0 : index
    %c0_14 = arith.constant 0 : index
    %c0_15 = arith.constant 0 : index
    %18 = vector.load %arg19[%c0_13, %c0_14, %c0_15] : memref<4x8x8xbf16, #tpu.memory_space<vmem>>, vector<4x8x8xbf16>
    "tpu.trace_start"() <{level = 10 : i32, message = "hqk,hkd->hqd"}> : () -> ()
    %cst_16 = arith.constant dense<0.000000e+00> : vector<4x8x8xf32>
    %19 = tpu.matmul %17, %18, %cst_16 {dimension_numbers = #tpu.dot_dimension_numbers<[2], [1], [1], [2], [0, 0, 0, 1, 1, 2], [0], [0]>} : vector<4x8x8xbf16>, vector<4x8x8xbf16>, vector<4x8x8xf32> -> vector<4x8x8xf32>
    "tpu.trace_stop"() : () -> ()
    %20 = tpu.reciprocal %16 {approx = true} : vector<4x8x1xf32> -> vector<4x8x1xf32>
    %21 = vector.broadcast %20 : vector<4x8x1xf32> to vector<4x8x8xf32>
    %22 = arith.mulf %19, %21 : vector<4x8x8xf32>
    %23 = arith.truncf %22 : vector<4x8x8xf32> to vector<4x8x8xbf16>
    %c0_17 = arith.constant 0 : index
    %c0_18 = arith.constant 0 : index
    %c0_19 = arith.constant 0 : index
    %24 = vector.load %arg6[%c0_17, %c0_18, %c0_19] : memref<4x8x32xbf16, #tpu.memory_space<vmem>>, vector<4x8x32xbf16>
    "tpu.trace_start"() <{level = 10 : i32, message = "hqd,hdm->hqm"}> : () -> ()
    %cst_20 = arith.constant dense<0.000000e+00> : vector<4x8x32xf32>
    %25 = tpu.matmul %23, %24, %cst_20 {dimension_numbers = #tpu.dot_dimension_numbers<[2], [1], [1], [2], [0, 0, 0, 1, 1, 2], [0], [0]>} : vector<4x8x8xbf16>, vector<4x8x32xbf16>, vector<4x8x32xf32> -> vector<4x8x32xf32>
    "tpu.trace_stop"() : () -> ()
    %cst_21 = arith.constant dense<0.000000e+00> : vector<8x32xf32>
    %26 = vector.multi_reduction <add>, %25, %cst_21 [0] : vector<4x8x32xf32> to vector<8x32xf32>
    %c0_22 = arith.constant 0 : index
    %c0_23 = arith.constant 0 : index
    %27 = vector.load %arg7[%c0_22, %c0_23] : memref<1x32xf32, #tpu.memory_space<vmem>>, vector<1x32xf32>
    %28 = vector.broadcast %27 : vector<1x32xf32> to vector<8x32xf32>
    %29 = arith.addf %26, %28 : vector<8x32xf32>
    %30 = arith.addf %6, %29 : vector<8x32xf32>
    %cst_24 = arith.constant dense<0.000000e+00> : vector<8xf32>
    %31 = vector.multi_reduction <add>, %30, %cst_24 [1] : vector<8x32xf32> to vector<8xf32>
    %32 = vector.shape_cast %31 : vector<8xf32> to vector<8x1xf32>
    %cst_25 = arith.constant 3.200000e+01 : f32
    %33 = vector.broadcast %cst_25 : f32 to vector<8x1xf32>
    %34 = arith.divf %32, %33 : vector<8x1xf32>
    %35 = vector.broadcast %34 : vector<8x1xf32> to vector<8x32xf32>
    %36 = arith.subf %30, %35 : vector<8x32xf32>
    %37 = arith.mulf %36, %36 : vector<8x32xf32>
    %cst_26 = arith.constant dense<0.000000e+00> : vector<8xf32>
    %38 = vector.multi_reduction <add>, %37, %cst_26 [1] : vector<8x32xf32> to vector<8xf32>
    %39 = vector.shape_cast %38 : vector<8xf32> to vector<8x1xf32>
    %cst_27 = arith.constant 3.200000e+01 : f32
    %40 = vector.broadcast %cst_27 : f32 to vector<8x1xf32>
    %41 = arith.divf %39, %40 : vector<8x1xf32>
    %42 = vector.broadcast %34 : vector<8x1xf32> to vector<8x32xf32>
    %43 = arith.subf %30, %42 : vector<8x32xf32>
    %cst_28 = arith.constant 9.99999974E-6 : f32
    %44 = vector.broadcast %cst_28 : f32 to vector<8x1xf32>
    %45 = arith.addf %41, %44 : vector<8x1xf32>
    %46 = math.rsqrt %45 : vector<8x1xf32>
    %47 = vector.broadcast %46 : vector<8x1xf32> to vector<8x32xf32>
    %48 = arith.mulf %43, %47 : vector<8x32xf32>
    %c0_29 = arith.constant 0 : index
    %c0_30 = arith.constant 0 : index
    %49 = vector.load %arg8[%c0_29, %c0_30] : memref<1x32xf32, #tpu.memory_space<vmem>>, vector<1x32xf32>
    %50 = vector.broadcast %49 : vector<1x32xf32> to vector<8x32xf32>
    %51 = arith.mulf %48, %50 : vector<8x32xf32>
    %c0_31 = arith.constant 0 : index
    %c0_32 = arith.constant 0 : index
    %52 = vector.load %arg9[%c0_31, %c0_32] : memref<1x32xf32, #tpu.memory_space<vmem>>, vector<1x32xf32>
    %53 = vector.broadcast %52 : vector<1x32xf32> to vector<8x32xf32>
    %54 = arith.addf %51, %53 : vector<8x32xf32>
    %55 = arith.truncf %54 : vector<8x32xf32> to vector<8x32xbf16>
    %c0_33 = arith.constant 0 : index
    %c0_34 = arith.constant 0 : index
    %56 = vector.load %arg10[%c0_33, %c0_34] : memref<32x64xbf16, #tpu.memory_space<vmem>>, vector<32x64xbf16>
    %cst_35 = arith.constant dense<0.000000e+00> : vector<8x64xf32>
    %57 = tpu.matmul %55, %56, %cst_35 {dimension_numbers = #tpu.dot_dimension_numbers<[1], [0], [0], [1], [0, 0, 1, 1], [], []>} : vector<8x32xbf16>, vector<32x64xbf16>, vector<8x64xf32> -> vector<8x64xf32>
    %c0_36 = arith.constant 0 : index
    %c0_37 = arith.constant 0 : index
    %58 = vector.load %arg11[%c0_36, %c0_37] : memref<1x64xf32, #tpu.memory_space<vmem>>, vector<1x64xf32>
    %59 = vector.broadcast %58 : vector<1x64xf32> to vector<8x64xf32>
    %60 = arith.addf %57, %59 : vector<8x64xf32>
    %cst_38 = arith.constant 0.000000e+00 : f32
    %61 = vector.broadcast %cst_38 : f32 to vector<8x64xf32>
    %62 = arith.maximumf %60, %61 : vector<8x64xf32>
    %63 = arith.truncf %62 : vector<8x64xf32> to vector<8x64xbf16>
    %c0_39 = arith.constant 0 : index
    %c0_40 = arith.constant 0 : index
    %64 = vector.load %arg12[%c0_39, %c0_40] : memref<64x32xbf16, #tpu.memory_space<vmem>>, vector<64x32xbf16>
    %cst_41 = arith.constant dense<0.000000e+00> : vector<8x32xf32>
    %65 = tpu.matmul %63, %64, %cst_41 {dimension_numbers = #tpu.dot_dimension_numbers<[1], [0], [0], [1], [0, 0, 1, 1], [], []>} : vector<8x64xbf16>, vector<64x32xbf16>, vector<8x32xf32> -> vector<8x32xf32>
    %c0_42 = arith.constant 0 : index
    %c0_43 = arith.constant 0 : index
    %66 = vector.load %arg13[%c0_42, %c0_43] : memref<1x32xf32, #tpu.memory_space<vmem>>, vector<1x32xf32>
    %67 = vector.broadcast %66 : vector<1x32xf32> to vector<8x32xf32>
    %68 = arith.addf %65, %67 : vector<8x32xf32>
    %69 = arith.addf %54, %68 : vector<8x32xf32>
    %cst_44 = arith.constant dense<0.000000e+00> : vector<8xf32>
    %70 = vector.multi_reduction <add>, %69, %cst_44 [1] : vector<8x32xf32> to vector<8xf32>
    %71 = vector.shape_cast %70 : vector<8xf32> to vector<8x1xf32>
    %cst_45 = arith.constant 3.200000e+01 : f32
    %72 = vector.broadcast %cst_45 : f32 to vector<8x1xf32>
    %73 = arith.divf %71, %72 : vector<8x1xf32>
    %74 = vector.broadcast %73 : vector<8x1xf32> to vector<8x32xf32>
    %75 = arith.subf %69, %74 : vector<8x32xf32>
    %76 = arith.mulf %75, %75 : vector<8x32xf32>
    %cst_46 = arith.constant dense<0.000000e+00> : vector<8xf32>
    %77 = vector.multi_reduction <add>, %76, %cst_46 [1] : vector<8x32xf32> to vector<8xf32>
    %78 = vector.shape_cast %77 : vector<8xf32> to vector<8x1xf32>
    %cst_47 = arith.constant 3.200000e+01 : f32
    %79 = vector.broadcast %cst_47 : f32 to vector<8x1xf32>
    %80 = arith.divf %78, %79 : vector<8x1xf32>
    %81 = vector.broadcast %73 : vector<8x1xf32> to vector<8x32xf32>
    %82 = arith.subf %69, %81 : vector<8x32xf32>
    %cst_48 = arith.constant 9.99999974E-6 : f32
    %83 = vector.broadcast %cst_48 : f32 to vector<8x1xf32>
    %84 = arith.addf %80, %83 : vector<8x1xf32>
    %85 = math.rsqrt %84 : vector<8x1xf32>
    %86 = vector.broadcast %85 : vector<8x1xf32> to vector<8x32xf32>
    %87 = arith.mulf %82, %86 : vector<8x32xf32>
    %c0_49 = arith.constant 0 : index
    %c0_50 = arith.constant 0 : index
    %88 = vector.load %arg14[%c0_49, %c0_50] : memref<1x32xf32, #tpu.memory_space<vmem>>, vector<1x32xf32>
    %89 = vector.broadcast %88 : vector<1x32xf32> to vector<8x32xf32>
    %90 = arith.mulf %87, %89 : vector<8x32xf32>
    %c0_51 = arith.constant 0 : index
    %c0_52 = arith.constant 0 : index
    %91 = vector.load %arg15[%c0_51, %c0_52] : memref<1x32xf32, #tpu.memory_space<vmem>>, vector<1x32xf32>
    %92 = vector.broadcast %91 : vector<1x32xf32> to vector<8x32xf32>
    %93 = arith.addf %90, %92 : vector<8x32xf32>
    %c0_53 = arith.constant 0 : index
    %c0_54 = arith.constant 0 : index
    %c0_55 = arith.constant 0 : index
    %94 = vector.load %arg16[%c0_53, %c0_54, %c0_55] : memref<1x8x32xf32, #tpu.memory_space<vmem>>, vector<1x8x32xf32>
    %95 = vector.shape_cast %94 : vector<1x8x32xf32> to vector<8x32xf32>
    %96 = vector.shape_cast %93 : vector<8x32xf32> to vector<1x8x32xf32>
    tpu.vector_store %arg16[%c0_53, %c0_54, %c0_55], %96 {strides = array<i32>} : memref<1x8x32xf32, #tpu.memory_space<vmem>>, vector<1x8x32xf32>,
    return
  }
  func.func @transform_0(%arg0: i32, %arg1: i32) -> (i32, i32, i32) {
    %c0_i32 = arith.constant 0 : i32
    %c0_i32_0 = arith.constant 0 : i32
    %c0_i32_1 = arith.constant 0 : i32
    return %arg0, %c0_i32, %c0_i32_0 : i32, i32, i32
  }
  func.func @transform_1(%arg0: i32, %arg1: i32) -> (i32, i32) {
    %c0_i32 = arith.constant 0 : i32
    %c0_i32_0 = arith.constant 0 : i32
    %c0_i32_1 = arith.constant 0 : i32
    return %c0_i32, %c0_i32_0 : i32, i32
  }
  func.func @transform_2(%arg0: i32, %arg1: i32) -> (i32, i32) {
    %c0_i32 = arith.constant 0 : i32
    %c0_i32_0 = arith.constant 0 : i32
    %c0_i32_1 = arith.constant 0 : i32
    return %c0_i32, %c0_i32_0 : i32, i32
  }
  func.func @transform_3(%arg0: i32, %arg1: i32) -> (i32, i32) {
    %c0_i32 = arith.constant 0 : i32
    %c0_i32_0 = arith.constant 0 : i32
    %c0_i32_1 = arith.constant 0 : i32
    return %c0_i32, %c0_i32_0 : i32, i32
  }
  func.func @transform_4(%arg0: i32, %arg1: i32) -> (i32, i32, i32) {
    %c0_i32 = arith.constant 0 : i32
    %c0_i32_0 = arith.constant 0 : i32
    %c0_i32_1 = arith.constant 0 : i32
    %c0_i32_2 = arith.constant 0 : i32
    return %c0_i32, %c0_i32_0, %c0_i32_1 : i32, i32, i32
  }
  func.func @transform_5(%arg0: i32, %arg1: i32) -> (i32, i32) {
    %c0_i32 = arith.constant 0 : i32
    %c0_i32_0 = arith.constant 0 : i32
    %c0_i32_1 = arith.constant 0 : i32
    return %c0_i32, %c0_i32_0 : i32, i32
  }
  func.func @transform_6(%arg0: i32, %arg1: i32) -> (i32, i32) {
    %c0_i32 = arith.constant 0 : i32
    %c0_i32_0 = arith.constant 0 : i32
    %c0_i32_1 = arith.constant 0 : i32
    return %c0_i32, %c0_i32_0 : i32, i32
  }
  func.func @transform_7(%arg0: i32, %arg1: i32) -> (i32, i32) {
    %c0_i32 = arith.constant 0 : i32
    %c0_i32_0 = arith.constant 0 : i32
    %c0_i32_1 = arith.constant 0 : i32
    return %c0_i32, %c0_i32_0 : i32, i32
  }
  func.func @transform_8(%arg0: i32, %arg1: i32) -> (i32, i32) {
    %c0_i32 = arith.constant 0 : i32
    %c0_i32_0 = arith.constant 0 : i32
    %c0_i32_1 = arith.constant 0 : i32
    return %c0_i32, %c0_i32_0 : i32, i32
  }
  func.func @transform_9(%arg0: i32, %arg1: i32) -> (i32, i32) {
    %c0_i32 = arith.constant 0 : i32
    %c0_i32_0 = arith.constant 0 : i32
    %c0_i32_1 = arith.constant 0 : i32
    return %c0_i32, %c0_i32_0 : i32, i32
  }
  func.func @transform_10(%arg0: i32, %arg1: i32) -> (i32, i32) {
    %c0_i32 = arith.constant 0 : i32
    %c0_i32_0 = arith.constant 0 : i32
    %c0_i32_1 = arith.constant 0 : i32
    return %c0_i32, %c0_i32_0 : i32, i32
  }
  func.func @transform_11(%arg0: i32, %arg1: i32) -> (i32, i32) {
    %c0_i32 = arith.constant 0 : i32
    %c0_i32_0 = arith.constant 0 : i32
    %c0_i32_1 = arith.constant 0 : i32
    return %c0_i32, %c0_i32_0 : i32, i32
  }
  func.func @transform_12(%arg0: i32, %arg1: i32) -> (i32, i32) {
    %c0_i32 = arith.constant 0 : i32
    %c0_i32_0 = arith.constant 0 : i32
    %c0_i32_1 = arith.constant 0 : i32
    return %c0_i32, %c0_i32_0 : i32, i32
  }
  func.func @transform_13(%arg0: i32, %arg1: i32) -> (i32, i32) {
    %c0_i32 = arith.constant 0 : i32
    %c0_i32_0 = arith.constant 0 : i32
    %c0_i32_1 = arith.constant 0 : i32
    return %c0_i32, %c0_i32_0 : i32, i32
  }
  func.func @transform_14(%arg0: i32, %arg1: i32) -> (i32, i32, i32) {
    %c0_i32 = arith.constant 0 : i32
    %c0_i32_0 = arith.constant 0 : i32
    return %arg0, %arg1, %c0_i32 : i32, i32, i32
  }
}

module attributes {stable_mosaic.version = 11 : i64} {
  func.func @_encoder_layer_kernel(%arg0: i32, %arg1: i32, %arg2: memref<1x8x32xf32, #tpu.memory_space<vmem>>, %arg3: memref<8x32xf32, #tpu.memory_space<vmem>>, %arg4: memref<32x96xbf16, #tpu.memory_space<vmem>>, %arg5: memref<1x96xf32, #tpu.memory_space<vmem>>, %arg6: memref<4x8x32xbf16, #tpu.memory_space<vmem>>, %arg7: memref<1x32xf32, #tpu.memory_space<vmem>>, %arg8: memref<1x32xf32, #tpu.memory_space<vmem>>, %arg9: memref<1x32xf32, #tpu.memory_space<vmem>>, %arg10: memref<32x64xbf16, #tpu.memory_space<vmem>>, %arg11: memref<1x64xf32, #tpu.memory_space<vmem>>, %arg12: memref<64x32xbf16, #tpu.memory_space<vmem>>, %arg13: memref<1x32xf32, #tpu.memory_space<vmem>>, %arg14: memref<1x32xf32, #tpu.memory_space<vmem>>, %arg15: memref<1x32xf32, #tpu.memory_space<vmem>>, %arg16: memref<1x8x32xf32, #tpu.memory_space<vmem>>, %arg17: memref<4x8x8xbf16, #tpu.memory_space<vmem>>, %arg18: memref<4x8x8xbf16, #tpu.memory_space<vmem>>, %arg19: memref<4x8x8xbf16, #tpu.memory_space<vmem>>) attributes {dimension_semantics = [#tpu.dimension_semantics<parallel>, #tpu.dimension_semantics<arbitrary>], iteration_bounds = array<i64: 2, 1>, scalar_prefetch = 0 : i64, scratch_operands = 3 : i64, tpu.core_type = #tpu.core_type<tc>, window_params = [{transform_indices = @transform_0, window_bounds = array<i64: 1, 8, 32>}, {pipeline_mode = #tpu.pipeline_mode<synchronous>, transform_indices = @transform_1, window_bounds = array<i64: 8, 32>}, {pipeline_mode = #tpu.pipeline_mode<synchronous>, transform_indices = @transform_2, window_bounds = array<i64: 32, 96>}, {pipeline_mode = #tpu.pipeline_mode<synchronous>, transform_indices = @transform_3, window_bounds = array<i64: 1, 96>}, {pipeline_mode = #tpu.pipeline_mode<synchronous>, transform_indices = @transform_4, window_bounds = array<i64: 4, 8, 32>}, {pipeline_mode = #tpu.pipeline_mode<synchronous>, transform_indices = @transform_5, window_bounds = array<i64: 1, 32>}, {pipeline_mode = #tpu.pipeline_mode<synchronous>, transform_indices = @transform_6, window_bounds = array<i64: 1, 32>}, {pipeline_mode = #tpu.pipeline_mode<synchronous>, transform_indices = @transform_7, window_bounds = array<i64: 1, 32>}, {pipeline_mode = #tpu.pipeline_mode<synchronous>, transform_indices = @transform_8, window_bounds = array<i64: 32, 64>}, {pipeline_mode = #tpu.pipeline_mode<synchronous>, transform_indices = @transform_9, window_bounds = array<i64: 1, 64>}, {pipeline_mode = #tpu.pipeline_mode<synchronous>, transform_indices = @transform_10, window_bounds = array<i64: 64, 32>}, {pipeline_mode = #tpu.pipeline_mode<synchronous>, transform_indices = @transform_11, window_bounds = array<i64: 1, 32>}, {pipeline_mode = #tpu.pipeline_mode<synchronous>, transform_indices = @transform_12, window_bounds = array<i64: 1, 32>}, {pipeline_mode = #tpu.pipeline_mode<synchronous>, transform_indices = @transform_13, window_bounds = array<i64: 1, 32>}, {transform_indices = @transform_14, window_bounds = array<i64: 1, 8, 32>}]} {
    %c0_i32 = arith.constant 0 : i32
    %0 = arith.cmpi eq, %arg1, %c0_i32 : i32
    %1 = arith.extui %0 : i1 to i32
    %c0_i32_0 = arith.constant 0 : i32
    %2 = arith.cmpi ne, %1, %c0_i32_0 : i32
    scf.if %2 {
      %c0_56 = arith.constant 0 : index
      %c0_57 = arith.constant 0 : index
      %c0_58 = arith.constant 0 : index
      %97 = vector.load %arg2[%c0_56, %c0_57, %c0_58] : memref<1x8x32xf32, #tpu.memory_space<vmem>>, vector<1x8x32xf32>
      %98 = vector.shape_cast %97 : vector<1x8x32xf32> to vector<8x32xf32>
      %c0_59 = arith.constant 0 : index
      %c0_60 = arith.constant 0 : index
      %99 = vector.load %arg3[%c0_59, %c0_60] : memref<8x32xf32, #tpu.memory_space<vmem>>, vector<8x32xf32>
      %100 = arith.addf %98, %99 : vector<8x32xf32>
      %101 = arith.truncf %100 : vector<8x32xf32> to vector<8x32xbf16>
      %c0_61 = arith.constant 0 : index
      %c0_62 = arith.constant 0 : index
      %102 = vector.load %arg4[%c0_61, %c0_62] : memref<32x96xbf16, #tpu.memory_space<vmem>>, vector<32x96xbf16>
      %cst_63 = arith.constant dense<0.000000e+00> : vector<8x96xf32>
      %103 = tpu.matmul %101, %102, %cst_63 {dimension_numbers = #tpu.dot_dimension_numbers<[1], [0], [0], [1], [0, 0, 1, 1], [], []>} : vector<8x32xbf16>, vector<32x96xbf16>, vector<8x96xf32> -> vector<8x96xf32>
      %c0_64 = arith.constant 0 : index
      %c0_65 = arith.constant 0 : index
      %104 = vector.load %arg5[%c0_64, %c0_65] : memref<1x96xf32, #tpu.memory_space<vmem>>, vector<1x96xf32>
      %105 = vector.broadcast %104 : vector<1x96xf32> to vector<8x96xf32>
      %106 = arith.addf %103, %105 : vector<8x96xf32>
      %107 = arith.truncf %106 : vector<8x96xf32> to vector<8x96xbf16>
      %108 = vector.extract_strided_slice %107 {offsets = [0, 0], sizes = [8, 32], strides = [1, 1]} : vector<8x96xbf16> to vector<8x32xbf16>
      %109 = vector.extract_strided_slice %107 {offsets = [0, 32], sizes = [8, 32], strides = [1, 1]} : vector<8x96xbf16> to vector<8x32xbf16>
      %110 = vector.extract_strided_slice %107 {offsets = [0, 64], sizes = [8, 32], strides = [1, 1]} : vector<8x96xbf16> to vector<8x32xbf16>
      %111 = vector.extract_strided_slice %108 {offsets = [0, 0], sizes = [8, 8], strides = [1, 1]} : vector<8x32xbf16> to vector<8x8xbf16>
      %c0_66 = arith.constant 0 : index
      %c0_67 = arith.constant 0 : index
      %c0_68 = arith.constant 0 : index
      %112 = vector.load %arg17[%c0_66, %c0_67, %c0_68] : memref<4x8x8xbf16, #tpu.memory_space<vmem>>, vector<1x8x8xbf16>
      %113 = vector.shape_cast %112 : vector<1x8x8xbf16> to vector<8x8xbf16>
      %114 = vector.shape_cast %111 : vector<8x8xbf16> to vector<1x8x8xbf16>
      tpu.vector_store %arg17[%c0_66, %c0_67, %c0_68], %114 {strides = array<i32>} : memref<4x8x8xbf16, #tpu.memory_space<vmem>>, vector<1x8x8xbf16>,
      %115 = vector.extract_strided_slice %109 {offsets = [0, 0], sizes = [8, 8], strides = [1, 1]} : vector<8x32xbf16> to vector<8x8xbf16>
      %c0_69 = arith.constant 0 : index
      %c0_70 = arith.constant 0 : index
      %c0_71 = arith.constant 0 : index
      %116 = vector.load %arg18[%c0_69, %c0_70, %c0_71] : memref<4x8x8xbf16, #tpu.memory_space<vmem>>, vector<1x8x8xbf16>
      %117 = vector.shape_cast %116 : vector<1x8x8xbf16> to vector<8x8xbf16>
      %118 = vector.shape_cast %115 : vector<8x8xbf16> to vector<1x8x8xbf16>
      tpu.vector_store %arg18[%c0_69, %c0_70, %c0_71], %118 {strides = array<i32>} : memref<4x8x8xbf16, #tpu.memory_space<vmem>>, vector<1x8x8xbf16>,
      %119 = vector.extract_strided_slice %110 {offsets = [0, 0], sizes = [8, 8], strides = [1, 1]} : vector<8x32xbf16> to vector<8x8xbf16>
      %c0_72 = arith.constant 0 : index
      %c0_73 = arith.constant 0 : index
      %c0_74 = arith.constant 0 : index
      %120 = vector.load %arg19[%c0_72, %c0_73, %c0_74] : memref<4x8x8xbf16, #tpu.memory_space<vmem>>, vector<1x8x8xbf16>
      %121 = vector.shape_cast %120 : vector<1x8x8xbf16> to vector<8x8xbf16>
      %122 = vector.shape_cast %119 : vector<8x8xbf16> to vector<1x8x8xbf16>
      tpu.vector_store %arg19[%c0_72, %c0_73, %c0_74], %122 {strides = array<i32>} : memref<4x8x8xbf16, #tpu.memory_space<vmem>>, vector<1x8x8xbf16>,
      %123 = vector.extract_strided_slice %108 {offsets = [0, 8], sizes = [8, 8], strides = [1, 1]} : vector<8x32xbf16> to vector<8x8xbf16>
      %c1 = arith.constant 1 : index
      %c0_75 = arith.constant 0 : index
      %c0_76 = arith.constant 0 : index
      %124 = vector.load %arg17[%c1, %c0_75, %c0_76] : memref<4x8x8xbf16, #tpu.memory_space<vmem>>, vector<1x8x8xbf16>
      %125 = vector.shape_cast %124 : vector<1x8x8xbf16> to vector<8x8xbf16>
      %126 = vector.shape_cast %123 : vector<8x8xbf16> to vector<1x8x8xbf16>
      tpu.vector_store %arg17[%c1, %c0_75, %c0_76], %126 {strides = array<i32>} : memref<4x8x8xbf16, #tpu.memory_space<vmem>>, vector<1x8x8xbf16>,
      %127 = vector.extract_strided_slice %109 {offsets = [0, 8], sizes = [8, 8], strides = [1, 1]} : vector<8x32xbf16> to vector<8x8xbf16>
      %c1_77 = arith.constant 1 : index
      %c0_78 = arith.constant 0 : index
      %c0_79 = arith.constant 0 : index
      %128 = vector.load %arg18[%c1_77, %c0_78, %c0_79] : memref<4x8x8xbf16, #tpu.memory_space<vmem>>, vector<1x8x8xbf16>
      %129 = vector.shape_cast %128 : vector<1x8x8xbf16> to vector<8x8xbf16>
      %130 = vector.shape_cast %127 : vector<8x8xbf16> to vector<1x8x8xbf16>
      tpu.vector_store %arg18[%c1_77, %c0_78, %c0_79], %130 {strides = array<i32>} : memref<4x8x8xbf16, #tpu.memory_space<vmem>>, vector<1x8x8xbf16>,
      %131 = vector.extract_strided_slice %110 {offsets = [0, 8], sizes = [8, 8], strides = [1, 1]} : vector<8x32xbf16> to vector<8x8xbf16>
      %c1_80 = arith.constant 1 : index
      %c0_81 = arith.constant 0 : index
      %c0_82 = arith.constant 0 : index
      %132 = vector.load %arg19[%c1_80, %c0_81, %c0_82] : memref<4x8x8xbf16, #tpu.memory_space<vmem>>, vector<1x8x8xbf16>
      %133 = vector.shape_cast %132 : vector<1x8x8xbf16> to vector<8x8xbf16>
      %134 = vector.shape_cast %131 : vector<8x8xbf16> to vector<1x8x8xbf16>
      tpu.vector_store %arg19[%c1_80, %c0_81, %c0_82], %134 {strides = array<i32>} : memref<4x8x8xbf16, #tpu.memory_space<vmem>>, vector<1x8x8xbf16>,
      %135 = vector.extract_strided_slice %108 {offsets = [0, 16], sizes = [8, 8], strides = [1, 1]} : vector<8x32xbf16> to vector<8x8xbf16>
      %c2 = arith.constant 2 : index
      %c0_83 = arith.constant 0 : index
      %c0_84 = arith.constant 0 : index
      %136 = vector.load %arg17[%c2, %c0_83, %c0_84] : memref<4x8x8xbf16, #tpu.memory_space<vmem>>, vector<1x8x8xbf16>
      %137 = vector.shape_cast %136 : vector<1x8x8xbf16> to vector<8x8xbf16>
      %138 = vector.shape_cast %135 : vector<8x8xbf16> to vector<1x8x8xbf16>
      tpu.vector_store %arg17[%c2, %c0_83, %c0_84], %138 {strides = array<i32>} : memref<4x8x8xbf16, #tpu.memory_space<vmem>>, vector<1x8x8xbf16>,
      %139 = vector.extract_strided_slice %109 {offsets = [0, 16], sizes = [8, 8], strides = [1, 1]} : vector<8x32xbf16> to vector<8x8xbf16>
      %c2_85 = arith.constant 2 : index
      %c0_86 = arith.constant 0 : index
      %c0_87 = arith.constant 0 : index
      %140 = vector.load %arg18[%c2_85, %c0_86, %c0_87] : memref<4x8x8xbf16, #tpu.memory_space<vmem>>, vector<1x8x8xbf16>
      %141 = vector.shape_cast %140 : vector<1x8x8xbf16> to vector<8x8xbf16>
      %142 = vector.shape_cast %139 : vector<8x8xbf16> to vector<1x8x8xbf16>
      tpu.vector_store %arg18[%c2_85, %c0_86, %c0_87], %142 {strides = array<i32>} : memref<4x8x8xbf16, #tpu.memory_space<vmem>>, vector<1x8x8xbf16>,
      %143 = vector.extract_strided_slice %110 {offsets = [0, 16], sizes = [8, 8], strides = [1, 1]} : vector<8x32xbf16> to vector<8x8xbf16>
      %c2_88 = arith.constant 2 : index
      %c0_89 = arith.constant 0 : index
      %c0_90 = arith.constant 0 : index
      %144 = vector.load %arg19[%c2_88, %c0_89, %c0_90] : memref<4x8x8xbf16, #tpu.memory_space<vmem>>, vector<1x8x8xbf16>
      %145 = vector.shape_cast %144 : vector<1x8x8xbf16> to vector<8x8xbf16>
      %146 = vector.shape_cast %143 : vector<8x8xbf16> to vector<1x8x8xbf16>
      tpu.vector_store %arg19[%c2_88, %c0_89, %c0_90], %146 {strides = array<i32>} : memref<4x8x8xbf16, #tpu.memory_space<vmem>>, vector<1x8x8xbf16>,
      %147 = vector.extract_strided_slice %108 {offsets = [0, 24], sizes = [8, 8], strides = [1, 1]} : vector<8x32xbf16> to vector<8x8xbf16>
      %c3 = arith.constant 3 : index
      %c0_91 = arith.constant 0 : index
      %c0_92 = arith.constant 0 : index
      %148 = vector.load %arg17[%c3, %c0_91, %c0_92] : memref<4x8x8xbf16, #tpu.memory_space<vmem>>, vector<1x8x8xbf16>
      %149 = vector.shape_cast %148 : vector<1x8x8xbf16> to vector<8x8xbf16>
      %150 = vector.shape_cast %147 : vector<8x8xbf16> to vector<1x8x8xbf16>
      tpu.vector_store %arg17[%c3, %c0_91, %c0_92], %150 {strides = array<i32>} : memref<4x8x8xbf16, #tpu.memory_space<vmem>>, vector<1x8x8xbf16>,
      %151 = vector.extract_strided_slice %109 {offsets = [0, 24], sizes = [8, 8], strides = [1, 1]} : vector<8x32xbf16> to vector<8x8xbf16>
      %c3_93 = arith.constant 3 : index
      %c0_94 = arith.constant 0 : index
      %c0_95 = arith.constant 0 : index
      %152 = vector.load %arg18[%c3_93, %c0_94, %c0_95] : memref<4x8x8xbf16, #tpu.memory_space<vmem>>, vector<1x8x8xbf16>
      %153 = vector.shape_cast %152 : vector<1x8x8xbf16> to vector<8x8xbf16>
      %154 = vector.shape_cast %151 : vector<8x8xbf16> to vector<1x8x8xbf16>
      tpu.vector_store %arg18[%c3_93, %c0_94, %c0_95], %154 {strides = array<i32>} : memref<4x8x8xbf16, #tpu.memory_space<vmem>>, vector<1x8x8xbf16>,
      %155 = vector.extract_strided_slice %110 {offsets = [0, 24], sizes = [8, 8], strides = [1, 1]} : vector<8x32xbf16> to vector<8x8xbf16>
      %c3_96 = arith.constant 3 : index
      %c0_97 = arith.constant 0 : index
      %c0_98 = arith.constant 0 : index
      %156 = vector.load %arg19[%c3_96, %c0_97, %c0_98] : memref<4x8x8xbf16, #tpu.memory_space<vmem>>, vector<1x8x8xbf16>
      %157 = vector.shape_cast %156 : vector<1x8x8xbf16> to vector<8x8xbf16>
      %158 = vector.shape_cast %155 : vector<8x8xbf16> to vector<1x8x8xbf16>
      tpu.vector_store %arg19[%c3_96, %c0_97, %c0_98], %158 {strides = array<i32>} : memref<4x8x8xbf16, #tpu.memory_space<vmem>>, vector<1x8x8xbf16>,
    } else {
    }
    %c0 = arith.constant 0 : index
    %c0_1 = arith.constant 0 : index
    %c0_2 = arith.constant 0 : index
    %3 = vector.load %arg2[%c0, %c0_1, %c0_2] : memref<1x8x32xf32, #tpu.memory_space<vmem>>, vector<1x8x32xf32>
    %4 = vector.shape_cast %3 : vector<1x8x32xf32> to vector<8x32xf32>
    %c0_3 = arith.constant 0 : index
    %c0_4 = arith.constant 0 : index
    %5 = vector.load %arg3[%c0_3, %c0_4] : memref<8x32xf32, #tpu.memory_space<vmem>>, vector<8x32xf32>
    %6 = arith.addf %4, %5 : vector<8x32xf32>
    %c0_5 = arith.constant 0 : index
    %c0_6 = arith.constant 0 : index
    %c0_7 = arith.constant 0 : index
    %7 = vector.load %arg17[%c0_5, %c0_6, %c0_7] : memref<4x8x8xbf16, #tpu.memory_space<vmem>>, vector<4x8x8xbf16>
    %c0_8 = arith.constant 0 : index
    %c0_9 = arith.constant 0 : index
    %c0_10 = arith.constant 0 : index
    %8 = vector.load %arg18[%c0_8, %c0_9, %c0_10] : memref<4x8x8xbf16, #tpu.memory_space<vmem>>, vector<4x8x8xbf16>
    "tpu.trace_start"() <{level = 10 : i32, message = "hqd,hkd->hqk"}> : () -> ()
    %cst = arith.constant dense<0.000000e+00> : vector<4x8x8xf32>
    %9 = tpu.matmul %7, %8, %cst {dimension_numbers = #tpu.dot_dimension_numbers<[2], [2], [1], [1], [0, 0, 0, 1, 1, 1], [0], [0]>} : vector<4x8x8xbf16>, vector<4x8x8xbf16>, vector<4x8x8xf32> -> vector<4x8x8xf32>
    "tpu.trace_stop"() : () -> ()
    %cst_11 = arith.constant dense<0xFF800000> : vector<4x8xf32>
    %10 = vector.multi_reduction <maximumf>, %9, %cst_11 [2] : vector<4x8x8xf32> to vector<4x8xf32>
    %11 = vector.shape_cast %10 : vector<4x8xf32> to vector<4x8x1xf32>
    %12 = vector.broadcast %11 : vector<4x8x1xf32> to vector<4x8x8xf32>
    %13 = arith.subf %9, %12 : vector<4x8x8xf32>
    %14 = math.exp %13 : vector<4x8x8xf32>
    %cst_12 = arith.constant dense<0.000000e+00> : vector<4x8xf32>
    %15 = vector.multi_reduction <add>, %14, %cst_12 [2] : vector<4x8x8xf32> to vector<4x8xf32>
    %16 = vector.shape_cast %15 : vector<4x8xf32> to vector<4x8x1xf32>
    %17 = arith.truncf %14 : vector<4x8x8xf32> to vector<4x8x8xbf16>
    %c0_13 = arith.constant 0 : index
    %c0_14 = arith.constant 0 : index
    %c0_15 = arith.constant 0 : index
    %18 = vector.load %arg19[%c0_13, %c0_14, %c0_15] : memref<4x8x8xbf16, #tpu.memory_space<vmem>>, vector<4x8x8xbf16>
    "tpu.trace_start"() <{level = 10 : i32, message = "hqk,hkd->hqd"}> : () -> ()
    %cst_16 = arith.constant dense<0.000000e+00> : vector<4x8x8xf32>
    %19 = tpu.matmul %17, %18, %cst_16 {dimension_numbers = #tpu.dot_dimension_numbers<[2], [1], [1], [2], [0, 0, 0, 1, 1, 2], [0], [0]>} : vector<4x8x8xbf16>, vector<4x8x8xbf16>, vector<4x8x8xf32> -> vector<4x8x8xf32>
    "tpu.trace_stop"() : () -> ()
    %20 = tpu.reciprocal %16 {approx = true} : vector<4x8x1xf32> -> vector<4x8x1xf32>
    %21 = vector.broadcast %20 : vector<4x8x1xf32> to vector<4x8x8xf32>
    %22 = arith.mulf %19, %21 : vector<4x8x8xf32>
    %23 = arith.truncf %22 : vector<4x8x8xf32> to vector<4x8x8xbf16>
    %c0_17 = arith.constant 0 : index
    %c0_18 = arith.constant 0 : index
    %c0_19 = arith.constant 0 : index
    %24 = vector.load %arg6[%c0_17, %c0_18, %c0_19] : memref<4x8x32xbf16, #tpu.memory_space<vmem>>, vector<4x8x32xbf16>
    "tpu.trace_start"() <{level = 10 : i32, message = "hqd,hdm->hqm"}> : () -> ()
    %cst_20 = arith.constant dense<0.000000e+00> : vector<4x8x32xf32>
    %25 = tpu.matmul %23, %24, %cst_20 {dimension_numbers = #tpu.dot_dimension_numbers<[2], [1], [1], [2], [0, 0, 0, 1, 1, 2], [0], [0]>} : vector<4x8x8xbf16>, vector<4x8x32xbf16>, vector<4x8x32xf32> -> vector<4x8x32xf32>
    "tpu.trace_stop"() : () -> ()
    %cst_21 = arith.constant dense<0.000000e+00> : vector<8x32xf32>
    %26 = vector.multi_reduction <add>, %25, %cst_21 [0] : vector<4x8x32xf32> to vector<8x32xf32>
    %c0_22 = arith.constant 0 : index
    %c0_23 = arith.constant 0 : index
    %27 = vector.load %arg7[%c0_22, %c0_23] : memref<1x32xf32, #tpu.memory_space<vmem>>, vector<1x32xf32>
    %28 = vector.broadcast %27 : vector<1x32xf32> to vector<8x32xf32>
    %29 = arith.addf %26, %28 : vector<8x32xf32>
    %30 = arith.addf %6, %29 : vector<8x32xf32>
    %cst_24 = arith.constant dense<0.000000e+00> : vector<8xf32>
    %31 = vector.multi_reduction <add>, %30, %cst_24 [1] : vector<8x32xf32> to vector<8xf32>
    %32 = vector.shape_cast %31 : vector<8xf32> to vector<8x1xf32>
    %cst_25 = arith.constant 3.200000e+01 : f32
    %33 = vector.broadcast %cst_25 : f32 to vector<8x1xf32>
    %34 = arith.divf %32, %33 : vector<8x1xf32>
    %35 = vector.broadcast %34 : vector<8x1xf32> to vector<8x32xf32>
    %36 = arith.subf %30, %35 : vector<8x32xf32>
    %37 = arith.mulf %36, %36 : vector<8x32xf32>
    %cst_26 = arith.constant dense<0.000000e+00> : vector<8xf32>
    %38 = vector.multi_reduction <add>, %37, %cst_26 [1] : vector<8x32xf32> to vector<8xf32>
    %39 = vector.shape_cast %38 : vector<8xf32> to vector<8x1xf32>
    %cst_27 = arith.constant 3.200000e+01 : f32
    %40 = vector.broadcast %cst_27 : f32 to vector<8x1xf32>
    %41 = arith.divf %39, %40 : vector<8x1xf32>
    %42 = vector.broadcast %34 : vector<8x1xf32> to vector<8x32xf32>
    %43 = arith.subf %30, %42 : vector<8x32xf32>
    %cst_28 = arith.constant 9.99999974E-6 : f32
    %44 = vector.broadcast %cst_28 : f32 to vector<8x1xf32>
    %45 = arith.addf %41, %44 : vector<8x1xf32>
    %46 = math.rsqrt %45 : vector<8x1xf32>
    %47 = vector.broadcast %46 : vector<8x1xf32> to vector<8x32xf32>
    %48 = arith.mulf %43, %47 : vector<8x32xf32>
    %c0_29 = arith.constant 0 : index
    %c0_30 = arith.constant 0 : index
    %49 = vector.load %arg8[%c0_29, %c0_30] : memref<1x32xf32, #tpu.memory_space<vmem>>, vector<1x32xf32>
    %50 = vector.broadcast %49 : vector<1x32xf32> to vector<8x32xf32>
    %51 = arith.mulf %48, %50 : vector<8x32xf32>
    %c0_31 = arith.constant 0 : index
    %c0_32 = arith.constant 0 : index
    %52 = vector.load %arg9[%c0_31, %c0_32] : memref<1x32xf32, #tpu.memory_space<vmem>>, vector<1x32xf32>
    %53 = vector.broadcast %52 : vector<1x32xf32> to vector<8x32xf32>
    %54 = arith.addf %51, %53 : vector<8x32xf32>
    %55 = arith.truncf %54 : vector<8x32xf32> to vector<8x32xbf16>
    %c0_33 = arith.constant 0 : index
    %c0_34 = arith.constant 0 : index
    %56 = vector.load %arg10[%c0_33, %c0_34] : memref<32x64xbf16, #tpu.memory_space<vmem>>, vector<32x64xbf16>
    %cst_35 = arith.constant dense<0.000000e+00> : vector<8x64xf32>
    %57 = tpu.matmul %55, %56, %cst_35 {dimension_numbers = #tpu.dot_dimension_numbers<[1], [0], [0], [1], [0, 0, 1, 1], [], []>} : vector<8x32xbf16>, vector<32x64xbf16>, vector<8x64xf32> -> vector<8x64xf32>
    %c0_36 = arith.constant 0 : index
    %c0_37 = arith.constant 0 : index
    %58 = vector.load %arg11[%c0_36, %c0_37] : memref<1x64xf32, #tpu.memory_space<vmem>>, vector<1x64xf32>
    %59 = vector.broadcast %58 : vector<1x64xf32> to vector<8x64xf32>
    %60 = arith.addf %57, %59 : vector<8x64xf32>
    %cst_38 = arith.constant 0.000000e+00 : f32
    %61 = vector.broadcast %cst_38 : f32 to vector<8x64xf32>
    %62 = arith.maximumf %60, %61 : vector<8x64xf32>
    %63 = arith.truncf %62 : vector<8x64xf32> to vector<8x64xbf16>
    %c0_39 = arith.constant 0 : index
    %c0_40 = arith.constant 0 : index
    %64 = vector.load %arg12[%c0_39, %c0_40] : memref<64x32xbf16, #tpu.memory_space<vmem>>, vector<64x32xbf16>
    %cst_41 = arith.constant dense<0.000000e+00> : vector<8x32xf32>
    %65 = tpu.matmul %63, %64, %cst_41 {dimension_numbers = #tpu.dot_dimension_numbers<[1], [0], [0], [1], [0, 0, 1, 1], [], []>} : vector<8x64xbf16>, vector<64x32xbf16>, vector<8x32xf32> -> vector<8x32xf32>
    %c0_42 = arith.constant 0 : index
    %c0_43 = arith.constant 0 : index
    %66 = vector.load %arg13[%c0_42, %c0_43] : memref<1x32xf32, #tpu.memory_space<vmem>>, vector<1x32xf32>
    %67 = vector.broadcast %66 : vector<1x32xf32> to vector<8x32xf32>
    %68 = arith.addf %65, %67 : vector<8x32xf32>
    %69 = arith.addf %54, %68 : vector<8x32xf32>
    %cst_44 = arith.constant dense<0.000000e+00> : vector<8xf32>
    %70 = vector.multi_reduction <add>, %69, %cst_44 [1] : vector<8x32xf32> to vector<8xf32>
    %71 = vector.shape_cast %70 : vector<8xf32> to vector<8x1xf32>
    %cst_45 = arith.constant 3.200000e+01 : f32
    %72 = vector.broadcast %cst_45 : f32 to vector<8x1xf32>
    %73 = arith.divf %71, %72 : vector<8x1xf32>
    %74 = vector.broadcast %73 : vector<8x1xf32> to vector<8x32xf32>
    %75 = arith.subf %69, %74 : vector<8x32xf32>
    %76 = arith.mulf %75, %75 : vector<8x32xf32>
    %cst_46 = arith.constant dense<0.000000e+00> : vector<8xf32>
    %77 = vector.multi_reduction <add>, %76, %cst_46 [1] : vector<8x32xf32> to vector<8xf32>
    %78 = vector.shape_cast %77 : vector<8xf32> to vector<8x1xf32>
    %cst_47 = arith.constant 3.200000e+01 : f32
    %79 = vector.broadcast %cst_47 : f32 to vector<8x1xf32>
    %80 = arith.divf %78, %79 : vector<8x1xf32>
    %81 = vector.broadcast %73 : vector<8x1xf32> to vector<8x32xf32>
    %82 = arith.subf %69, %81 : vector<8x32xf32>
    %cst_48 = arith.constant 9.99999974E-6 : f32
    %83 = vector.broadcast %cst_48 : f32 to vector<8x1xf32>
    %84 = arith.addf %80, %83 : vector<8x1xf32>
    %85 = math.rsqrt %84 : vector<8x1xf32>
    %86 = vector.broadcast %85 : vector<8x1xf32> to vector<8x32xf32>
    %87 = arith.mulf %82, %86 : vector<8x32xf32>
    %c0_49 = arith.constant 0 : index
    %c0_50 = arith.constant 0 : index
    %88 = vector.load %arg14[%c0_49, %c0_50] : memref<1x32xf32, #tpu.memory_space<vmem>>, vector<1x32xf32>
    %89 = vector.broadcast %88 : vector<1x32xf32> to vector<8x32xf32>
    %90 = arith.mulf %87, %89 : vector<8x32xf32>
    %c0_51 = arith.constant 0 : index
    %c0_52 = arith.constant 0 : index
    %91 = vector.load %arg15[%c0_51, %c0_52] : memref<1x32xf32, #tpu.memory_space<vmem>>, vector<1x32xf32>
    %92 = vector.broadcast %91 : vector<1x32xf32> to vector<8x32xf32>
    %93 = arith.addf %90, %92 : vector<8x32xf32>
    %c0_53 = arith.constant 0 : index
    %c0_54 = arith.constant 0 : index
    %c0_55 = arith.constant 0 : index
    %94 = vector.load %arg16[%c0_53, %c0_54, %c0_55] : memref<1x8x32xf32, #tpu.memory_space<vmem>>, vector<1x8x32xf32>
    %95 = vector.shape_cast %94 : vector<1x8x32xf32> to vector<8x32xf32>
    %96 = vector.shape_cast %93 : vector<8x32xf32> to vector<1x8x32xf32>
    tpu.vector_store %arg16[%c0_53, %c0_54, %c0_55], %96 {strides = array<i32>} : memref<1x8x32xf32, #tpu.memory_space<vmem>>, vector<1x8x32xf32>,
    return
  }
  func.func @transform_0(%arg0: i32, %arg1: i32) -> (i32, i32, i32) {
    %c0_i32 = arith.constant 0 : i32
    %c0_i32_0 = arith.constant 0 : i32
    %c0_i32_1 = arith.constant 0 : i32
    return %arg0, %c0_i32, %c0_i32_0 : i32, i32, i32
  }
  func.func @transform_1(%arg0: i32, %arg1: i32) -> (i32, i32) {
    %c0_i32 = arith.constant 0 : i32
    %c0_i32_0 = arith.constant 0 : i32
    %c0_i32_1 = arith.constant 0 : i32
    return %c0_i32, %c0_i32_0 : i32, i32
  }
  func.func @transform_2(%arg0: i32, %arg1: i32) -> (i32, i32) {
    %c0_i32 = arith.constant 0 : i32
    %c0_i32_0 = arith.constant 0 : i32
    %c0_i32_1 = arith.constant 0 : i32
    return %c0_i32, %c0_i32_0 : i32, i32
  }
  func.func @transform_3(%arg0: i32, %arg1: i32) -> (i32, i32) {
    %c0_i32 = arith.constant 0 : i32
    %c0_i32_0 = arith.constant 0 : i32
    %c0_i32_1 = arith.constant 0 : i32
    return %c0_i32, %c0_i32_0 : i32, i32
  }
  func.func @transform_4(%arg0: i32, %arg1: i32) -> (i32, i32, i32) {
    %c0_i32 = arith.constant 0 : i32
    %c0_i32_0 = arith.constant 0 : i32
    %c0_i32_1 = arith.constant 0 : i32
    %c0_i32_2 = arith.constant 0 : i32
    return %c0_i32, %c0_i32_0, %c0_i32_1 : i32, i32, i32
  }
  func.func @transform_5(%arg0: i32, %arg1: i32) -> (i32, i32) {
    %c0_i32 = arith.constant 0 : i32
    %c0_i32_0 = arith.constant 0 : i32
    %c0_i32_1 = arith.constant 0 : i32
    return %c0_i32, %c0_i32_0 : i32, i32
  }
  func.func @transform_6(%arg0: i32, %arg1: i32) -> (i32, i32) {
    %c0_i32 = arith.constant 0 : i32
    %c0_i32_0 = arith.constant 0 : i32
    %c0_i32_1 = arith.constant 0 : i32
    return %c0_i32, %c0_i32_0 : i32, i32
  }
  func.func @transform_7(%arg0: i32, %arg1: i32) -> (i32, i32) {
    %c0_i32 = arith.constant 0 : i32
    %c0_i32_0 = arith.constant 0 : i32
    %c0_i32_1 = arith.constant 0 : i32
    return %c0_i32, %c0_i32_0 : i32, i32
  }
  func.func @transform_8(%arg0: i32, %arg1: i32) -> (i32, i32) {
    %c0_i32 = arith.constant 0 : i32
    %c0_i32_0 = arith.constant 0 : i32
    %c0_i32_1 = arith.constant 0 : i32
    return %c0_i32, %c0_i32_0 : i32, i32
  }
  func.func @transform_9(%arg0: i32, %arg1: i32) -> (i32, i32) {
    %c0_i32 = arith.constant 0 : i32
    %c0_i32_0 = arith.constant 0 : i32
    %c0_i32_1 = arith.constant 0 : i32
    return %c0_i32, %c0_i32_0 : i32, i32
  }
  func.func @transform_10(%arg0: i32, %arg1: i32) -> (i32, i32) {
    %c0_i32 = arith.constant 0 : i32
    %c0_i32_0 = arith.constant 0 : i32
    %c0_i32_1 = arith.constant 0 : i32
    return %c0_i32, %c0_i32_0 : i32, i32
  }
  func.func @transform_11(%arg0: i32, %arg1: i32) -> (i32, i32) {
    %c0_i32 = arith.constant 0 : i32
    %c0_i32_0 = arith.constant 0 : i32
    %c0_i32_1 = arith.constant 0 : i32
    return %c0_i32, %c0_i32_0 : i32, i32
  }
  func.func @transform_12(%arg0: i32, %arg1: i32) -> (i32, i32) {
    %c0_i32 = arith.constant 0 : i32
    %c0_i32_0 = arith.constant 0 : i32
    %c0_i32_1 = arith.constant 0 : i32
    return %c0_i32, %c0_i32_0 : i32, i32
  }
  func.func @transform_13(%arg0: i32, %arg1: i32) -> (i32, i32) {
    %c0_i32 = arith.constant 0 : i32
    %c0_i32_0 = arith.constant 0 : i32
    %c0_i32_1 = arith.constant 0 : i32
    return %c0_i32, %c0_i32_0 : i32, i32
  }
  func.func @transform_14(%arg0: i32, %arg1: i32) -> (i32, i32, i32) {
    %c0_i32 = arith.constant 0 : i32
    %c0_i32_0 = arith.constant 0 : i32
    return %arg0, %arg1, %c0_i32 : i32, i32, i32
  }
}

</mosaic_0001>

<llo_original>
// kernel: tpu_custom_call.1
$region0: #{tpu_custom_call.1}
  #allocation0 [shape = 'u32[]', space=smem, size = 0x4, offset = 0x4, fixed_abs, tag = 'smem constant byte address 0x4 - core index']
  #allocation1 [shape = 'u32[144,128]{1,0:T(1,128)}', space=vmem, size = 0x12000, scoped, tag = 'internal scratch']
  #allocation2 [shape = 'bf16[4,8,8]{2,1,0:T(8,128)(2,1)}', space=vmem, size = 0x2000, scoped, tag = 'scratch operand']
  #allocation3 [shape = 'bf16[4,8,8]{2,1,0:T(8,128)(2,1)}', space=vmem, size = 0x2000, scoped, tag = 'scratch operand']
  #allocation4 [shape = 'bf16[4,8,8]{2,1,0:T(8,128)(2,1)}', space=vmem, size = 0x2000, scoped, tag = 'scratch operand']
  %s0 = inlined_call_operand.vmem [shape: f32[2,8,32], index: 0, kind: input, shape index: {}]
  %s1 = inlined_call_operand.hbm [shape: f32[8,32], index: 1, kind: input, shape index: {}]
  %s2 = inlined_call_operand.vmem [shape: bf16[32,96], index: 2, kind: input, shape index: {}]
  %s3 = inlined_call_operand.vmem [shape: f32[1,96], index: 3, kind: input, shape index: {}]
  %s4 = inlined_call_operand.vmem [shape: bf16[4,8,32], index: 4, kind: input, shape index: {}]
  %s5 = inlined_call_operand.vmem [shape: f32[1,32], index: 5, kind: input, shape index: {}]
  %s6 = inlined_call_operand.hbm [shape: f32[1,32], index: 6, kind: input, shape index: {}]
  %s7 = inlined_call_operand.hbm [shape: f32[1,32], index: 7, kind: input, shape index: {}]
  %s8 = inlined_call_operand.hbm [shape: bf16[32,64], index: 8, kind: input, shape index: {}]
  %s9 = inlined_call_operand.hbm [shape: f32[1,64], index: 9, kind: input, shape index: {}]
  %s10 = inlined_call_operand.vmem [shape: bf16[64,32], index: 10, kind: input, shape index: {}]
  %s11 = inlined_call_operand.vmem [shape: f32[1,32], index: 11, kind: input, shape index: {}]
  %s12 = inlined_call_operand.vmem [shape: f32[1,32], index: 12, kind: input, shape index: {}]
  %s13 = inlined_call_operand.vmem [shape: f32[1,32], index: 13, kind: input, shape index: {}]
  %s14 = inlined_call_operand.hbm [shape: f32[2,8,32], index: 14, kind: output, shape index: {}]
  %s15 = sld [smem:[#allocation0]]
  $region113: #{tpu_custom_call.1} parent=0
    _
  %s17 = ssub.s32 1, %s15
  %s18 = scalar_select 0, %s17, %s15
  $region1: #{tpu_custom_call.1} parent=0
    #allocation5 [shape = 'u8[4096]{0}', space=vmem, size = 0x1000, scoped, tag = 'input window, operand 1, single buffered']
    #allocation6 [shape = 's32[2]{0}', space=sflag, size = 0x8, scoped, tag = 'scoped memory for tpu_custom_call.1']
    #allocation7 [shape = 's32[2]{0}', space=sflag, size = 0x8, scoped, tag = 'scoped memory for tpu_custom_call.1']
    #allocation8 [shape = 'u8[512]{0}', space=vmem, size = 0x400, scoped, tag = 'input window, operand 6, single buffered']
    #allocation9 [shape = 's32[1]{0}', space=sflag, size = 0x4, scoped, tag = 'scoped memory for tpu_custom_call.1']
    #allocation10 [shape = 'u8[512]{0}', space=vmem, size = 0x400, scoped, tag = 'input window, operand 7, single buffered']
    #allocation11 [shape = 'u8[8192]{0}', space=vmem, size = 0x2000, scoped, tag = 'input window, operand 8, single buffered']
    #allocation12 [shape = 's32[1]{0}', space=sflag, size = 0x4, scoped, tag = 'scoped memory for tpu_custom_call.1']
    #allocation13 [shape = 'u8[512]{0}', space=vmem, size = 0x400, scoped, tag = 'input window, operand 9, single buffered']
    #allocation14 [shape = 'u8[8192]{0}', space=vmem, size = 0x2000, scoped, tag = 'output window, operand 0']
    %19 = vsyncpa [#allocation6], 0
    %20 = vsyncpa [#allocation9], 0
    %21 = vsyncpa [#allocation12], 0
    %22 = vsyncpa [#allocation7], 0
    %s23 = scalar_lea.sflag [#allocation7], 1
    %24 = vsyncpa %s23, 0
    loop: start=0, step=1, limit=4
    $region2: #{tpu_custom_call.1} parent=1 // loop_pre_header
      _
    $region3: #{tpu_custom_call.1} parent=1 // loop_header
      %s26 = sphi 0, %s30
      %p27 = scmp.ge.s32.totalorder %s26, 4
      %s33 = sphi 0, %s45
      %s34 = sphi 0, %s41
      %s35 = sphi 0, %s33
      %s36 = sphi 0, %s34
      %s37 = sphi 0, %s35
      %s38 = sphi 0, %s36
      %s48 = sphi 0, %s50
      %s51 = sphi 0, %s48
      %s52 = sphi 0, %s51
      %s68 = sphi 0, %s52
      %s72 = sphi 0, %s72
      %s74 = sphi 0, %s72
      %s75 = sphi 0, %s74
      %s89 = sphi 0, %s75
      %s93 = sphi 0, %s93
      %s95 = sphi 0, %s93
      %s96 = sphi 0, %s95
      %s110 = sphi 0, %s96
      %s114 = sphi 0, %s114
      %s116 = sphi 0, %s114
      %s117 = sphi 0, %s116
      %s131 = sphi 0, %s117
      %s135 = sphi 0, %s135
      %s137 = sphi 0, %s135
      %s138 = sphi 0, %s137
      %s152 = sphi 0, %s138
      %s156 = sphi 0, %s156
      %s158 = sphi 0, %s156
      %s159 = sphi 0, %s158
      %s173 = sphi 0, %s159
      %s177 = sphi 0, %s177
      %s179 = sphi 0, %s177
      %s180 = sphi 0, %s179
      %s194 = sphi 0, %s180
      %s198 = sphi 0, %s198
      %s200 = sphi 0, %s198
      %s201 = sphi 0, %s200
      %s215 = sphi 0, %s201
      %s219 = sphi 0, %s219
      %s221 = sphi 0, %s219
      %s222 = sphi 0, %s221
      %s236 = sphi 0, %s222
      %s240 = sphi 0, %s240
      %s242 = sphi 0, %s240
      %s243 = sphi 0, %s242
      %s257 = sphi 0, %s243
      %s261 = sphi 0, %s261
      %s263 = sphi 0, %s261
      %s264 = sphi 0, %s263
      %s278 = sphi 0, %s264
      %s282 = sphi 0, %s282
      %s284 = sphi 0, %s282
      %s285 = sphi 0, %s284
      %s299 = sphi 0, %s285
      %s303 = sphi 0, %s303
      %s305 = sphi 0, %s303
      %s306 = sphi 0, %s305
      %s320 = sphi 0, %s306
      %s324 = sphi 0, %s324
      %s326 = sphi 0, %s324
      %s327 = sphi 0, %s326
      %s341 = sphi 0, %s327
      %s349 = sphi 0, %s351
      %s352 = sphi 0, %s349
      %s353 = sphi 0, %s352
      %s369 = sphi 0, %s353
    $region4: #{tpu_custom_call.1} parent=1 // loop_header_branch
      %29 = sbr.rel (%p27) target = $region8
    $region5: #{tpu_custom_call.1} parent=1 // loop_body
      %s31 = ssub.s32 %s26, 1
      %s32 = ssub.s32 %s26, 2
      %s39 = sadd.s32 1, %s34
      %p40 = scmp.ge.s32.totalorder %s39, 1
      %s41 = scalar_select %p40, 0, %s39
      %s42 = sadd.s32 1, %s33
      %s43 = scalar_select %p40, %s42, %s33
      %p44 = scmp.ge.s32.totalorder %s43, 2
      %s45 = scalar_select %p44, 0, %s43
      %s46 = ssub.s32 %s33, %s45
      %p47 = scmp.eq.s32.totalorder %s46, 0
      %s49 = sadd.s32 %s48, 1
      %s50 = scalar_select %p47, %s48, %s49
      %p53 = pneg %p47
      %p54 = scmp.eq.s32.totalorder %s26, 1
      %p55 = por %p53, %p54
      %p56 = scmp.ne.s32.totalorder %s48, %s51
      %p57 = scmp.eq.s32.totalorder %s26, 0
      %p58 = por %p56, %p57
      %p59 = scmp.ne.s32.totalorder %s48, %s51
      %p60 = scmp.eq.s32.totalorder %s31, 1
      %p61 = por %p59, %p60
      %p62 = scmp.ne.s32.totalorder %s51, %s52
      %p63 = scmp.eq.s32.totalorder %s31, 0
      %p64 = por %p62, %p63
      %p65 = scmp.ne.s32.totalorder %s51, %s52
      %p66 = scmp.eq.s32.totalorder %s32, 1
      %p67 = por %p65, %p66
      %p69 = scmp.ne.s32.totalorder %s52, %s68
      %p70 = scmp.eq.s32.totalorder %s32, 0
      %p71 = por %p69, %p70
      %s73 = sadd.s32 %s72, 1
      %p76 = scmp.eq.s32.totalorder %s26, 1
      %p77 = scmp.ne.s32.totalorder %s72, %s74
      %p78 = scmp.eq.s32.totalorder %s26, 0
      %p79 = por %p77, %p78
      %p80 = scmp.ne.s32.totalorder %s72, %s74
      %p81 = scmp.eq.s32.totalorder %s31, 1
      %p82 = por %p80, %p81
      %p83 = scmp.ne.s32.totalorder %s74, %s75
      %p84 = scmp.eq.s32.totalorder %s31, 0
      %p85 = por %p83, %p84
      %p86 = scmp.ne.s32.totalorder %s74, %s75
      %p87 = scmp.eq.s32.totalorder %s32, 1
      %p88 = por %p86, %p87
      %p90 = scmp.ne.s32.totalorder %s75, %s89
      %p91 = scmp.eq.s32.totalorder %s32, 0
      %p92 = por %p90, %p91
      %s94 = sadd.s32 %s93, 1
      %p97 = scmp.eq.s32.totalorder %s26, 1
      %p98 = scmp.ne.s32.totalorder %s93, %s95
      %p99 = scmp.eq.s32.totalorder %s26, 0
      %p100 = por %p98, %p99
      %p101 = scmp.ne.s32.totalorder %s93, %s95
      %p102 = scmp.eq.s32.totalorder %s31, 1
      %p103 = por %p101, %p102
      %p104 = scmp.ne.s32.totalorder %s95, %s96
      %p105 = scmp.eq.s32.totalorder %s31, 0
      %p106 = por %p104, %p105
      %p107 = scmp.ne.s32.totalorder %s95, %s96
      %p108 = scmp.eq.s32.totalorder %s32, 1
      %p109 = por %p107, %p108
      %p111 = scmp.ne.s32.totalorder %s96, %s110
      %p112 = scmp.eq.s32.totalorder %s32, 0
      %p113 = por %p111, %p112
      %s115 = sadd.s32 %s114, 1
      %p118 = scmp.eq.s32.totalorder %s26, 1
      %p119 = scmp.ne.s32.totalorder %s114, %s116
      %p120 = scmp.eq.s32.totalorder %s26, 0
      %p121 = por %p119, %p120
      %p122 = scmp.ne.s32.totalorder %s114, %s116
      %p123 = scmp.eq.s32.totalorder %s31, 1
      %p124 = por %p122, %p123
      %p125 = scmp.ne.s32.totalorder %s116, %s117
      %p126 = scmp.eq.s32.totalorder %s31, 0
      %p127 = por %p125, %p126
      %p128 = scmp.ne.s32.totalorder %s116, %s117
      %p129 = scmp.eq.s32.totalorder %s32, 1
      %p130 = por %p128, %p129
      %p132 = scmp.ne.s32.totalorder %s117, %s131
      %p133 = scmp.eq.s32.totalorder %s32, 0
      %p134 = por %p132, %p133
      %s136 = sadd.s32 %s135, 1
      %p139 = scmp.eq.s32.totalorder %s26, 1
      %p140 = scmp.ne.s32.totalorder %s135, %s137
      %p141 = scmp.eq.s32.totalorder %s26, 0
      %p142 = por %p140, %p141
      %p143 = scmp.ne.s32.totalorder %s135, %s137
      %p144 = scmp.eq.s32.totalorder %s31, 1
      %p145 = por %p143, %p144
      %p146 = scmp.ne.s32.totalorder %s137, %s138
      %p147 = scmp.eq.s32.totalorder %s31, 0
      %p148 = por %p146, %p147
      %p149 = scmp.ne.s32.totalorder %s137, %s138
      %p150 = scmp.eq.s32.totalorder %s32, 1
      %p151 = por %p149, %p150
      %p153 = scmp.ne.s32.totalorder %s138, %s152
      %p154 = scmp.eq.s32.totalorder %s32, 0
      %p155 = por %p153, %p154
      %s157 = sadd.s32 %s156, 1
      %p160 = scmp.eq.s32.totalorder %s26, 1
      %p161 = scmp.ne.s32.totalorder %s156, %s158
      %p162 = scmp.eq.s32.totalorder %s26, 0
      %p163 = por %p161, %p162
      %p164 = scmp.ne.s32.totalorder %s156, %s158
      %p165 = scmp.eq.s32.totalorder %s31, 1
      %p166 = por %p164, %p165
      %p167 = scmp.ne.s32.totalorder %s158, %s159
      %p168 = scmp.eq.s32.totalorder %s31, 0
      %p169 = por %p167, %p168
      %p170 = scmp.ne.s32.totalorder %s158, %s159
      %p171 = scmp.eq.s32.totalorder %s32, 1
      %p172 = por %p170, %p171
      %p174 = scmp.ne.s32.totalorder %s159, %s173
      %p175 = scmp.eq.s32.totalorder %s32, 0
      %p176 = por %p174, %p175
      %s178 = sadd.s32 %s177, 1
      %p181 = scmp.eq.s32.totalorder %s26, 1
      %p182 = scmp.ne.s32.totalorder %s177, %s179
      %p183 = scmp.eq.s32.totalorder %s26, 0
      %p184 = por %p182, %p183
      %p185 = scmp.ne.s32.totalorder %s177, %s179
      %p186 = scmp.eq.s32.totalorder %s31, 1
      %p187 = por %p185, %p186
      %p188 = scmp.ne.s32.totalorder %s179, %s180
      %p189 = scmp.eq.s32.totalorder %s31, 0
      %p190 = por %p188, %p189
      %p191 = scmp.ne.s32.totalorder %s179, %s180
      %p192 = scmp.eq.s32.totalorder %s32, 1
      %p193 = por %p191, %p192
      %p195 = scmp.ne.s32.totalorder %s180, %s194
      %p196 = scmp.eq.s32.totalorder %s32, 0
      %p197 = por %p195, %p196
      %s199 = sadd.s32 %s198, 1
      %p202 = scmp.eq.s32.totalorder %s26, 1
      %p203 = scmp.ne.s32.totalorder %s198, %s200
      %p204 = scmp.eq.s32.totalorder %s26, 0
      %p205 = por %p203, %p204
      %p206 = scmp.ne.s32.totalorder %s198, %s200
      %p207 = scmp.eq.s32.totalorder %s31, 1
      %p208 = por %p206, %p207
      %p209 = scmp.ne.s32.totalorder %s200, %s201
      %p210 = scmp.eq.s32.totalorder %s31, 0
      %p211 = por %p209, %p210
      %p212 = scmp.ne.s32.totalorder %s200, %s201
      %p213 = scmp.eq.s32.totalorder %s32, 1
      %p214 = por %p212, %p213
      %p216 = scmp.ne.s32.totalorder %s201, %s215
      %p217 = scmp.eq.s32.totalorder %s32, 0
      %p218 = por %p216, %p217
      %s220 = sadd.s32 %s219, 1
      %p223 = scmp.eq.s32.totalorder %s26, 1
      %p224 = scmp.ne.s32.totalorder %s219, %s221
      %p225 = scmp.eq.s32.totalorder %s26, 0
      %p226 = por %p224, %p225
      %p227 = scmp.ne.s32.totalorder %s219, %s221
      %p228 = scmp.eq.s32.totalorder %s31, 1
      %p229 = por %p227, %p228
      %p230 = scmp.ne.s32.totalorder %s221, %s222
      %p231 = scmp.eq.s32.totalorder %s31, 0
      %p232 = por %p230, %p231
      %p233 = scmp.ne.s32.totalorder %s221, %s222
      %p234 = scmp.eq.s32.totalorder %s32, 1
      %p235 = por %p233, %p234
      %p237 = scmp.ne.s32.totalorder %s222, %s236
      %p238 = scmp.eq.s32.totalorder %s32, 0
      %p239 = por %p237, %p238
      %s241 = sadd.s32 %s240, 1
      %p244 = scmp.eq.s32.totalorder %s26, 1
      %p245 = scmp.ne.s32.totalorder %s240, %s242
      %p246 = scmp.eq.s32.totalorder %s26, 0
      %p247 = por %p245, %p246
      %p248 = scmp.ne.s32.totalorder %s240, %s242
      %p249 = scmp.eq.s32.totalorder %s31, 1
      %p250 = por %p248, %p249
      %p251 = scmp.ne.s32.totalorder %s242, %s243
      %p252 = scmp.eq.s32.totalorder %s31, 0
      %p253 = por %p251, %p252
      %p254 = scmp.ne.s32.totalorder %s242, %s243
      %p255 = scmp.eq.s32.totalorder %s32, 1
      %p256 = por %p254, %p255
      %p258 = scmp.ne.s32.totalorder %s243, %s257
      %p259 = scmp.eq.s32.totalorder %s32, 0
      %p260 = por %p258, %p259
      %s262 = sadd.s32 %s261, 1
      %p265 = scmp.eq.s32.totalorder %s26, 1
      %p266 = scmp.ne.s32.totalorder %s261, %s263
      %p267 = scmp.eq.s32.totalorder %s26, 0
      %p268 = por %p266, %p267
      %p269 = scmp.ne.s32.totalorder %s261, %s263
      %p270 = scmp.eq.s32.totalorder %s31, 1
      %p271 = por %p269, %p270
      %p272 = scmp.ne.s32.totalorder %s263, %s264
      %p273 = scmp.eq.s32.totalorder %s31, 0
      %p274 = por %p272, %p273
      %p275 = scmp.ne.s32.totalorder %s263, %s264
      %p276 = scmp.eq.s32.totalorder %s32, 1
      %p277 = por %p275, %p276
      %p279 = scmp.ne.s32.totalorder %s264, %s278
      %p280 = scmp.eq.s32.totalorder %s32, 0
      %p281 = por %p279, %p280
      %s283 = sadd.s32 %s282, 1
      %p286 = scmp.eq.s32.totalorder %s26, 1
      %p287 = scmp.ne.s32.totalorder %s282, %s284
      %p288 = scmp.eq.s32.totalorder %s26, 0
      %p289 = por %p287, %p288
      %p290 = scmp.ne.s32.totalorder %s282, %s284
      %p291 = scmp.eq.s32.totalorder %s31, 1
      %p292 = por %p290, %p291
      %p293 = scmp.ne.s32.totalorder %s284, %s285
      %p294 = scmp.eq.s32.totalorder %s31, 0
      %p295 = por %p293, %p294
      %p296 = scmp.ne.s32.totalorder %s284, %s285
      %p297 = scmp.eq.s32.totalorder %s32, 1
      %p298 = por %p296, %p297
      %p300 = scmp.ne.s32.totalorder %s285, %s299
      %p301 = scmp.eq.s32.totalorder %s32, 0
      %p302 = por %p300, %p301
      %s304 = sadd.s32 %s303, 1
      %p307 = scmp.eq.s32.totalorder %s26, 1
      %p308 = scmp.ne.s32.totalorder %s303, %s305
      %p309 = scmp.eq.s32.totalorder %s26, 0
      %p310 = por %p308, %p309
      %p311 = scmp.ne.s32.totalorder %s303, %s305
      %p312 = scmp.eq.s32.totalorder %s31, 1
      %p313 = por %p311, %p312
      %p314 = scmp.ne.s32.totalorder %s305, %s306
      %p315 = scmp.eq.s32.totalorder %s31, 0
      %p316 = por %p314, %p315
      %p317 = scmp.ne.s32.totalorder %s305, %s306
      %p318 = scmp.eq.s32.totalorder %s32, 1
      %p319 = por %p317, %p318
      %p321 = scmp.ne.s32.totalorder %s306, %s320
      %p322 = scmp.eq.s32.totalorder %s32, 0
      %p323 = por %p321, %p322
      %s325 = sadd.s32 %s324, 1
      %p328 = scmp.eq.s32.totalorder %s26, 1
      %p329 = scmp.ne.s32.totalorder %s324, %s326
      %p330 = scmp.eq.s32.totalorder %s26, 0
      %p331 = por %p329, %p330
      %p332 = scmp.ne.s32.totalorder %s324, %s326
      %p333 = scmp.eq.s32.totalorder %s31, 1
      %p334 = por %p332, %p333
      %p335 = scmp.ne.s32.totalorder %s326, %s327
      %p336 = scmp.eq.s32.totalorder %s31, 0
      %p337 = por %p335, %p336
      %p338 = scmp.ne.s32.totalorder %s326, %s327
      %p339 = scmp.eq.s32.totalorder %s32, 1
      %p340 = por %p338, %p339
      %p342 = scmp.ne.s32.totalorder %s327, %s341
      %p343 = scmp.eq.s32.totalorder %s32, 0
      %p344 = por %p342, %p343
      %s345 = ssub.s32 %s33, %s45
      %s346 = ssub.s32 %s34, %s41
      %s347 = sor.u32 %s345, %s346
      %p348 = scmp.eq.s32.totalorder %s347, 0
      %s350 = sadd.s32 %s349, 1
      %s351 = scalar_select %p348, %s349, %s350
      %p354 = pneg %p348
      %p355 = scmp.eq.s32.totalorder %s26, 1
      %p356 = por %p354, %p355
      %p357 = scmp.ne.s32.totalorder %s349, %s352
      %p358 = scmp.eq.s32.totalorder %s26, 0
      %p359 = por %p357, %p358
      %p360 = scmp.ne.s32.totalorder %s349, %s352
      %p361 = scmp.eq.s32.totalorder %s31, 1
      %p362 = por %p360, %p361
      %p363 = scmp.ne.s32.totalorder %s352, %s353
      %p364 = scmp.eq.s32.totalorder %s31, 0
      %p365 = por %p363, %p364
      %p366 = scmp.ne.s32.totalorder %s352, %s353
      %p367 = scmp.eq.s32.totalorder %s32, 1
      %p368 = por %p366, %p367
      %p370 = scmp.ne.s32.totalorder %s353, %s369
      %p371 = scmp.eq.s32.totalorder %s32, 0
      %p372 = por %p370, %p371
      %p373 = scmp.le.s32.totalorder 1, %s26
      %p374 = scmp.lt.s32.totalorder %s26, 3
      %p375 = pnand %p373, %p374
      %p376 = pneg %p375
      // Predicated region
      $region9: #{tpu_custom_call.1} parent=5 // pred_check
        _
      $region10: #{tpu_custom_call.1} parent=5 // pred_check_branch
        %378 = sbr.rel (%p375) target = $region12
      $region11: #{tpu_custom_call.1} parent=5 // pred_region
        %s379 = ssub.s32 %s26, 1
        // Predicated region
        $region13: #{tpu_custom_call.1} parent=11 // pred_check
          %p380 = pneg %p85
        $region14: #{tpu_custom_call.1} parent=11 // pred_check_branch
          %382 = sbr.rel (%p380) target = $region16
        $region15: #{tpu_custom_call.1} parent=11 // pred_region
          %s384 = ssub.s32 128, 128
          %385 = vsyncadd [#allocation6], %s384
          %s387 = sshll.u32 [#allocation5], 4
          %s388 = int_to_ptr.vmem [resolvable:$true] %s387
          %390 = dma.hbm_to_vmem [thread:$0]  %s1, 128, %s388, [#allocation6]
        $region16: #{tpu_custom_call.1} parent=11 // pred_fallthru
          _
        // Predicated region
        $region17: #{tpu_custom_call.1} parent=11 // pred_check
          %p391 = pneg %p106
        $region18: #{tpu_custom_call.1} parent=11 // pred_check_branch
          %393 = sbr.rel (%p391) target = $region20
        $region19: #{tpu_custom_call.1} parent=11 // pred_region
          _
        $region20: #{tpu_custom_call.1} parent=11 // pred_fallthru
          _
        // Predicated region
        $region21: #{tpu_custom_call.1} parent=11 // pred_check
          %p394 = pneg %p127
        $region22: #{tpu_custom_call.1} parent=11 // pred_check_branch
          %396 = sbr.rel (%p394) target = $region24
        $region23: #{tpu_custom_call.1} parent=11 // pred_region
          _
        $region24: #{tpu_custom_call.1} parent=11 // pred_fallthru
          _
        // Predicated region
        $region25: #{tpu_custom_call.1} parent=11 // pred_check
          %p397 = pneg %p148
        $region26: #{tpu_custom_call.1} parent=11 // pred_check_branch
          %399 = sbr.rel (%p397) target = $region28
        $region27: #{tpu_custom_call.1} parent=11 // pred_region
          _
        $region28: #{tpu_custom_call.1} parent=11 // pred_fallthru
          _
        // Predicated region
        $region29: #{tpu_custom_call.1} parent=11 // pred_check
          %p400 = pneg %p169
        $region30: #{tpu_custom_call.1} parent=11 // pred_check_branch
          %402 = sbr.rel (%p400) target = $region32
        $region31: #{tpu_custom_call.1} parent=11 // pred_region
          _
        $region32: #{tpu_custom_call.1} parent=11 // pred_fallthru
          _
        // Predicated region
        $region33: #{tpu_custom_call.1} parent=11 // pred_check
          %p403 = pneg %p190
        $region34: #{tpu_custom_call.1} parent=11 // pred_check_branch
          %405 = sbr.rel (%p403) target = $region36
        $region35: #{tpu_custom_call.1} parent=11 // pred_region
          %s407 = ssub.s32 16, 16
          %408 = vsyncadd [#allocation9], %s407
          %s410 = sshll.u32 [#allocation8], 4
          %s411 = int_to_ptr.vmem [resolvable:$true] %s410
          %413 = dma.hbm_to_vmem [thread:$0]  %s6, 16, %s411, [#allocation9]
        $region36: #{tpu_custom_call.1} parent=11 // pred_fallthru
          _
        // Predicated region
        $region37: #{tpu_custom_call.1} parent=11 // pred_check
          %p414 = pneg %p211
        $region38: #{tpu_custom_call.1} parent=11 // pred_check_branch
          %416 = sbr.rel (%p414) target = $region40
        $region39: #{tpu_custom_call.1} parent=11 // pred_region
          %s418 = ssub.s32 16, 16
          %419 = vsyncadd [#allocation9], %s418
          %s421 = sshll.u32 [#allocation10], 4
          %s422 = int_to_ptr.vmem [resolvable:$true] %s421
          %424 = dma.hbm_to_vmem [thread:$0]  %s7, 16, %s422, [#allocation9]
        $region40: #{tpu_custom_call.1} parent=11 // pred_fallthru
          _
        // Predicated region
        $region41: #{tpu_custom_call.1} parent=11 // pred_check
          %p425 = pneg %p232
        $region42: #{tpu_custom_call.1} parent=11 // pred_check_branch
          %427 = sbr.rel (%p425) target = $region44
        $region43: #{tpu_custom_call.1} parent=11 // pred_region
          %s429 = ssub.s32 256, 256
          %430 = vsyncadd [#allocation12], %s429
          %s431 = sshll.u32 [#allocation11], 4
          %s432 = int_to_ptr.vmem [resolvable:$true] %s431
          %437 = dma.hbm_to_vmem [thread:$0]  %s8, 256, %s432, [#allocation12], 64, 64, 4
        $region44: #{tpu_custom_call.1} parent=11 // pred_fallthru
          _
        // Predicated region
        $region45: #{tpu_custom_call.1} parent=11 // pred_check
          %p438 = pneg %p253
        $region46: #{tpu_custom_call.1} parent=11 // pred_check_branch
          %440 = sbr.rel (%p438) target = $region48
        $region47: #{tpu_custom_call.1} parent=11 // pred_region
          %s442 = ssub.s32 16, 16
          %443 = vsyncadd [#allocation12], %s442
          %s445 = sshll.u32 [#allocation13], 4
          %s446 = int_to_ptr.vmem [resolvable:$true] %s445
          %448 = dma.hbm_to_vmem [thread:$0]  %s9, 16, %s446, [#allocation12]
        $region48: #{tpu_custom_call.1} parent=11 // pred_fallthru
          _
        // Predicated region
        $region49: #{tpu_custom_call.1} parent=11 // pred_check
          %p449 = pneg %p274
        $region50: #{tpu_custom_call.1} parent=11 // pred_check_branch
          %451 = sbr.rel (%p449) target = $region52
        $region51: #{tpu_custom_call.1} parent=11 // pred_region
          _
        $region52: #{tpu_custom_call.1} parent=11 // pred_fallthru
          _
        // Predicated region
        $region53: #{tpu_custom_call.1} parent=11 // pred_check
          %p452 = pneg %p295
        $region54: #{tpu_custom_call.1} parent=11 // pred_check_branch
          %454 = sbr.rel (%p452) target = $region56
        $region55: #{tpu_custom_call.1} parent=11 // pred_region
          _
        $region56: #{tpu_custom_call.1} parent=11 // pred_fallthru
          _
        // Predicated region
        $region57: #{tpu_custom_call.1} parent=11 // pred_check
          %p455 = pneg %p316
        $region58: #{tpu_custom_call.1} parent=11 // pred_check_branch
          %457 = sbr.rel (%p455) target = $region60
        $region59: #{tpu_custom_call.1} parent=11 // pred_region
          _
        $region60: #{tpu_custom_call.1} parent=11 // pred_fallthru
          _
        // Predicated region
        $region61: #{tpu_custom_call.1} parent=11 // pred_check
          %p458 = pneg %p337
        $region62: #{tpu_custom_call.1} parent=11 // pred_check_branch
          %460 = sbr.rel (%p458) target = $region64
        $region63: #{tpu_custom_call.1} parent=11 // pred_region
          _
        $region64: #{tpu_custom_call.1} parent=11 // pred_fallthru
          _
      $region12: #{tpu_custom_call.1} parent=5 // pred_fallthru
        _
      %p461 = scmp.lt.s32.totalorder %s26, 2
      // Predicated region
      $region65: #{tpu_custom_call.1} parent=5 // pred_check
        %p462 = pneg %p461
      $region66: #{tpu_custom_call.1} parent=5 // pred_check_branch
        %464 = sbr.rel (%p462) target = $region68
      $region67: #{tpu_custom_call.1} parent=5 // pred_region
        // Predicated region
        $region69: #{tpu_custom_call.1} parent=67 // pred_check
          %p465 = pneg %p58
        $region70: #{tpu_custom_call.1} parent=67 // pred_check_branch
          %467 = sbr.rel (%p465) target = $region72
        $region71: #{tpu_custom_call.1} parent=67 // pred_region
          %p468 = scmp.lt.s32.totalorder %s33, 1
          %s469 = scalar_select %p468, %s33, 1
          %s470 = smul.addr %s469, 8
          %s471 = scalar_lea.vmem %s0, %s470
        $region72: #{tpu_custom_call.1} parent=67 // pred_fallthru
          _
      $region68: #{tpu_custom_call.1} parent=5 // pred_fallthru
        _
      %p472 = scmp.le.s32.totalorder 1, %s26
      %p473 = scmp.lt.s32.totalorder %s26, 3
      %p474 = pnand %p472, %p473
      %p475 = pneg %p474
      // Predicated region
      $region73: #{tpu_custom_call.1} parent=5 // pred_check
        _
      $region74: #{tpu_custom_call.1} parent=5 // pred_check_branch
        %477 = sbr.rel (%p474) target = $region76
      $region75: #{tpu_custom_call.1} parent=5 // pred_region
        %s478 = ssub.s32 %s26, 1
        // Predicated region
        $region77: #{tpu_custom_call.1} parent=75 // pred_check
          %p479 = pneg %p85
        $region78: #{tpu_custom_call.1} parent=75 // pred_check_branch
          %481 = sbr.rel (%p479) target = $region80
        $region79: #{tpu_custom_call.1} parent=75 // pred_region
          %482 = dma.done [#allocation6], 128
        $region80: #{tpu_custom_call.1} parent=75 // pred_fallthru
          _
        // Predicated region
        $region81: #{tpu_custom_call.1} parent=75 // pred_check
          %p483 = pneg %p190
        $region82: #{tpu_custom_call.1} parent=75 // pred_check_branch
          %485 = sbr.rel (%p483) target = $region84
        $region83: #{tpu_custom_call.1} parent=75 // pred_region
          %486 = dma.done [#allocation9], 16
        $region84: #{tpu_custom_call.1} parent=75 // pred_fallthru
          _
        // Predicated region
        $region85: #{tpu_custom_call.1} parent=75 // pred_check
          %p487 = pneg %p211
        $region86: #{tpu_custom_call.1} parent=75 // pred_check_branch
          %489 = sbr.rel (%p487) target = $region88
        $region87: #{tpu_custom_call.1} parent=75 // pred_region
          %490 = dma.done [#allocation9], 16
        $region88: #{tpu_custom_call.1} parent=75 // pred_fallthru
          _
        // Predicated region
        $region89: #{tpu_custom_call.1} parent=75 // pred_check
          %p491 = pneg %p232
        $region90: #{tpu_custom_call.1} parent=75 // pred_check_branch
          %493 = sbr.rel (%p491) target = $region92
        $region91: #{tpu_custom_call.1} parent=75 // pred_region
          %494 = dma.done [#allocation12], 256
        $region92: #{tpu_custom_call.1} parent=75 // pred_fallthru
          _
        // Predicated region
        $region93: #{tpu_custom_call.1} parent=75 // pred_check
          %p495 = pneg %p253
        $region94: #{tpu_custom_call.1} parent=75 // pred_check_branch
          %497 = sbr.rel (%p495) target = $region96
        $region95: #{tpu_custom_call.1} parent=75 // pred_region
          %498 = dma.done [#allocation12], 16
        $region96: #{tpu_custom_call.1} parent=75 // pred_fallthru
          _
        %p499 = scmp.lt.s32.totalorder %s35, 1
        %s500 = scalar_select %p499, %s35, 1
        %s501 = smul.addr %s500, 8
        %s502 = scalar_lea.vmem %s0, %s501
        %p503 = pneg %p64
        %p504 = pneg %p61
        %p505 = pneg %p85
        %p506 = pneg %p82
        %p507 = pneg %p106
        %p508 = pneg %p103
        %p509 = pneg %p127
        %p510 = pneg %p124
        %p511 = pneg %p148
        %p512 = pneg %p145
        %p513 = pneg %p169
        %p514 = pneg %p166
        %p515 = pneg %p190
        %p516 = pneg %p187
        %p517 = pneg %p211
        %p518 = pneg %p208
        %p519 = pneg %p232
        %p520 = pneg %p229
        %p521 = pneg %p253
        %p522 = pneg %p250
        %p523 = pneg %p274
        %p524 = pneg %p271
        %p525 = pneg %p295
        %p526 = pneg %p292
        %p527 = pneg %p316
        %p528 = pneg %p313
        %p529 = pneg %p337
        %p530 = pneg %p334
        %p531 = pneg %p365
        %p532 = pneg %p362
        %s533 = sand.u32 %s352, 1
        %s534 = scalar_lea.sflag [#allocation7], %s533
        %s535 = sand.u32 %s352, 1
        %s536 = smul.addr %s535, 8
        %s537 = scalar_lea.vmem [#allocation14], %s536
        %p538 = scmp.lt.s32.totalorder %s35, 1
        %s539 = scalar_select %p538, %s35, 1
        %s540 = smul.addr %s539, 8
        %s541 = scalar_lea.vmem %s0, %s540
        %p543 = scmp.eq.s32.totalorder %s36, 0
        // Predicated region
        $region97: #{tpu_custom_call.1} parent=75 // pred_check
          %p544 = pneg %p543
        $region98: #{tpu_custom_call.1} parent=75 // pred_check_branch
          %546 = sbr.rel (%p544) target = $region100
        $region99: #{tpu_custom_call.1} parent=75 // pred_region
          %v547 = vld [vmem:[%s541] sm:$0xff]
          %v548 = vld [vmem:[#allocation5] sm:$0xff]
          %v549 = vadd.f32 %v547, %v548
          %v550 = vpack.c.bf16 %v549, %v549
          %v551 = vld [vmem:[%s2] sm:$0xf]
          %v552 = vld [vmem:[%s2 + $0x4] sm:$0xf]
          %v553 = vld [vmem:[%s2 + $0x8] sm:$0xf]
          %v554 = vld [vmem:[%s2 + $0xc] sm:$0xf]
          %v555 = vld [vmem:[%s3] sm:$0x1]
          %v557 = vlaneseq
          %v558 = vshrl.u32 %v557, 7
          %v559 = vsub.s32 0, %v558
          %v560 = vrot.slane %v555, %v559
          %v566 = vunpack.c.l.b16 %v551
          %v567 = vunpack.c.l.b16 %v552
          %v568 = vunpack.c.l.b16 %v553
          %v569 = vunpack.c.l.b16 %v554
          %v570 = vpack.c.b16 %v567, %v566
          %v571 = vpack.c.b16 %v569, %v568
          %vm574 = vcmask 261120
          %v576 = vsel %vm574, %v550, 0
          %578 = vmatprep.subr.bf16.mxu0 0
          %579 = vmatpush1.bf16.msra.mxu0 0
          %580 = vmatprep.subr.bf16.mxu0 0
          %581 = vmatpush1.bf16.msra.mxu0 0
          %582 = vmatprep.subr.bf16.mxu0 0
          %583 = vmatpush1.bf16.msra.mxu0 0
          %584 = vmatprep.subr.bf16.mxu0 0
          %585 = vmatpush1.bf16.msra.mxu0 0
          %586 = vmatprep.subr.bf16.mxu0 0
          %587 = vmatpush1.bf16.msra.mxu0 0
          %588 = vmatprep.subr.bf16.mxu0 0
          %589 = vmatpush1.bf16.msra.mxu0 0
          %590 = vmatprep.subr.bf16.mxu0 0
          %591 = vmatpush1.bf16.msra.mxu0 %v571
          %592 = vmatprep.subr.bf16.mxu0 0
          %593 = vmatpush1.bf16.msra.mxu0 %v570
          %594 = vmatprep.subr.bf16.mxu0 0
          %595 = vmatpush2.bf16.msra.mxu0 0
          %596 = vmatprep.subr.bf16.mxu0 0
          %597 = vmatpush2.bf16.msra.mxu0 0
          %598 = vmatprep.subr.bf16.mxu0 0
          %599 = vmatpush2.bf16.msra.mxu0 0
          %600 = vmatprep.subr.bf16.mxu0 0
          %601 = vmatpush2.bf16.msra.mxu0 0
          %602 = vmatprep.subr.bf16.mxu0 0
          %603 = vmatpush2.bf16.msra.mxu0 0
          %604 = vmatprep.subr.bf16.mxu0 0
          %605 = vmatpush2.bf16.msra.mxu0 0
          %606 = vmatprep.subr.bf16.mxu0 0
          %607 = vmatpush2.bf16.msra.mxu0 0
          %608 = vmatprep.subr.bf16.mxu0 0
          %609 = vmatpush2.bf16.msra.mxu0 0
          %610 = vmatprep.mubr.bf16.mxu0 0
          %611 = vmatmul.mubr.bf16.gmra.mxu0 %v576
          %v612 = vpop.f32.mrf.mxu0
          %v613 = vadd.f32 %v560, %v612
          %v614 = vpop.f32.mrf.mxu0
          %v615 = vpop.f32.mrf.mxu0
          %v616 = vpop.f32.mrf.mxu0
          %617 = vdwg.mxu0
          %v618 = vpack.c.bf16 %v613, %v613
          %vm619 = vcmask 60416
          %620 = vst.msk [vmem:[#allocation2] sm:$0xf] %vm619, %v618
          %v622 = vunpack.c.l.b16 %v618
          %v623 = vpack.c.b16 %v622, %v622
          %624 = vrot.lane.b32.xlu0 %v623, 96
          %v625 = vpop.permute.xlu0 %624
          %627 = vst.msk [vmem:[#allocation3] sm:$0xf] %vm619, %v625
          %628 = vrot.lane.b32.xlu0 %v623, 64
          %v629 = vpop.permute.xlu0 %628
          %631 = vst.msk [vmem:[#allocation4] sm:$0xf] %vm619, %v629
          %632 = vrot.lane.b32.xlu0 %v623, 120
          %v633 = vpop.permute.xlu0 %632
          %s635 = scalar_lea.vmem [#allocation2], 4
          %636 = vst.msk [vmem:[%s635] sm:$0xf] %vm619, %v633
          %637 = vrot.lane.b32.xlu0 %v623, 88
          %v638 = vpop.permute.xlu0 %637
          %s640 = scalar_lea.vmem [#allocation3], 4
          %641 = vst.msk [vmem:[%s640] sm:$0xf] %vm619, %v638
          %642 = vrot.lane.b32.xlu0 %v623, 56
          %v643 = vpop.permute.xlu0 %642
          %s645 = scalar_lea.vmem [#allocation4], 4
          %646 = vst.msk [vmem:[%s645] sm:$0xf] %vm619, %v643
          %647 = vrot.lane.b32.xlu0 %v623, 112
          %v648 = vpop.permute.xlu0 %647
          %s650 = scalar_lea.vmem [#allocation2], 8
          %651 = vst.msk [vmem:[%s650] sm:$0xf] %vm619, %v648
          %652 = vrot.lane.b32.xlu0 %v623, 80
          %v653 = vpop.permute.xlu0 %652
          %s655 = scalar_lea.vmem [#allocation3], 8
          %656 = vst.msk [vmem:[%s655] sm:$0xf] %vm619, %v653
          %657 = vrot.lane.b32.xlu0 %v623, 48
          %v658 = vpop.permute.xlu0 %657
          %s660 = scalar_lea.vmem [#allocation4], 8
          %661 = vst.msk [vmem:[%s660] sm:$0xf] %vm619, %v658
          %662 = vrot.lane.b32.xlu0 %v623, 104
          %v663 = vpop.permute.xlu0 %662
          %s665 = scalar_lea.vmem [#allocation2], 12
          %666 = vst.msk [vmem:[%s665] sm:$0xf] %vm619, %v663
          %667 = vrot.lane.b32.xlu0 %v623, 72
          %v668 = vpop.permute.xlu0 %667
          %s670 = scalar_lea.vmem [#allocation3], 12
          %671 = vst.msk [vmem:[%s670] sm:$0xf] %vm619, %v668
          %672 = vrot.lane.b32.xlu0 %v623, 40
          %v673 = vpop.permute.xlu0 %672
          %s675 = scalar_lea.vmem [#allocation4], 12
          %676 = vst.msk [vmem:[%s675] sm:$0xf] %vm619, %v673
        $region100: #{tpu_custom_call.1} parent=75 // pred_fallthru
          _
        %v677 = vld [vmem:[%s541] sm:$0xff]
        %v678 = vld [vmem:[#allocation5] sm:$0xff]
        %v679 = vadd.f32 %v677, %v678
        %v680 = vld [vmem:[#allocation2] sm:$0xf]
        %v681 = vld [vmem:[#allocation2 + $0x4] sm:$0xf]
        %v682 = vld [vmem:[#allocation2 + $0x8] sm:$0xf]
        %v683 = vld [vmem:[#allocation2 + $0xc] sm:$0xf]
        %v684 = vld [vmem:[#allocation3] sm:$0xf]
        %v685 = vld [vmem:[#allocation3 + $0x4] sm:$0xf]
        %v686 = vld [vmem:[#allocation3 + $0x8] sm:$0xf]
        %v687 = vld [vmem:[#allocation3 + $0xc] sm:$0xf]
        %vm688 = vcmask 64512
        %v690 = vsel %vm688, %v680, 0
        %v693 = vsel %vm688, %v684, 0
        %695 = vmatprep.subr.bf16.mxu0 0
        %696 = vmatpush1.bf16.xpose.msra.mxu0 0
        %697 = vmatprep.subr.bf16.mxu0 0
        %698 = vmatpush1.bf16.xpose.msra.mxu0 0
        %699 = vmatprep.subr.bf16.mxu0 0
        %700 = vmatpush1.bf16.xpose.msra.mxu0 0
        %701 = vmatprep.subr.bf16.mxu0 0
        %702 = vmatpush1.bf16.xpose.msra.mxu0 0
        %703 = vmatprep.subr.bf16.mxu0 0
        %704 = vmatpush1.bf16.xpose.msra.mxu0 0
        %705 = vmatprep.subr.bf16.mxu0 0
        %706 = vmatpush1.bf16.xpose.msra.mxu0 0
        %707 = vmatprep.subr.bf16.mxu0 0
        %708 = vmatpush1.bf16.xpose.msra.mxu0 0
        %709 = vmatprep.subr.bf16.mxu0 0
        %710 = vmatpush1.bf16.xpose.msra.mxu0 %v693
        %711 = vmatprep.subr.bf16.mxu0 0
        %712 = vmatpush2.bf16.xpose.msra.mxu0 0
        %713 = vmatprep.subr.bf16.mxu0 0
        %714 = vmatpush2.bf16.xpose.msra.mxu0 0
        %715 = vmatprep.subr.bf16.mxu0 0
        %716 = vmatpush2.bf16.xpose.msra.mxu0 0
        %717 = vmatprep.subr.bf16.mxu0 0
        %718 = vmatpush2.bf16.xpose.msra.mxu0 0
        %719 = vmatprep.subr.bf16.mxu0 0
        %720 = vmatpush2.bf16.xpose.msra.mxu0 0
        %721 = vmatprep.subr.bf16.mxu0 0
        %722 = vmatpush2.bf16.xpose.msra.mxu0 0
        %723 = vmatprep.subr.bf16.mxu0 0
        %724 = vmatpush2.bf16.xpose.msra.mxu0 0
        %725 = vmatprep.subr.bf16.mxu0 0
        %726 = vmatpush2.bf16.xpose.msra.mxu0 0
        %727 = vmatprep.mubr.bf16.mxu0 0
        %728 = vmatmul.mubr.bf16.gmra.mxu0 %v690
        %v729 = vpop.f32.mrf.mxu0
        %v730 = vadd.f32 0.0, %v729
        %v731 = vpop.f32.mrf.mxu0
        %v732 = vpop.f32.mrf.mxu0
        %v733 = vpop.f32.mrf.mxu0
        %734 = vdwg.mxu0
        %v736 = vsel %vm688, %v681, 0
        %v739 = vsel %vm688, %v685, 0
        %741 = vmatprep.subr.bf16.mxu0 0
        %742 = vmatpush1.bf16.xpose.msra.mxu0 0
        %743 = vmatprep.subr.bf16.mxu0 0
        %744 = vmatpush1.bf16.xpose.msra.mxu0 0
        %745 = vmatprep.subr.bf16.mxu0 0
        %746 = vmatpush1.bf16.xpose.msra.mxu0 0
        %747 = vmatprep.subr.bf16.mxu0 0
        %748 = vmatpush1.bf16.xpose.msra.mxu0 0
        %749 = vmatprep.subr.bf16.mxu0 0
        %750 = vmatpush1.bf16.xpose.msra.mxu0 0
        %751 = vmatprep.subr.bf16.mxu0 0
        %752 = vmatpush1.bf16.xpose.msra.mxu0 0
        %753 = vmatprep.subr.bf16.mxu0 0
        %754 = vmatpush1.bf16.xpose.msra.mxu0 0
        %755 = vmatprep.subr.bf16.mxu0 0
        %756 = vmatpush1.bf16.xpose.msra.mxu0 %v739
        %757 = vmatprep.subr.bf16.mxu0 0
        %758 = vmatpush2.bf16.xpose.msra.mxu0 0
        %759 = vmatprep.subr.bf16.mxu0 0
        %760 = vmatpush2.bf16.xpose.msra.mxu0 0
        %761 = vmatprep.subr.bf16.mxu0 0
        %762 = vmatpush2.bf16.xpose.msra.mxu0 0
        %763 = vmatprep.subr.bf16.mxu0 0
        %764 = vmatpush2.bf16.xpose.msra.mxu0 0
        %765 = vmatprep.subr.bf16.mxu0 0
        %766 = vmatpush2.bf16.xpose.msra.mxu0 0
        %767 = vmatprep.subr.bf16.mxu0 0
        %768 = vmatpush2.bf16.xpose.msra.mxu0 0
        %769 = vmatprep.subr.bf16.mxu0 0
        %770 = vmatpush2.bf16.xpose.msra.mxu0 0
        %771 = vmatprep.subr.bf16.mxu0 0
        %772 = vmatpush2.bf16.xpose.msra.mxu0 0
        %773 = vmatprep.mubr.bf16.mxu0 0
        %774 = vmatmul.mubr.bf16.gmra.mxu0 %v736
        %v775 = vpop.f32.mrf.mxu0
        %v776 = vadd.f32 0.0, %v775
        %v777 = vpop.f32.mrf.mxu0
        %v778 = vpop.f32.mrf.mxu0
        %v779 = vpop.f32.mrf.mxu0
        %780 = vdwg.mxu0
        %v782 = vsel %vm688, %v682, 0
        %v785 = vsel %vm688, %v686, 0
        %787 = vmatprep.subr.bf16.mxu0 0
        %788 = vmatpush1.bf16.xpose.msra.mxu0 0
        %789 = vmatprep.subr.bf16.mxu0 0
        %790 = vmatpush1.bf16.xpose.msra.mxu0 0
        %791 = vmatprep.subr.bf16.mxu0 0
        %792 = vmatpush1.bf16.xpose.msra.mxu0 0
        %793 = vmatprep.subr.bf16.mxu0 0
        %794 = vmatpush1.bf16.xpose.msra.mxu0 0
        %795 = vmatprep.subr.bf16.mxu0 0
        %796 = vmatpush1.bf16.xpose.msra.mxu0 0
        %797 = vmatprep.subr.bf16.mxu0 0
        %798 = vmatpush1.bf16.xpose.msra.mxu0 0
        %799 = vmatprep.subr.bf16.mxu0 0
        %800 = vmatpush1.bf16.xpose.msra.mxu0 0
        %801 = vmatprep.subr.bf16.mxu0 0
        %802 = vmatpush1.bf16.xpose.msra.mxu0 %v785
        %803 = vmatprep.subr.bf16.mxu0 0
        %804 = vmatpush2.bf16.xpose.msra.mxu0 0
        %805 = vmatprep.subr.bf16.mxu0 0
        %806 = vmatpush2.bf16.xpose.msra.mxu0 0
        %807 = vmatprep.subr.bf16.mxu0 0
        %808 = vmatpush2.bf16.xpose.msra.mxu0 0
        %809 = vmatprep.subr.bf16.mxu0 0
        %810 = vmatpush2.bf16.xpose.msra.mxu0 0
        %811 = vmatprep.subr.bf16.mxu0 0
        %812 = vmatpush2.bf16.xpose.msra.mxu0 0
        %813 = vmatprep.subr.bf16.mxu0 0
        %814 = vmatpush2.bf16.xpose.msra.mxu0 0
        %815 = vmatprep.subr.bf16.mxu0 0
        %816 = vmatpush2.bf16.xpose.msra.mxu0 0
        %817 = vmatprep.subr.bf16.mxu0 0
        %818 = vmatpush2.bf16.xpose.msra.mxu0 0
        %819 = vmatprep.mubr.bf16.mxu0 0
        %820 = vmatmul.mubr.bf16.gmra.mxu0 %v782
        %v821 = vpop.f32.mrf.mxu0
        %v822 = vadd.f32 0.0, %v821
        %v823 = vpop.f32.mrf.mxu0
        %v824 = vpop.f32.mrf.mxu0
        %v825 = vpop.f32.mrf.mxu0
        %826 = vdwg.mxu0
        %v828 = vsel %vm688, %v683, 0
        %v831 = vsel %vm688, %v687, 0
        %833 = vmatprep.subr.bf16.mxu0 0
        %834 = vmatpush1.bf16.xpose.msra.mxu0 0
        %835 = vmatprep.subr.bf16.mxu0 0
        %836 = vmatpush1.bf16.xpose.msra.mxu0 0
        %837 = vmatprep.subr.bf16.mxu0 0
        %838 = vmatpush1.bf16.xpose.msra.mxu0 0
        %839 = vmatprep.subr.bf16.mxu0 0
        %840 = vmatpush1.bf16.xpose.msra.mxu0 0
        %841 = vmatprep.subr.bf16.mxu0 0
        %842 = vmatpush1.bf16.xpose.msra.mxu0 0
        %843 = vmatprep.subr.bf16.mxu0 0
        %844 = vmatpush1.bf16.xpose.msra.mxu0 0
        %845 = vmatprep.subr.bf16.mxu0 0
        %846 = vmatpush1.bf16.xpose.msra.mxu0 0
        %847 = vmatprep.subr.bf16.mxu0 0
        %848 = vmatpush1.bf16.xpose.msra.mxu0 %v831
        %849 = vmatprep.subr.bf16.mxu0 0
        %850 = vmatpush2.bf16.xpose.msra.mxu0 0
        %851 = vmatprep.subr.bf16.mxu0 0
        %852 = vmatpush2.bf16.xpose.msra.mxu0 0
        %853 = vmatprep.subr.bf16.mxu0 0
        %854 = vmatpush2.bf16.xpose.msra.mxu0 0
        %855 = vmatprep.subr.bf16.mxu0 0
        %856 = vmatpush2.bf16.xpose.msra.mxu0 0
        %857 = vmatprep.subr.bf16.mxu0 0
        %858 = vmatpush2.bf16.xpose.msra.mxu0 0
        %859 = vmatprep.subr.bf16.mxu0 0
        %860 = vmatpush2.bf16.xpose.msra.mxu0 0
        %861 = vmatprep.subr.bf16.mxu0 0
        %862 = vmatpush2.bf16.xpose.msra.mxu0 0
        %863 = vmatprep.subr.bf16.mxu0 0
        %864 = vmatpush2.bf16.xpose.msra.mxu0 0
        %865 = vmatprep.mubr.bf16.mxu0 0
        %866 = vmatmul.mubr.bf16.gmra.mxu0 %v828
        %v867 = vpop.f32.mrf.mxu0
        %v868 = vadd.f32 0.0, %v867
        %v869 = vpop.f32.mrf.mxu0
        %v870 = vpop.f32.mrf.mxu0
        %v871 = vpop.f32.mrf.mxu0
        %872 = vdwg.mxu0
        %v873 = vsel %vm688, %v730, -inf
        %874 = vmax.xlane.f32.xlu0 %v873
        %v875 = vpop.xlane.xlu0 %874
        %v876 = vsel %vm688, %v776, -inf
        %877 = vmax.xlane.f32.xlu0 %v876
        %v878 = vpop.xlane.xlu0 %877
        %v879 = vsel %vm688, %v822, -inf
        %880 = vmax.xlane.f32.xlu0 %v879
        %v881 = vpop.xlane.xlu0 %880
        %v882 = vsel %vm688, %v868, -inf
        %883 = vmax.xlane.f32.xlu0 %v882
        %v884 = vpop.xlane.xlu0 %883
        %v885 = vsub.f32 %v730, %v875
        %v886 = vsub.f32 %v776, %v878
        %v887 = vsub.f32 %v822, %v881
        %v888 = vsub.f32 %v868, %v884
        %v889 = vmul.f32 %v885, 1.442695
        %v890 = vpow.pop %v889
        %v891 = vmul.f32 %v886, 1.442695
        %v892 = vpow.pop %v891
        %v893 = vmul.f32 %v887, 1.442695
        %v894 = vpow.pop %v893
        %v895 = vmul.f32 %v888, 1.442695
        %v896 = vpow.pop %v895
        %v897 = vsel %vm688, %v890, 0.0
        %898 = vadd.xlane.f32.xlu0 %v897
        %v899 = vpop.xlane.xlu0 %898
        %v900 = vsel %vm688, %v892, 0.0
        %901 = vadd.xlane.f32.xlu0 %v900
        %v902 = vpop.xlane.xlu0 %901
        %v903 = vsel %vm688, %v894, 0.0
        %904 = vadd.xlane.f32.xlu0 %v903
        %v905 = vpop.xlane.xlu0 %904
        %v906 = vsel %vm688, %v896, 0.0
        %907 = vadd.xlane.f32.xlu0 %v906
        %v908 = vpop.xlane.xlu0 %907
        %v909 = vpack.c.bf16 %v890, %v890
        %v910 = vpack.c.bf16 %v892, %v892
        %v911 = vpack.c.bf16 %v894, %v894
        %v912 = vpack.c.bf16 %v896, %v896
        %v913 = vld [vmem:[#allocation4] sm:$0xf]
        %v914 = vld [vmem:[#allocation4 + $0x4] sm:$0xf]
        %v915 = vld [vmem:[#allocation4 + $0x8] sm:$0xf]
        %v916 = vld [vmem:[#allocation4 + $0xc] sm:$0xf]
        %v918 = vsel %vm688, %v909, 0
        %vm920 = vcmask 1043456
        %v922 = vsel %vm920, %v913, 0
        %924 = vmatprep.subr.bf16.mxu0 0
        %925 = vmatpush1.bf16.msra.mxu0 0
        %926 = vmatprep.subr.bf16.mxu0 0
        %927 = vmatpush1.bf16.msra.mxu0 0
        %928 = vmatprep.subr.bf16.mxu0 0
        %929 = vmatpush1.bf16.msra.mxu0 0
        %930 = vmatprep.subr.bf16.mxu0 0
        %931 = vmatpush1.bf16.msra.mxu0 0
        %932 = vmatprep.subr.bf16.mxu0 0
        %933 = vmatpush1.bf16.msra.mxu0 0
        %934 = vmatprep.subr.bf16.mxu0 0
        %935 = vmatpush1.bf16.msra.mxu0 0
        %936 = vmatprep.subr.bf16.mxu0 0
        %937 = vmatpush1.bf16.msra.mxu0 0
        %938 = vmatprep.subr.bf16.mxu0 0
        %939 = vmatpush1.bf16.msra.mxu0 %v922
        %940 = vmatprep.subr.bf16.mxu0 0
        %941 = vmatpush2.bf16.msra.mxu0 0
        %942 = vmatprep.subr.bf16.mxu0 0
        %943 = vmatpush2.bf16.msra.mxu0 0
        %944 = vmatprep.subr.bf16.mxu0 0
        %945 = vmatpush2.bf16.msra.mxu0 0
        %946 = vmatprep.subr.bf16.mxu0 0
        %947 = vmatpush2.bf16.msra.mxu0 0
        %948 = vmatprep.subr.bf16.mxu0 0
        %949 = vmatpush2.bf16.msra.mxu0 0
        %950 = vmatprep.subr.bf16.mxu0 0
        %951 = vmatpush2.bf16.msra.mxu0 0
        %952 = vmatprep.subr.bf16.mxu0 0
        %953 = vmatpush2.bf16.msra.mxu0 0
        %954 = vmatprep.subr.bf16.mxu0 0
        %955 = vmatpush2.bf16.msra.mxu0 0
        %956 = vmatprep.mubr.bf16.mxu0 0
        %957 = vmatmul.mubr.bf16.gmra.mxu0 %v918
        %v958 = vpop.f32.mrf.mxu0
        %v959 = vadd.f32 0.0, %v958
        %v960 = vpop.f32.mrf.mxu0
        %v961 = vpop.f32.mrf.mxu0
        %v962 = vpop.f32.mrf.mxu0
        %963 = vdwg.mxu0
        %v965 = vsel %vm688, %v910, 0
        %v968 = vsel %vm920, %v914, 0
        %970 = vmatprep.subr.bf16.mxu0 0
        %971 = vmatpush1.bf16.msra.mxu0 0
        %972 = vmatprep.subr.bf16.mxu0 0
        %973 = vmatpush1.bf16.msra.mxu0 0
        %974 = vmatprep.subr.bf16.mxu0 0
        %975 = vmatpush1.bf16.msra.mxu0 0
        %976 = vmatprep.subr.bf16.mxu0 0
        %977 = vmatpush1.bf16.msra.mxu0 0
        %978 = vmatprep.subr.bf16.mxu0 0
        %979 = vmatpush1.bf16.msra.mxu0 0
        %980 = vmatprep.subr.bf16.mxu0 0
        %981 = vmatpush1.bf16.msra.mxu0 0
        %982 = vmatprep.subr.bf16.mxu0 0
        %983 = vmatpush1.bf16.msra.mxu0 0
        %984 = vmatprep.subr.bf16.mxu0 0
        %985 = vmatpush1.bf16.msra.mxu0 %v968
        %986 = vmatprep.subr.bf16.mxu0 0
        %987 = vmatpush2.bf16.msra.mxu0 0
        %988 = vmatprep.subr.bf16.mxu0 0
        %989 = vmatpush2.bf16.msra.mxu0 0
        %990 = vmatprep.subr.bf16.mxu0 0
        %991 = vmatpush2.bf16.msra.mxu0 0
        %992 = vmatprep.subr.bf16.mxu0 0
        %993 = vmatpush2.bf16.msra.mxu0 0
        %994 = vmatprep.subr.bf16.mxu0 0
        %995 = vmatpush2.bf16.msra.mxu0 0
        %996 = vmatprep.subr.bf16.mxu0 0
        %997 = vmatpush2.bf16.msra.mxu0 0
        %998 = vmatprep.subr.bf16.mxu0 0
        %999 = vmatpush2.bf16.msra.mxu0 0
        %1000 = vmatprep.subr.bf16.mxu0 0
        %1001 = vmatpush2.bf16.msra.mxu0 0
        %1002 = vmatprep.mubr.bf16.mxu0 0
        %1003 = vmatmul.mubr.bf16.gmra.mxu0 %v965
        %v1004 = vpop.f32.mrf.mxu0
        %v1005 = vadd.f32 0.0, %v1004
        %v1006 = vpop.f32.mrf.mxu0
        %v1007 = vpop.f32.mrf.mxu0
        %v1008 = vpop.f32.mrf.mxu0
        %1009 = vdwg.mxu0
        %v1011 = vsel %vm688, %v911, 0
        %v1014 = vsel %vm920, %v915, 0
        %1016 = vmatprep.subr.bf16.mxu0 0
        %1017 = vmatpush1.bf16.msra.mxu0 0
        %1018 = vmatprep.subr.bf16.mxu0 0
        %1019 = vmatpush1.bf16.msra.mxu0 0
        %1020 = vmatprep.subr.bf16.mxu0 0
        %1021 = vmatpush1.bf16.msra.mxu0 0
        %1022 = vmatprep.subr.bf16.mxu0 0
        %1023 = vmatpush1.bf16.msra.mxu0 0
        %1024 = vmatprep.subr.bf16.mxu0 0
        %1025 = vmatpush1.bf16.msra.mxu0 0
        %1026 = vmatprep.subr.bf16.mxu0 0
        %1027 = vmatpush1.bf16.msra.mxu0 0
        %1028 = vmatprep.subr.bf16.mxu0 0
        %1029 = vmatpush1.bf16.msra.mxu0 0
        %1030 = vmatprep.subr.bf16.mxu0 0
        %1031 = vmatpush1.bf16.msra.mxu0 %v1014
        %1032 = vmatprep.subr.bf16.mxu0 0
        %1033 = vmatpush2.bf16.msra.mxu0 0
        %1034 = vmatprep.subr.bf16.mxu0 0
        %1035 = vmatpush2.bf16.msra.mxu0 0
        %1036 = vmatprep.subr.bf16.mxu0 0
        %1037 = vmatpush2.bf16.msra.mxu0 0
        %1038 = vmatprep.subr.bf16.mxu0 0
        %1039 = vmatpush2.bf16.msra.mxu0 0
        %1040 = vmatprep.subr.bf16.mxu0 0
        %1041 = vmatpush2.bf16.msra.mxu0 0
        %1042 = vmatprep.subr.bf16.mxu0 0
        %1043 = vmatpush2.bf16.msra.mxu0 0
        %1044 = vmatprep.subr.bf16.mxu0 0
        %1045 = vmatpush2.bf16.msra.mxu0 0
        %1046 = vmatprep.subr.bf16.mxu0 0
        %1047 = vmatpush2.bf16.msra.mxu0 0
        %1048 = vmatprep.mubr.bf16.mxu0 0
        %1049 = vmatmul.mubr.bf16.gmra.mxu0 %v1011
        %v1050 = vpop.f32.mrf.mxu0
        %v1051 = vadd.f32 0.0, %v1050
        %v1052 = vpop.f32.mrf.mxu0
        %v1053 = vpop.f32.mrf.mxu0
        %v1054 = vpop.f32.mrf.mxu0
        %1055 = vdwg.mxu0
        %v1057 = vsel %vm688, %v912, 0
        %v1060 = vsel %vm920, %v916, 0
        %1062 = vmatprep.subr.bf16.mxu0 0
        %1063 = vmatpush1.bf16.msra.mxu0 0
        %1064 = vmatprep.subr.bf16.mxu0 0
        %1065 = vmatpush1.bf16.msra.mxu0 0
        %1066 = vmatprep.subr.bf16.mxu0 0
        %1067 = vmatpush1.bf16.msra.mxu0 0
        %1068 = vmatprep.subr.bf16.mxu0 0
        %1069 = vmatpush1.bf16.msra.mxu0 0
        %1070 = vmatprep.subr.bf16.mxu0 0
        %1071 = vmatpush1.bf16.msra.mxu0 0
        %1072 = vmatprep.subr.bf16.mxu0 0
        %1073 = vmatpush1.bf16.msra.mxu0 0
        %1074 = vmatprep.subr.bf16.mxu0 0
        %1075 = vmatpush1.bf16.msra.mxu0 0
        %1076 = vmatprep.subr.bf16.mxu0 0
        %1077 = vmatpush1.bf16.msra.mxu0 %v1060
        %1078 = vmatprep.subr.bf16.mxu0 0
        %1079 = vmatpush2.bf16.msra.mxu0 0
        %1080 = vmatprep.subr.bf16.mxu0 0
        %1081 = vmatpush2.bf16.msra.mxu0 0
        %1082 = vmatprep.subr.bf16.mxu0 0
        %1083 = vmatpush2.bf16.msra.mxu0 0
        %1084 = vmatprep.subr.bf16.mxu0 0
        %1085 = vmatpush2.bf16.msra.mxu0 0
        %1086 = vmatprep.subr.bf16.mxu0 0
        %1087 = vmatpush2.bf16.msra.mxu0 0
        %1088 = vmatprep.subr.bf16.mxu0 0
        %1089 = vmatpush2.bf16.msra.mxu0 0
        %1090 = vmatprep.subr.bf16.mxu0 0
        %1091 = vmatpush2.bf16.msra.mxu0 0
        %1092 = vmatprep.subr.bf16.mxu0 0
        %1093 = vmatpush2.bf16.msra.mxu0 0
        %1094 = vmatprep.mubr.bf16.mxu0 0
        %1095 = vmatmul.mubr.bf16.gmra.mxu0 %v1057
        %v1096 = vpop.f32.mrf.mxu0
        %v1097 = vadd.f32 0.0, %v1096
        %v1098 = vpop.f32.mrf.mxu0
        %v1099 = vpop.f32.mrf.mxu0
        %v1100 = vpop.f32.mrf.mxu0
        %1101 = vdwg.mxu0
        %v1102 = vrcp.pop %v899
        %v1103 = vrcp.pop %v902
        %v1104 = vrcp.pop %v905
        %v1105 = vrcp.pop %v908
        %v1106 = vmul.f32 %v959, %v1102
        %v1107 = vmul.f32 %v1005, %v1103
        %v1108 = vmul.f32 %v1051, %v1104
        %v1109 = vmul.f32 %v1097, %v1105
        %v1110 = vpack.c.bf16 %v1106, %v1106
        %v1111 = vpack.c.bf16 %v1107, %v1107
        %v1112 = vpack.c.bf16 %v1108, %v1108
        %v1113 = vpack.c.bf16 %v1109, %v1109
        %v1114 = vld [vmem:[%s4] sm:$0xf]
        %v1115 = vld [vmem:[%s4 + $0x4] sm:$0xf]
        %v1116 = vld [vmem:[%s4 + $0x8] sm:$0xf]
        %v1117 = vld [vmem:[%s4 + $0xc] sm:$0xf]
        %v1119 = vsel %vm688, %v1110, 0
        %v1122 = vsel %vm920, %v1114, 0
        %1124 = vmatprep.subr.bf16.mxu0 0
        %1125 = vmatpush1.bf16.msra.mxu0 0
        %1126 = vmatprep.subr.bf16.mxu0 0
        %1127 = vmatpush1.bf16.msra.mxu0 0
        %1128 = vmatprep.subr.bf16.mxu0 0
        %1129 = vmatpush1.bf16.msra.mxu0 0
        %1130 = vmatprep.subr.bf16.mxu0 0
        %1131 = vmatpush1.bf16.msra.mxu0 0
        %1132 = vmatprep.subr.bf16.mxu0 0
        %1133 = vmatpush1.bf16.msra.mxu0 0
        %1134 = vmatprep.subr.bf16.mxu0 0
        %1135 = vmatpush1.bf16.msra.mxu0 0
        %1136 = vmatprep.subr.bf16.mxu0 0
        %1137 = vmatpush1.bf16.msra.mxu0 0
        %1138 = vmatprep.subr.bf16.mxu0 0
        %1139 = vmatpush1.bf16.msra.mxu0 %v1122
        %1140 = vmatprep.subr.bf16.mxu0 0
        %1141 = vmatpush2.bf16.msra.mxu0 0
        %1142 = vmatprep.subr.bf16.mxu0 0
        %1143 = vmatpush2.bf16.msra.mxu0 0
        %1144 = vmatprep.subr.bf16.mxu0 0
        %1145 = vmatpush2.bf16.msra.mxu0 0
        %1146 = vmatprep.subr.bf16.mxu0 0
        %1147 = vmatpush2.bf16.msra.mxu0 0
        %1148 = vmatprep.subr.bf16.mxu0 0
        %1149 = vmatpush2.bf16.msra.mxu0 0
        %1150 = vmatprep.subr.bf16.mxu0 0
        %1151 = vmatpush2.bf16.msra.mxu0 0
        %1152 = vmatprep.subr.bf16.mxu0 0
        %1153 = vmatpush2.bf16.msra.mxu0 0
        %1154 = vmatprep.subr.bf16.mxu0 0
        %1155 = vmatpush2.bf16.msra.mxu0 0
        %1156 = vmatprep.mubr.bf16.mxu0 0
        %1157 = vmatmul.mubr.bf16.gmra.mxu0 %v1119
        %v1158 = vpop.f32.mrf.mxu0
        %v1159 = vadd.f32 0.0, %v1158
        %v1160 = vpop.f32.mrf.mxu0
        %v1161 = vpop.f32.mrf.mxu0
        %v1162 = vpop.f32.mrf.mxu0
        %1163 = vdwg.mxu0
        %v1165 = vsel %vm688, %v1111, 0
        %v1168 = vsel %vm920, %v1115, 0
        %1170 = vmatprep.subr.bf16.mxu0 0
        %1171 = vmatpush1.bf16.msra.mxu0 0
        %1172 = vmatprep.subr.bf16.mxu0 0
        %1173 = vmatpush1.bf16.msra.mxu0 0
        %1174 = vmatprep.subr.bf16.mxu0 0
        %1175 = vmatpush1.bf16.msra.mxu0 0
        %1176 = vmatprep.subr.bf16.mxu0 0
        %1177 = vmatpush1.bf16.msra.mxu0 0
        %1178 = vmatprep.subr.bf16.mxu0 0
        %1179 = vmatpush1.bf16.msra.mxu0 0
        %1180 = vmatprep.subr.bf16.mxu0 0
        %1181 = vmatpush1.bf16.msra.mxu0 0
        %1182 = vmatprep.subr.bf16.mxu0 0
        %1183 = vmatpush1.bf16.msra.mxu0 0
        %1184 = vmatprep.subr.bf16.mxu0 0
        %1185 = vmatpush1.bf16.msra.mxu0 %v1168
        %1186 = vmatprep.subr.bf16.mxu0 0
        %1187 = vmatpush2.bf16.msra.mxu0 0
        %1188 = vmatprep.subr.bf16.mxu0 0
        %1189 = vmatpush2.bf16.msra.mxu0 0
        %1190 = vmatprep.subr.bf16.mxu0 0
        %1191 = vmatpush2.bf16.msra.mxu0 0
        %1192 = vmatprep.subr.bf16.mxu0 0
        %1193 = vmatpush2.bf16.msra.mxu0 0
        %1194 = vmatprep.subr.bf16.mxu0 0
        %1195 = vmatpush2.bf16.msra.mxu0 0
        %1196 = vmatprep.subr.bf16.mxu0 0
        %1197 = vmatpush2.bf16.msra.mxu0 0
        %1198 = vmatprep.subr.bf16.mxu0 0
        %1199 = vmatpush2.bf16.msra.mxu0 0
        %1200 = vmatprep.subr.bf16.mxu0 0
        %1201 = vmatpush2.bf16.msra.mxu0 0
        %1202 = vmatprep.mubr.bf16.mxu0 0
        %1203 = vmatmul.mubr.bf16.gmra.mxu0 %v1165
        %v1204 = vpop.f32.mrf.mxu0
        %v1205 = vadd.f32 0.0, %v1204
        %v1206 = vpop.f32.mrf.mxu0
        %v1207 = vpop.f32.mrf.mxu0
        %v1208 = vpop.f32.mrf.mxu0
        %1209 = vdwg.mxu0
        %v1211 = vsel %vm688, %v1112, 0
        %v1214 = vsel %vm920, %v1116, 0
        %1216 = vmatprep.subr.bf16.mxu0 0
        %1217 = vmatpush1.bf16.msra.mxu0 0
        %1218 = vmatprep.subr.bf16.mxu0 0
        %1219 = vmatpush1.bf16.msra.mxu0 0
        %1220 = vmatprep.subr.bf16.mxu0 0
        %1221 = vmatpush1.bf16.msra.mxu0 0
        %1222 = vmatprep.subr.bf16.mxu0 0
        %1223 = vmatpush1.bf16.msra.mxu0 0
        %1224 = vmatprep.subr.bf16.mxu0 0
        %1225 = vmatpush1.bf16.msra.mxu0 0
        %1226 = vmatprep.subr.bf16.mxu0 0
        %1227 = vmatpush1.bf16.msra.mxu0 0
        %1228 = vmatprep.subr.bf16.mxu0 0
        %1229 = vmatpush1.bf16.msra.mxu0 0
        %1230 = vmatprep.subr.bf16.mxu0 0
        %1231 = vmatpush1.bf16.msra.mxu0 %v1214
        %1232 = vmatprep.subr.bf16.mxu0 0
        %1233 = vmatpush2.bf16.msra.mxu0 0
        %1234 = vmatprep.subr.bf16.mxu0 0
        %1235 = vmatpush2.bf16.msra.mxu0 0
        %1236 = vmatprep.subr.bf16.mxu0 0
        %1237 = vmatpush2.bf16.msra.mxu0 0
        %1238 = vmatprep.subr.bf16.mxu0 0
        %1239 = vmatpush2.bf16.msra.mxu0 0
        %1240 = vmatprep.subr.bf16.mxu0 0
        %1241 = vmatpush2.bf16.msra.mxu0 0
        %1242 = vmatprep.subr.bf16.mxu0 0
        %1243 = vmatpush2.bf16.msra.mxu0 0
        %1244 = vmatprep.subr.bf16.mxu0 0
        %1245 = vmatpush2.bf16.msra.mxu0 0
        %1246 = vmatprep.subr.bf16.mxu0 0
        %1247 = vmatpush2.bf16.msra.mxu0 0
        %1248 = vmatprep.mubr.bf16.mxu0 0
        %1249 = vmatmul.mubr.bf16.gmra.mxu0 %v1211
        %v1250 = vpop.f32.mrf.mxu0
        %v1251 = vadd.f32 0.0, %v1250
        %v1252 = vpop.f32.mrf.mxu0
        %v1253 = vpop.f32.mrf.mxu0
        %v1254 = vpop.f32.mrf.mxu0
        %1255 = vdwg.mxu0
        %v1257 = vsel %vm688, %v1113, 0
        %v1260 = vsel %vm920, %v1117, 0
        %1262 = vmatprep.subr.bf16.mxu0 0
        %1263 = vmatpush1.bf16.msra.mxu0 0
        %1264 = vmatprep.subr.bf16.mxu0 0
        %1265 = vmatpush1.bf16.msra.mxu0 0
        %1266 = vmatprep.subr.bf16.mxu0 0
        %1267 = vmatpush1.bf16.msra.mxu0 0
        %1268 = vmatprep.subr.bf16.mxu0 0
        %1269 = vmatpush1.bf16.msra.mxu0 0
        %1270 = vmatprep.subr.bf16.mxu0 0
        %1271 = vmatpush1.bf16.msra.mxu0 0
        %1272 = vmatprep.subr.bf16.mxu0 0
        %1273 = vmatpush1.bf16.msra.mxu0 0
        %1274 = vmatprep.subr.bf16.mxu0 0
        %1275 = vmatpush1.bf16.msra.mxu0 0
        %1276 = vmatprep.subr.bf16.mxu0 0
        %1277 = vmatpush1.bf16.msra.mxu0 %v1260
        %1278 = vmatprep.subr.bf16.mxu0 0
        %1279 = vmatpush2.bf16.msra.mxu0 0
        %1280 = vmatprep.subr.bf16.mxu0 0
        %1281 = vmatpush2.bf16.msra.mxu0 0
        %1282 = vmatprep.subr.bf16.mxu0 0
        %1283 = vmatpush2.bf16.msra.mxu0 0
        %1284 = vmatprep.subr.bf16.mxu0 0
        %1285 = vmatpush2.bf16.msra.mxu0 0
        %1286 = vmatprep.subr.bf16.mxu0 0
        %1287 = vmatpush2.bf16.msra.mxu0 0
        %1288 = vmatprep.subr.bf16.mxu0 0
        %1289 = vmatpush2.bf16.msra.mxu0 0
        %1290 = vmatprep.subr.bf16.mxu0 0
        %1291 = vmatpush2.bf16.msra.mxu0 0
        %1292 = vmatprep.subr.bf16.mxu0 0
        %1293 = vmatpush2.bf16.msra.mxu0 0
        %1294 = vmatprep.mubr.bf16.mxu0 0
        %1295 = vmatmul.mubr.bf16.gmra.mxu0 %v1257
        %v1296 = vpop.f32.mrf.mxu0
        %v1297 = vadd.f32 0.0, %v1296
        %v1298 = vpop.f32.mrf.mxu0
        %v1299 = vpop.f32.mrf.mxu0
        %v1300 = vpop.f32.mrf.mxu0
        %1301 = vdwg.mxu0
        %vm1302 = vcmask 261120
        %v1303 = vsel %vm1302, %v1159, 0.0
        %v1304 = vsel %vm1302, %v1205, 0.0
        %v1305 = vadd.f32 %v1303, %v1304
        %v1306 = vsel %vm1302, %v1251, 0.0
        %v1307 = vadd.f32 %v1305, %v1306
        %v1308 = vsel %vm1302, %v1297, 0.0
        %v1309 = vadd.f32 %v1307, %v1308
        %v1310 = vld [vmem:[%s5] sm:$0x1]
        %v1312 = vlaneseq
        %v1313 = vshrl.u32 %v1312, 7
        %v1314 = vsub.s32 0, %v1313
        %v1315 = vrot.slane %v1310, %v1314
        %v1317 = vadd.f32 %v1309, %v1315
        %v1318 = vadd.f32 %v679, %v1317
        %v1319 = vsel %vm1302, %v1318, 0.0
        %1320 = vadd.xlane.f32.xlu0 %v1319
        %v1321 = vpop.xlane.xlu0 %1320
        %v1322 = vrcp.pop 32.0
        %v1323 = vmul.f32 %v1321, %v1322
        %v1324 = vsub.f32 %v1318, %v1323
        %v1325 = vmul.f32 %v1324, %v1324
        %v1326 = vsel %vm1302, %v1325, 0.0
        %1327 = vadd.xlane.f32.xlu0 %v1326
        %v1328 = vpop.xlane.xlu0 %1327
        %v1329 = vmul.f32 %v1328, %v1322
        %v1330 = vadd.f32 %v1329, 1e-05
        %v1331 = vrsqrt.pop %v1330
        %v1332 = vmul.f32 %v1324, %v1331
        %v1333 = vld [vmem:[#allocation8] sm:$0x1]
        %v1335 = vlaneseq
        %v1336 = vshrl.u32 %v1335, 7
        %v1337 = vsub.s32 0, %v1336
        %v1338 = vrot.slane %v1333, %v1337
        %v1340 = vmul.f32 %v1332, %v1338
        %v1341 = vld [vmem:[#allocation10] sm:$0x1]
        %v1343 = vlaneseq
        %v1344 = vshrl.u32 %v1343, 7
        %v1345 = vsub.s32 0, %v1344
        %v1346 = vrot.slane %v1341, %v1345
        %v1348 = vadd.f32 %v1340, %v1346
        %v1349 = vpack.c.bf16 %v1348, %v1348
        %v1350 = vld [vmem:[#allocation11] sm:$0xf]
        %v1351 = vld [vmem:[#allocation11 + $0x4] sm:$0xf]
        %v1352 = vld [vmem:[#allocation11 + $0x8] sm:$0xf]
        %v1353 = vld [vmem:[#allocation11 + $0xc] sm:$0xf]
        %v1354 = vld [vmem:[#allocation13] sm:$0x1]
        %v1356 = vlaneseq
        %v1357 = vshrl.u32 %v1356, 7
        %v1358 = vsub.s32 0, %v1357
        %v1359 = vrot.slane %v1354, %v1358
        %v1365 = vunpack.c.l.b16 %v1350
        %v1366 = vunpack.c.l.b16 %v1351
        %v1367 = vunpack.c.l.b16 %v1352
        %v1368 = vunpack.c.l.b16 %v1353
        %v1369 = vpack.c.b16 %v1366, %v1365
        %v1370 = vpack.c.b16 %v1368, %v1367
        %v1374 = vsel %vm1302, %v1349, 0
        %1376 = vmatprep.subr.bf16.mxu0 0
        %1377 = vmatpush1.bf16.msra.mxu0 0
        %1378 = vmatprep.subr.bf16.mxu0 0
        %1379 = vmatpush1.bf16.msra.mxu0 0
        %1380 = vmatprep.subr.bf16.mxu0 0
        %1381 = vmatpush1.bf16.msra.mxu0 0
        %1382 = vmatprep.subr.bf16.mxu0 0
        %1383 = vmatpush1.bf16.msra.mxu0 0
        %1384 = vmatprep.subr.bf16.mxu0 0
        %1385 = vmatpush1.bf16.msra.mxu0 0
        %1386 = vmatprep.subr.bf16.mxu0 0
        %1387 = vmatpush1.bf16.msra.mxu0 0
        %1388 = vmatprep.subr.bf16.mxu0 0
        %1389 = vmatpush1.bf16.msra.mxu0 %v1370
        %1390 = vmatprep.subr.bf16.mxu0 0
        %1391 = vmatpush1.bf16.msra.mxu0 %v1369
        %1392 = vmatprep.subr.bf16.mxu0 0
        %1393 = vmatpush2.bf16.msra.mxu0 0
        %1394 = vmatprep.subr.bf16.mxu0 0
        %1395 = vmatpush2.bf16.msra.mxu0 0
        %1396 = vmatprep.subr.bf16.mxu0 0
        %1397 = vmatpush2.bf16.msra.mxu0 0
        %1398 = vmatprep.subr.bf16.mxu0 0
        %1399 = vmatpush2.bf16.msra.mxu0 0
        %1400 = vmatprep.subr.bf16.mxu0 0
        %1401 = vmatpush2.bf16.msra.mxu0 0
        %1402 = vmatprep.subr.bf16.mxu0 0
        %1403 = vmatpush2.bf16.msra.mxu0 0
        %1404 = vmatprep.subr.bf16.mxu0 0
        %1405 = vmatpush2.bf16.msra.mxu0 0
        %1406 = vmatprep.subr.bf16.mxu0 0
        %1407 = vmatpush2.bf16.msra.mxu0 0
        %1408 = vmatprep.mubr.bf16.mxu0 0
        %1409 = vmatmul.mubr.bf16.gmra.mxu0 %v1374
        %v1410 = vpop.f32.mrf.mxu0
        %v1411 = vadd.f32 %v1359, %v1410
        %v1412 = vpop.f32.mrf.mxu0
        %v1413 = vpop.f32.mrf.mxu0
        %v1414 = vpop.f32.mrf.mxu0
        %1415 = vdwg.mxu0
        %v1416 = vmax.f32 %v1411, 0.0
        %v1417 = vpack.c.bf16 %v1416, %v1416
        %v1418 = vld [vmem:[%s10] sm:$0xf]
        %v1419 = vld [vmem:[%s10 + $0x4] sm:$0xf]
        %v1420 = vld [vmem:[%s10 + $0x8] sm:$0xf]
        %v1421 = vld [vmem:[%s10 + $0xc] sm:$0xf]
        %v1422 = vld [vmem:[%s10 + $0x10] sm:$0xf]
        %v1423 = vld [vmem:[%s10 + $0x14] sm:$0xf]
        %v1424 = vld [vmem:[%s10 + $0x18] sm:$0xf]
        %v1425 = vld [vmem:[%s10 + $0x1c] sm:$0xf]
        %v1426 = vld [vmem:[%s11] sm:$0x1]
        %v1428 = vlaneseq
        %v1429 = vshrl.u32 %v1428, 7
        %v1430 = vsub.s32 0, %v1429
        %v1431 = vrot.slane %v1426, %v1430
        %v1441 = vunpack.c.l.b16 %v1418
        %v1442 = vunpack.c.l.b16 %v1419
        %v1443 = vunpack.c.l.b16 %v1420
        %v1444 = vunpack.c.l.b16 %v1421
        %v1445 = vunpack.c.l.b16 %v1422
        %v1446 = vunpack.c.l.b16 %v1423
        %v1447 = vunpack.c.l.b16 %v1424
        %v1448 = vunpack.c.l.b16 %v1425
        %v1449 = vpack.c.b16 %v1442, %v1441
        %v1450 = vpack.c.b16 %v1444, %v1443
        %v1451 = vpack.c.b16 %v1446, %v1445
        %v1452 = vpack.c.b16 %v1448, %v1447
        %vm1457 = vcmask 523264
        %v1459 = vsel %vm1457, %v1417, 0
        %1461 = vmatprep.subr.bf16.mxu0 0
        %1462 = vmatpush1.bf16.msra.mxu0 0
        %1463 = vmatprep.subr.bf16.mxu0 0
        %1464 = vmatpush1.bf16.msra.mxu0 0
        %1465 = vmatprep.subr.bf16.mxu0 0
        %1466 = vmatpush1.bf16.msra.mxu0 0
        %1467 = vmatprep.subr.bf16.mxu0 0
        %1468 = vmatpush1.bf16.msra.mxu0 0
        %1469 = vmatprep.subr.bf16.mxu0 0
        %1470 = vmatpush1.bf16.msra.mxu0 %v1452
        %1471 = vmatprep.subr.bf16.mxu0 0
        %1472 = vmatpush1.bf16.msra.mxu0 %v1451
        %1473 = vmatprep.subr.bf16.mxu0 0
        %1474 = vmatpush1.bf16.msra.mxu0 %v1450
        %1475 = vmatprep.subr.bf16.mxu0 0
        %1476 = vmatpush1.bf16.msra.mxu0 %v1449
        %1477 = vmatprep.subr.bf16.mxu0 0
        %1478 = vmatpush2.bf16.msra.mxu0 0
        %1479 = vmatprep.subr.bf16.mxu0 0
        %1480 = vmatpush2.bf16.msra.mxu0 0
        %1481 = vmatprep.subr.bf16.mxu0 0
        %1482 = vmatpush2.bf16.msra.mxu0 0
        %1483 = vmatprep.subr.bf16.mxu0 0
        %1484 = vmatpush2.bf16.msra.mxu0 0
        %1485 = vmatprep.subr.bf16.mxu0 0
        %1486 = vmatpush2.bf16.msra.mxu0 0
        %1487 = vmatprep.subr.bf16.mxu0 0
        %1488 = vmatpush2.bf16.msra.mxu0 0
        %1489 = vmatprep.subr.bf16.mxu0 0
        %1490 = vmatpush2.bf16.msra.mxu0 0
        %1491 = vmatprep.subr.bf16.mxu0 0
        %1492 = vmatpush2.bf16.msra.mxu0 0
        %1493 = vmatprep.mubr.bf16.mxu0 0
        %1494 = vmatmul.mubr.bf16.gmra.mxu0 %v1459
        %v1495 = vpop.f32.mrf.mxu0
        %v1496 = vadd.f32 %v1431, %v1495
        %v1497 = vpop.f32.mrf.mxu0
        %v1498 = vpop.f32.mrf.mxu0
        %v1499 = vpop.f32.mrf.mxu0
        %1500 = vdwg.mxu0
        %v1501 = vadd.f32 %v1348, %v1496
        %v1502 = vsel %vm1302, %v1501, 0.0
        %1503 = vadd.xlane.f32.xlu0 %v1502
        %v1504 = vpop.xlane.xlu0 %1503
        %v1505 = vmul.f32 %v1504, %v1322
        %v1506 = vsub.f32 %v1501, %v1505
        %v1507 = vmul.f32 %v1506, %v1506
        %v1508 = vsel %vm1302, %v1507, 0.0
        %1509 = vadd.xlane.f32.xlu0 %v1508
        %v1510 = vpop.xlane.xlu0 %1509
        %v1511 = vmul.f32 %v1510, %v1322
        %v1512 = vadd.f32 %v1511, 1e-05
        %v1513 = vrsqrt.pop %v1512
        %v1514 = vmul.f32 %v1506, %v1513
        %v1515 = vld [vmem:[%s12] sm:$0x1]
        %v1517 = vlaneseq
        %v1518 = vshrl.u32 %v1517, 7
        %v1519 = vsub.s32 0, %v1518
        %v1520 = vrot.slane %v1515, %v1519
        %v1522 = vmul.f32 %v1514, %v1520
        %v1523 = vld [vmem:[%s13] sm:$0x1]
        %v1525 = vlaneseq
        %v1526 = vshrl.u32 %v1525, 7
        %v1527 = vsub.s32 0, %v1526
        %v1528 = vrot.slane %v1523, %v1527
        %v1530 = vadd.f32 %v1522, %v1528
        %1531 = vst.msk [vmem:[%s537] sm:$0xff] %vm1302, %v1530
        %s1532 = sand.u32 %s352, 1
        %s1533 = scalar_lea.sflag [#allocation7], %s1532
        %s1534 = sand.u32 %s352, 1
        %s1535 = smul.addr %s1534, 8
        %s1536 = scalar_lea.vmem [#allocation14], %s1535
        // Predicated region
        $region101: #{tpu_custom_call.1} parent=75 // pred_check
          %p1537 = pneg %p362
        $region102: #{tpu_custom_call.1} parent=75 // pred_check_branch
          %1539 = sbr.rel (%p1537) target = $region104
        $region103: #{tpu_custom_call.1} parent=75 // pred_region
          %s1541 = ssub.s32 128, 128
          %1542 = vsyncadd %s1533, %s1541
          %s1543 = sadd.s32 %s36, %s35
          %s1544 = smul.addr %s1543, 128
          %s1545 = scalar_lea.hbm %s14, %s1544
          %s1547 = sshll.u32 %s1536, 4
          %s1548 = int_to_ptr.vmem [resolvable:$true] %s1547
          %1550 = dma.vmem_to_hbm [thread:$0]  %s1548, 128, %s1545, %s1533
        $region104: #{tpu_custom_call.1} parent=75 // pred_fallthru
          _
      $region76: #{tpu_custom_call.1} parent=5 // pred_fallthru
        _
      %p1551 = scmp.le.s32.totalorder 2, %s26
      // Predicated region
      $region105: #{tpu_custom_call.1} parent=5 // pred_check
        %p1552 = pneg %p1551
      $region106: #{tpu_custom_call.1} parent=5 // pred_check_branch
        %1554 = sbr.rel (%p1552) target = $region108
      $region107: #{tpu_custom_call.1} parent=5 // pred_region
        %s1555 = ssub.s32 %s26, 2
        // Predicated region
        $region109: #{tpu_custom_call.1} parent=107 // pred_check
          %p1556 = pneg %p368
        $region110: #{tpu_custom_call.1} parent=107 // pred_check_branch
          %1558 = sbr.rel (%p1556) target = $region112
        $region111: #{tpu_custom_call.1} parent=107 // pred_region
          %s1559 = sand.u32 %s353, 1
          %s1560 = scalar_lea.sflag [#allocation7], %s1559
          %s1561 = sand.u32 %s353, 1
          %s1562 = smul.addr %s1561, 8
          %s1563 = scalar_lea.vmem [#allocation14], %s1562
          %1564 = dma.done %s1560, 128
        $region112: #{tpu_custom_call.1} parent=107 // pred_fallthru
          _
      $region108: #{tpu_custom_call.1} parent=5 // pred_fallthru
        _
    $region6: #{tpu_custom_call.1} parent=1 // loop_footer
      %s30 = sadd.s32 1, %s26
    $region7: #{tpu_custom_call.1} parent=1 // loop_footer_branch
      %25 = sbr.rel target = $region3
    $region8: #{tpu_custom_call.1} parent=1 // loop_exit
      _
    %1565 = vsyncpa [#allocation6], 1
    %s1566 = scalar_lea.sflag [#allocation6], 1
    %1567 = vsyncpa %s1566, 1
    %1568 = vsyncpa [#allocation9], 1
    %1569 = vsyncpa [#allocation12], 1
    %1570 = vsyncpa [#allocation7], 1
    %s1571 = scalar_lea.sflag [#allocation7], 1
    %1572 = vsyncpa %s1571, 1

// kernel: tpu_custom_call.1
$region0: #{tpu_custom_call.1}
  #allocation0 [shape = 'u32[]', space=smem, size = 0x4, offset = 0x4, fixed_abs, tag = 'smem constant byte address 0x4 - core index']
  #allocation1 [shape = 'u32[144,128]{1,0:T(1,128)}', space=vmem, size = 0x12000, scoped, tag = 'internal scratch']
  #allocation2 [shape = 'bf16[4,8,8]{2,1,0:T(8,128)(2,1)}', space=vmem, size = 0x2000, scoped, tag = 'scratch operand']
  #allocation3 [shape = 'bf16[4,8,8]{2,1,0:T(8,128)(2,1)}', space=vmem, size = 0x2000, scoped, tag = 'scratch operand']
  #allocation4 [shape = 'bf16[4,8,8]{2,1,0:T(8,128)(2,1)}', space=vmem, size = 0x2000, scoped, tag = 'scratch operand']
  %s0 = inlined_call_operand.vmem [shape: f32[2,8,32], index: 0, kind: input, shape index: {}]
  %s1 = inlined_call_operand.hbm [shape: f32[8,32], index: 1, kind: input, shape index: {}]
  %s2 = inlined_call_operand.vmem [shape: bf16[32,96], index: 2, kind: input, shape index: {}]
  %s3 = inlined_call_operand.vmem [shape: f32[1,96], index: 3, kind: input, shape index: {}]
  %s4 = inlined_call_operand.vmem [shape: bf16[4,8,32], index: 4, kind: input, shape index: {}]
  %s5 = inlined_call_operand.vmem [shape: f32[1,32], index: 5, kind: input, shape index: {}]
  %s6 = inlined_call_operand.hbm [shape: f32[1,32], index: 6, kind: input, shape index: {}]
  %s7 = inlined_call_operand.hbm [shape: f32[1,32], index: 7, kind: input, shape index: {}]
  %s8 = inlined_call_operand.hbm [shape: bf16[32,64], index: 8, kind: input, shape index: {}]
  %s9 = inlined_call_operand.hbm [shape: f32[1,64], index: 9, kind: input, shape index: {}]
  %s10 = inlined_call_operand.vmem [shape: bf16[64,32], index: 10, kind: input, shape index: {}]
  %s11 = inlined_call_operand.vmem [shape: f32[1,32], index: 11, kind: input, shape index: {}]
  %s12 = inlined_call_operand.vmem [shape: f32[1,32], index: 12, kind: input, shape index: {}]
  %s13 = inlined_call_operand.vmem [shape: f32[1,32], index: 13, kind: input, shape index: {}]
  %s14 = inlined_call_operand.hbm [shape: f32[2,8,32], index: 14, kind: output, shape index: {}]
  %s15 = sld [smem:[#allocation0]]
  $region113: #{tpu_custom_call.1} parent=0
    _
  %s17 = ssub.s32 1, %s15
  %s18 = scalar_select 0, %s17, %s15
  $region1: #{tpu_custom_call.1} parent=0
    #allocation5 [shape = 'u8[4096]{0}', space=vmem, size = 0x1000, scoped, tag = 'input window, operand 1, single buffered']
    #allocation6 [shape = 's32[2]{0}', space=sflag, size = 0x8, scoped, tag = 'scoped memory for tpu_custom_call.1']
    #allocation7 [shape = 's32[2]{0}', space=sflag, size = 0x8, scoped, tag = 'scoped memory for tpu_custom_call.1']
    #allocation8 [shape = 'u8[512]{0}', space=vmem, size = 0x400, scoped, tag = 'input window, operand 6, single buffered']
    #allocation9 [shape = 's32[1]{0}', space=sflag, size = 0x4, scoped, tag = 'scoped memory for tpu_custom_call.1']
    #allocation10 [shape = 'u8[512]{0}', space=vmem, size = 0x400, scoped, tag = 'input window, operand 7, single buffered']
    #allocation11 [shape = 'u8[8192]{0}', space=vmem, size = 0x2000, scoped, tag = 'input window, operand 8, single buffered']
    #allocation12 [shape = 's32[1]{0}', space=sflag, size = 0x4, scoped, tag = 'scoped memory for tpu_custom_call.1']
    #allocation13 [shape = 'u8[512]{0}', space=vmem, size = 0x400, scoped, tag = 'input window, operand 9, single buffered']
    #allocation14 [shape = 'u8[8192]{0}', space=vmem, size = 0x2000, scoped, tag = 'output window, operand 0']
    %19 = vsyncpa [#allocation6], 0
    %20 = vsyncpa [#allocation9], 0
    %21 = vsyncpa [#allocation12], 0
    %22 = vsyncpa [#allocation7], 0
    %s23 = scalar_lea.sflag [#allocation7], 1
    %24 = vsyncpa %s23, 0
    loop: start=0, step=1, limit=4
    $region2: #{tpu_custom_call.1} parent=1 // loop_pre_header
      _
    $region3: #{tpu_custom_call.1} parent=1 // loop_header
      %s26 = sphi 0, %s30
      %p27 = scmp.ge.s32.totalorder %s26, 4
      %s33 = sphi 0, %s45
      %s34 = sphi 0, %s41
      %s35 = sphi 0, %s33
      %s36 = sphi 0, %s34
      %s37 = sphi 0, %s35
      %s38 = sphi 0, %s36
      %s48 = sphi 0, %s50
      %s51 = sphi 0, %s48
      %s52 = sphi 0, %s51
      %s68 = sphi 0, %s52
      %s72 = sphi 0, %s72
      %s74 = sphi 0, %s72
      %s75 = sphi 0, %s74
      %s89 = sphi 0, %s75
      %s93 = sphi 0, %s93
      %s95 = sphi 0, %s93
      %s96 = sphi 0, %s95
      %s110 = sphi 0, %s96
      %s114 = sphi 0, %s114
      %s116 = sphi 0, %s114
      %s117 = sphi 0, %s116
      %s131 = sphi 0, %s117
      %s135 = sphi 0, %s135
      %s137 = sphi 0, %s135
      %s138 = sphi 0, %s137
      %s152 = sphi 0, %s138
      %s156 = sphi 0, %s156
      %s158 = sphi 0, %s156
      %s159 = sphi 0, %s158
      %s173 = sphi 0, %s159
      %s177 = sphi 0, %s177
      %s179 = sphi 0, %s177
      %s180 = sphi 0, %s179
      %s194 = sphi 0, %s180
      %s198 = sphi 0, %s198
      %s200 = sphi 0, %s198
      %s201 = sphi 0, %s200
      %s215 = sphi 0, %s201
      %s219 = sphi 0, %s219
      %s221 = sphi 0, %s219
      %s222 = sphi 0, %s221
      %s236 = sphi 0, %s222
      %s240 = sphi 0, %s240
      %s242 = sphi 0, %s240
      %s243 = sphi 0, %s242
      %s257 = sphi 0, %s243
      %s261 = sphi 0, %s261
      %s263 = sphi 0, %s261
      %s264 = sphi 0, %s263
      %s278 = sphi 0, %s264
      %s282 = sphi 0, %s282
      %s284 = sphi 0, %s282
      %s285 = sphi 0, %s284
      %s299 = sphi 0, %s285
      %s303 = sphi 0, %s303
      %s305 = sphi 0, %s303
      %s306 = sphi 0, %s305
      %s320 = sphi 0, %s306
      %s324 = sphi 0, %s324
      %s326 = sphi 0, %s324
      %s327 = sphi 0, %s326
      %s341 = sphi 0, %s327
      %s349 = sphi 0, %s351
      %s352 = sphi 0, %s349
      %s353 = sphi 0, %s352
      %s369 = sphi 0, %s353
    $region4: #{tpu_custom_call.1} parent=1 // loop_header_branch
      %29 = sbr.rel (%p27) target = $region8
    $region5: #{tpu_custom_call.1} parent=1 // loop_body
      %s31 = ssub.s32 %s26, 1
      %s32 = ssub.s32 %s26, 2
      %s39 = sadd.s32 1, %s34
      %p40 = scmp.ge.s32.totalorder %s39, 1
      %s41 = scalar_select %p40, 0, %s39
      %s42 = sadd.s32 1, %s33
      %s43 = scalar_select %p40, %s42, %s33
      %p44 = scmp.ge.s32.totalorder %s43, 2
      %s45 = scalar_select %p44, 0, %s43
      %s46 = ssub.s32 %s33, %s45
      %p47 = scmp.eq.s32.totalorder %s46, 0
      %s49 = sadd.s32 %s48, 1
      %s50 = scalar_select %p47, %s48, %s49
      %p53 = pneg %p47
      %p54 = scmp.eq.s32.totalorder %s26, 1
      %p55 = por %p53, %p54
      %p56 = scmp.ne.s32.totalorder %s48, %s51
      %p57 = scmp.eq.s32.totalorder %s26, 0
      %p58 = por %p56, %p57
      %p59 = scmp.ne.s32.totalorder %s48, %s51
      %p60 = scmp.eq.s32.totalorder %s31, 1
      %p61 = por %p59, %p60
      %p62 = scmp.ne.s32.totalorder %s51, %s52
      %p63 = scmp.eq.s32.totalorder %s31, 0
      %p64 = por %p62, %p63
      %p65 = scmp.ne.s32.totalorder %s51, %s52
      %p66 = scmp.eq.s32.totalorder %s32, 1
      %p67 = por %p65, %p66
      %p69 = scmp.ne.s32.totalorder %s52, %s68
      %p70 = scmp.eq.s32.totalorder %s32, 0
      %p71 = por %p69, %p70
      %s73 = sadd.s32 %s72, 1
      %p76 = scmp.eq.s32.totalorder %s26, 1
      %p77 = scmp.ne.s32.totalorder %s72, %s74
      %p78 = scmp.eq.s32.totalorder %s26, 0
      %p79 = por %p77, %p78
      %p80 = scmp.ne.s32.totalorder %s72, %s74
      %p81 = scmp.eq.s32.totalorder %s31, 1
      %p82 = por %p80, %p81
      %p83 = scmp.ne.s32.totalorder %s74, %s75
      %p84 = scmp.eq.s32.totalorder %s31, 0
      %p85 = por %p83, %p84
      %p86 = scmp.ne.s32.totalorder %s74, %s75
      %p87 = scmp.eq.s32.totalorder %s32, 1
      %p88 = por %p86, %p87
      %p90 = scmp.ne.s32.totalorder %s75, %s89
      %p91 = scmp.eq.s32.totalorder %s32, 0
      %p92 = por %p90, %p91
      %s94 = sadd.s32 %s93, 1
      %p97 = scmp.eq.s32.totalorder %s26, 1
      %p98 = scmp.ne.s32.totalorder %s93, %s95
      %p99 = scmp.eq.s32.totalorder %s26, 0
      %p100 = por %p98, %p99
      %p101 = scmp.ne.s32.totalorder %s93, %s95
      %p102 = scmp.eq.s32.totalorder %s31, 1
      %p103 = por %p101, %p102
      %p104 = scmp.ne.s32.totalorder %s95, %s96
      %p105 = scmp.eq.s32.totalorder %s31, 0
      %p106 = por %p104, %p105
      %p107 = scmp.ne.s32.totalorder %s95, %s96
      %p108 = scmp.eq.s32.totalorder %s32, 1
      %p109 = por %p107, %p108
      %p111 = scmp.ne.s32.totalorder %s96, %s110
      %p112 = scmp.eq.s32.totalorder %s32, 0
      %p113 = por %p111, %p112
      %s115 = sadd.s32 %s114, 1
      %p118 = scmp.eq.s32.totalorder %s26, 1
      %p119 = scmp.ne.s32.totalorder %s114, %s116
      %p120 = scmp.eq.s32.totalorder %s26, 0
      %p121 = por %p119, %p120
      %p122 = scmp.ne.s32.totalorder %s114, %s116
      %p123 = scmp.eq.s32.totalorder %s31, 1
      %p124 = por %p122, %p123
      %p125 = scmp.ne.s32.totalorder %s116, %s117
      %p126 = scmp.eq.s32.totalorder %s31, 0
      %p127 = por %p125, %p126
      %p128 = scmp.ne.s32.totalorder %s116, %s117
      %p129 = scmp.eq.s32.totalorder %s32, 1
      %p130 = por %p128, %p129
      %p132 = scmp.ne.s32.totalorder %s117, %s131
      %p133 = scmp.eq.s32.totalorder %s32, 0
      %p134 = por %p132, %p133
      %s136 = sadd.s32 %s135, 1
      %p139 = scmp.eq.s32.totalorder %s26, 1
      %p140 = scmp.ne.s32.totalorder %s135, %s137
      %p141 = scmp.eq.s32.totalorder %s26, 0
      %p142 = por %p140, %p141
      %p143 = scmp.ne.s32.totalorder %s135, %s137
      %p144 = scmp.eq.s32.totalorder %s31, 1
      %p145 = por %p143, %p144
      %p146 = scmp.ne.s32.totalorder %s137, %s138
      %p147 = scmp.eq.s32.totalorder %s31, 0
      %p148 = por %p146, %p147
      %p149 = scmp.ne.s32.totalorder %s137, %s138
      %p150 = scmp.eq.s32.totalorder %s32, 1
      %p151 = por %p149, %p150
      %p153 = scmp.ne.s32.totalorder %s138, %s152
      %p154 = scmp.eq.s32.totalorder %s32, 0
      %p155 = por %p153, %p154
      %s157 = sadd.s32 %s156, 1
      %p160 = scmp.eq.s32.totalorder %s26, 1
      %p161 = scmp.ne.s32.totalorder %s156, %s158
      %p162 = scmp.eq.s32.totalorder %s26, 0
      %p163 = por %p161, %p162
      %p164 = scmp.ne.s32.totalorder %s156, %s158
      %p165 = scmp.eq.s32.totalorder %s31, 1
      %p166 = por %p164, %p165
      %p167 = scmp.ne.s32.totalorder %s158, %s159
      %p168 = scmp.eq.s32.totalorder %s31, 0
      %p169 = por %p167, %p168
      %p170 = scmp.ne.s32.totalorder %s158, %s159
      %p171 = scmp.eq.s32.totalorder %s32, 1
      %p172 = por %p170, %p171
      %p174 = scmp.ne.s32.totalorder %s159, %s173
      %p175 = scmp.eq.s32.totalorder %s32, 0
      %p176 = por %p174, %p175
      %s178 = sadd.s32 %s177, 1
      %p181 = scmp.eq.s32.totalorder %s26, 1
      %p182 = scmp.ne.s32.totalorder %s177, %s179
      %p183 = scmp.eq.s32.totalorder %s26, 0
      %p184 = por %p182, %p183
      %p185 = scmp.ne.s32.totalorder %s177, %s179
      %p186 = scmp.eq.s32.totalorder %s31, 1
      %p187 = por %p185, %p186
      %p188 = scmp.ne.s32.totalorder %s179, %s180
      %p189 = scmp.eq.s32.totalorder %s31, 0
      %p190 = por %p188, %p189
      %p191 = scmp.ne.s32.totalorder %s179, %s180
      %p192 = scmp.eq.s32.totalorder %s32, 1
      %p193 = por %p191, %p192
      %p195 = scmp.ne.s32.totalorder %s180, %s194
      %p196 = scmp.eq.s32.totalorder %s32, 0
      %p197 = por %p195, %p196
      %s199 = sadd.s32 %s198, 1
      %p202 = scmp.eq.s32.totalorder %s26, 1
      %p203 = scmp.ne.s32.totalorder %s198, %s200
      %p204 = scmp.eq.s32.totalorder %s26, 0
      %p205 = por %p203, %p204
      %p206 = scmp.ne.s32.totalorder %s198, %s200
      %p207 = scmp.eq.s32.totalorder %s31, 1
      %p208 = por %p206, %p207
      %p209 = scmp.ne.s32.totalorder %s200, %s201
      %p210 = scmp.eq.s32.totalorder %s31, 0
      %p211 = por %p209, %p210
      %p212 = scmp.ne.s32.totalorder %s200, %s201
      %p213 = scmp.eq.s32.totalorder %s32, 1
      %p214 = por %p212, %p213
      %p216 = scmp.ne.s32.totalorder %s201, %s215
      %p217 = scmp.eq.s32.totalorder %s32, 0
      %p218 = por %p216, %p217
      %s220 = sadd.s32 %s219, 1
      %p223 = scmp.eq.s32.totalorder %s26, 1
      %p224 = scmp.ne.s32.totalorder %s219, %s221
      %p225 = scmp.eq.s32.totalorder %s26, 0
      %p226 = por %p224, %p225
      %p227 = scmp.ne.s32.totalorder %s219, %s221
      %p228 = scmp.eq.s32.totalorder %s31, 1
      %p229 = por %p227, %p228
      %p230 = scmp.ne.s32.totalorder %s221, %s222
      %p231 = scmp.eq.s32.totalorder %s31, 0
      %p232 = por %p230, %p231
      %p233 = scmp.ne.s32.totalorder %s221, %s222
      %p234 = scmp.eq.s32.totalorder %s32, 1
      %p235 = por %p233, %p234
      %p237 = scmp.ne.s32.totalorder %s222, %s236
      %p238 = scmp.eq.s32.totalorder %s32, 0
      %p239 = por %p237, %p238
      %s241 = sadd.s32 %s240, 1
      %p244 = scmp.eq.s32.totalorder %s26, 1
      %p245 = scmp.ne.s32.totalorder %s240, %s242
      %p246 = scmp.eq.s32.totalorder %s26, 0
      %p247 = por %p245, %p246
      %p248 = scmp.ne.s32.totalorder %s240, %s242
      %p249 = scmp.eq.s32.totalorder %s31, 1
      %p250 = por %p248, %p249
      %p251 = scmp.ne.s32.totalorder %s242, %s243
      %p252 = scmp.eq.s32.totalorder %s31, 0
      %p253 = por %p251, %p252
      %p254 = scmp.ne.s32.totalorder %s242, %s243
      %p255 = scmp.eq.s32.totalorder %s32, 1
      %p256 = por %p254, %p255
      %p258 = scmp.ne.s32.totalorder %s243, %s257
      %p259 = scmp.eq.s32.totalorder %s32, 0
      %p260 = por %p258, %p259
      %s262 = sadd.s32 %s261, 1
      %p265 = scmp.eq.s32.totalorder %s26, 1
      %p266 = scmp.ne.s32.totalorder %s261, %s263
      %p267 = scmp.eq.s32.totalorder %s26, 0
      %p268 = por %p266, %p267
      %p269 = scmp.ne.s32.totalorder %s261, %s263
      %p270 = scmp.eq.s32.totalorder %s31, 1
      %p271 = por %p269, %p270
      %p272 = scmp.ne.s32.totalorder %s263, %s264
      %p273 = scmp.eq.s32.totalorder %s31, 0
      %p274 = por %p272, %p273
      %p275 = scmp.ne.s32.totalorder %s263, %s264
      %p276 = scmp.eq.s32.totalorder %s32, 1
      %p277 = por %p275, %p276
      %p279 = scmp.ne.s32.totalorder %s264, %s278
      %p280 = scmp.eq.s32.totalorder %s32, 0
      %p281 = por %p279, %p280
      %s283 = sadd.s32 %s282, 1
      %p286 = scmp.eq.s32.totalorder %s26, 1
      %p287 = scmp.ne.s32.totalorder %s282, %s284
      %p288 = scmp.eq.s32.totalorder %s26, 0
      %p289 = por %p287, %p288
      %p290 = scmp.ne.s32.totalorder %s282, %s284
      %p291 = scmp.eq.s32.totalorder %s31, 1
      %p292 = por %p290, %p291
      %p293 = scmp.ne.s32.totalorder %s284, %s285
      %p294 = scmp.eq.s32.totalorder %s31, 0
      %p295 = por %p293, %p294
      %p296 = scmp.ne.s32.totalorder %s284, %s285
      %p297 = scmp.eq.s32.totalorder %s32, 1
      %p298 = por %p296, %p297
      %p300 = scmp.ne.s32.totalorder %s285, %s299
      %p301 = scmp.eq.s32.totalorder %s32, 0
      %p302 = por %p300, %p301
      %s304 = sadd.s32 %s303, 1
      %p307 = scmp.eq.s32.totalorder %s26, 1
      %p308 = scmp.ne.s32.totalorder %s303, %s305
      %p309 = scmp.eq.s32.totalorder %s26, 0
      %p310 = por %p308, %p309
      %p311 = scmp.ne.s32.totalorder %s303, %s305
      %p312 = scmp.eq.s32.totalorder %s31, 1
      %p313 = por %p311, %p312
      %p314 = scmp.ne.s32.totalorder %s305, %s306
      %p315 = scmp.eq.s32.totalorder %s31, 0
      %p316 = por %p314, %p315
      %p317 = scmp.ne.s32.totalorder %s305, %s306
      %p318 = scmp.eq.s32.totalorder %s32, 1
      %p319 = por %p317, %p318
      %p321 = scmp.ne.s32.totalorder %s306, %s320
      %p322 = scmp.eq.s32.totalorder %s32, 0
      %p323 = por %p321, %p322
      %s325 = sadd.s32 %s324, 1
      %p328 = scmp.eq.s32.totalorder %s26, 1
      %p329 = scmp.ne.s32.totalorder %s324, %s326
      %p330 = scmp.eq.s32.totalorder %s26, 0
      %p331 = por %p329, %p330
      %p332 = scmp.ne.s32.totalorder %s324, %s326
      %p333 = scmp.eq.s32.totalorder %s31, 1
      %p334 = por %p332, %p333
      %p335 = scmp.ne.s32.totalorder %s326, %s327
      %p336 = scmp.eq.s32.totalorder %s31, 0
      %p337 = por %p335, %p336
      %p338 = scmp.ne.s32.totalorder %s326, %s327
      %p339 = scmp.eq.s32.totalorder %s32, 1
      %p340 = por %p338, %p339
      %p342 = scmp.ne.s32.totalorder %s327, %s341
      %p343 = scmp.eq.s32.totalorder %s32, 0
      %p344 = por %p342, %p343
      %s345 = ssub.s32 %s33, %s45
      %s346 = ssub.s32 %s34, %s41
      %s347 = sor.u32 %s345, %s346
      %p348 = scmp.eq.s32.totalorder %s347, 0
      %s350 = sadd.s32 %s349, 1
      %s351 = scalar_select %p348, %s349, %s350
      %p354 = pneg %p348
      %p355 = scmp.eq.s32.totalorder %s26, 1
      %p356 = por %p354, %p355
      %p357 = scmp.ne.s32.totalorder %s349, %s352
      %p358 = scmp.eq.s32.totalorder %s26, 0
      %p359 = por %p357, %p358
      %p360 = scmp.ne.s32.totalorder %s349, %s352
      %p361 = scmp.eq.s32.totalorder %s31, 1
      %p362 = por %p360, %p361
      %p363 = scmp.ne.s32.totalorder %s352, %s353
      %p364 = scmp.eq.s32.totalorder %s31, 0
      %p365 = por %p363, %p364
      %p366 = scmp.ne.s32.totalorder %s352, %s353
      %p367 = scmp.eq.s32.totalorder %s32, 1
      %p368 = por %p366, %p367
      %p370 = scmp.ne.s32.totalorder %s353, %s369
      %p371 = scmp.eq.s32.totalorder %s32, 0
      %p372 = por %p370, %p371
      %p373 = scmp.le.s32.totalorder 1, %s26
      %p374 = scmp.lt.s32.totalorder %s26, 3
      %p375 = pnand %p373, %p374
      %p376 = pneg %p375
      // Predicated region
      $region9: #{tpu_custom_call.1} parent=5 // pred_check
        _
      $region10: #{tpu_custom_call.1} parent=5 // pred_check_branch
        %378 = sbr.rel (%p375) target = $region12
      $region11: #{tpu_custom_call.1} parent=5 // pred_region
        %s379 = ssub.s32 %s26, 1
        // Predicated region
        $region13: #{tpu_custom_call.1} parent=11 // pred_check
          %p380 = pneg %p85
        $region14: #{tpu_custom_call.1} parent=11 // pred_check_branch
          %382 = sbr.rel (%p380) target = $region16
        $region15: #{tpu_custom_call.1} parent=11 // pred_region
          %s384 = ssub.s32 128, 128
          %385 = vsyncadd [#allocation6], %s384
          %s387 = sshll.u32 [#allocation5], 4
          %s388 = int_to_ptr.vmem [resolvable:$true] %s387
          %390 = dma.hbm_to_vmem [thread:$0]  %s1, 128, %s388, [#allocation6]
        $region16: #{tpu_custom_call.1} parent=11 // pred_fallthru
          _
        // Predicated region
        $region17: #{tpu_custom_call.1} parent=11 // pred_check
          %p391 = pneg %p106
        $region18: #{tpu_custom_call.1} parent=11 // pred_check_branch
          %393 = sbr.rel (%p391) target = $region20
        $region19: #{tpu_custom_call.1} parent=11 // pred_region
          _
        $region20: #{tpu_custom_call.1} parent=11 // pred_fallthru
          _
        // Predicated region
        $region21: #{tpu_custom_call.1} parent=11 // pred_check
          %p394 = pneg %p127
        $region22: #{tpu_custom_call.1} parent=11 // pred_check_branch
          %396 = sbr.rel (%p394) target = $region24
        $region23: #{tpu_custom_call.1} parent=11 // pred_region
          _
        $region24: #{tpu_custom_call.1} parent=11 // pred_fallthru
          _
        // Predicated region
        $region25: #{tpu_custom_call.1} parent=11 // pred_check
          %p397 = pneg %p148
        $region26: #{tpu_custom_call.1} parent=11 // pred_check_branch
          %399 = sbr.rel (%p397) target = $region28
        $region27: #{tpu_custom_call.1} parent=11 // pred_region
          _
        $region28: #{tpu_custom_call.1} parent=11 // pred_fallthru
          _
        // Predicated region
        $region29: #{tpu_custom_call.1} parent=11 // pred_check
          %p400 = pneg %p169
        $region30: #{tpu_custom_call.1} parent=11 // pred_check_branch
          %402 = sbr.rel (%p400) target = $region32
        $region31: #{tpu_custom_call.1} parent=11 // pred_region
          _
        $region32: #{tpu_custom_call.1} parent=11 // pred_fallthru
          _
        // Predicated region
        $region33: #{tpu_custom_call.1} parent=11 // pred_check
          %p403 = pneg %p190
        $region34: #{tpu_custom_call.1} parent=11 // pred_check_branch
          %405 = sbr.rel (%p403) target = $region36
        $region35: #{tpu_custom_call.1} parent=11 // pred_region
          %s407 = ssub.s32 16, 16
          %408 = vsyncadd [#allocation9], %s407
          %s410 = sshll.u32 [#allocation8], 4
          %s411 = int_to_ptr.vmem [resolvable:$true] %s410
          %413 = dma.hbm_to_vmem [thread:$0]  %s6, 16, %s411, [#allocation9]
        $region36: #{tpu_custom_call.1} parent=11 // pred_fallthru
          _
        // Predicated region
        $region37: #{tpu_custom_call.1} parent=11 // pred_check
          %p414 = pneg %p211
        $region38: #{tpu_custom_call.1} parent=11 // pred_check_branch
          %416 = sbr.rel (%p414) target = $region40
        $region39: #{tpu_custom_call.1} parent=11 // pred_region
          %s418 = ssub.s32 16, 16
          %419 = vsyncadd [#allocation9], %s418
          %s421 = sshll.u32 [#allocation10], 4
          %s422 = int_to_ptr.vmem [resolvable:$true] %s421
          %424 = dma.hbm_to_vmem [thread:$0]  %s7, 16, %s422, [#allocation9]
        $region40: #{tpu_custom_call.1} parent=11 // pred_fallthru
          _
        // Predicated region
        $region41: #{tpu_custom_call.1} parent=11 // pred_check
          %p425 = pneg %p232
        $region42: #{tpu_custom_call.1} parent=11 // pred_check_branch
          %427 = sbr.rel (%p425) target = $region44
        $region43: #{tpu_custom_call.1} parent=11 // pred_region
          %s429 = ssub.s32 256, 256
          %430 = vsyncadd [#allocation12], %s429
          %s431 = sshll.u32 [#allocation11], 4
          %s432 = int_to_ptr.vmem [resolvable:$true] %s431
          %437 = dma.hbm_to_vmem [thread:$0]  %s8, 256, %s432, [#allocation12], 64, 64, 4
        $region44: #{tpu_custom_call.1} parent=11 // pred_fallthru
          _
        // Predicated region
        $region45: #{tpu_custom_call.1} parent=11 // pred_check
          %p438 = pneg %p253
        $region46: #{tpu_custom_call.1} parent=11 // pred_check_branch
          %440 = sbr.rel (%p438) target = $region48
        $region47: #{tpu_custom_call.1} parent=11 // pred_region
          %s442 = ssub.s32 16, 16
          %443 = vsyncadd [#allocation12], %s442
          %s445 = sshll.u32 [#allocation13], 4
          %s446 = int_to_ptr.vmem [resolvable:$true] %s445
          %448 = dma.hbm_to_vmem [thread:$0]  %s9, 16, %s446, [#allocation12]
        $region48: #{tpu_custom_call.1} parent=11 // pred_fallthru
          _
        // Predicated region
        $region49: #{tpu_custom_call.1} parent=11 // pred_check
          %p449 = pneg %p274
        $region50: #{tpu_custom_call.1} parent=11 // pred_check_branch
          %451 = sbr.rel (%p449) target = $region52
        $region51: #{tpu_custom_call.1} parent=11 // pred_region
          _
        $region52: #{tpu_custom_call.1} parent=11 // pred_fallthru
          _
        // Predicated region
        $region53: #{tpu_custom_call.1} parent=11 // pred_check
          %p452 = pneg %p295
        $region54: #{tpu_custom_call.1} parent=11 // pred_check_branch
          %454 = sbr.rel (%p452) target = $region56
        $region55: #{tpu_custom_call.1} parent=11 // pred_region
          _
        $region56: #{tpu_custom_call.1} parent=11 // pred_fallthru
          _
        // Predicated region
        $region57: #{tpu_custom_call.1} parent=11 // pred_check
          %p455 = pneg %p316
        $region58: #{tpu_custom_call.1} parent=11 // pred_check_branch
          %457 = sbr.rel (%p455) target = $region60
        $region59: #{tpu_custom_call.1} parent=11 // pred_region
          _
        $region60: #{tpu_custom_call.1} parent=11 // pred_fallthru
          _
        // Predicated region
        $region61: #{tpu_custom_call.1} parent=11 // pred_check
          %p458 = pneg %p337
        $region62: #{tpu_custom_call.1} parent=11 // pred_check_branch
          %460 = sbr.rel (%p458) target = $region64
        $region63: #{tpu_custom_call.1} parent=11 // pred_region
          _
        $region64: #{tpu_custom_call.1} parent=11 // pred_fallthru
          _
      $region12: #{tpu_custom_call.1} parent=5 // pred_fallthru
        _
      %p461 = scmp.lt.s32.totalorder %s26, 2
      // Predicated region
      $region65: #{tpu_custom_call.1} parent=5 // pred_check
        %p462 = pneg %p461
      $region66: #{tpu_custom_call.1} parent=5 // pred_check_branch
        %464 = sbr.rel (%p462) target = $region68
      $region67: #{tpu_custom_call.1} parent=5 // pred_region
        // Predicated region
        $region69: #{tpu_custom_call.1} parent=67 // pred_check
          %p465 = pneg %p58
        $region70: #{tpu_custom_call.1} parent=67 // pred_check_branch
          %467 = sbr.rel (%p465) target = $region72
        $region71: #{tpu_custom_call.1} parent=67 // pred_region
          %p468 = scmp.lt.s32.totalorder %s33, 1
          %s469 = scalar_select %p468, %s33, 1
          %s470 = smul.addr %s469, 8
          %s471 = scalar_lea.vmem %s0, %s470
        $region72: #{tpu_custom_call.1} parent=67 // pred_fallthru
          _
      $region68: #{tpu_custom_call.1} parent=5 // pred_fallthru
        _
      %p472 = scmp.le.s32.totalorder 1, %s26
      %p473 = scmp.lt.s32.totalorder %s26, 3
      %p474 = pnand %p472, %p473
      %p475 = pneg %p474
      // Predicated region
      $region73: #{tpu_custom_call.1} parent=5 // pred_check
        _
      $region74: #{tpu_custom_call.1} parent=5 // pred_check_branch
        %477 = sbr.rel (%p474) target = $region76
      $region75: #{tpu_custom_call.1} parent=5 // pred_region
        %s478 = ssub.s32 %s26, 1
        // Predicated region
        $region77: #{tpu_custom_call.1} parent=75 // pred_check
          %p479 = pneg %p85
        $region78: #{tpu_custom_call.1} parent=75 // pred_check_branch
          %481 = sbr.rel (%p479) target = $region80
        $region79: #{tpu_custom_call.1} parent=75 // pred_region
          %482 = dma.done [#allocation6], 128
        $region80: #{tpu_custom_call.1} parent=75 // pred_fallthru
          _
        // Predicated region
        $region81: #{tpu_custom_call.1} parent=75 // pred_check
          %p483 = pneg %p190
        $region82: #{tpu_custom_call.1} parent=75 // pred_check_branch
          %485 = sbr.rel (%p483) target = $region84
        $region83: #{tpu_custom_call.1} parent=75 // pred_region
          %486 = dma.done [#allocation9], 16
        $region84: #{tpu_custom_call.1} parent=75 // pred_fallthru
          _
        // Predicated region
        $region85: #{tpu_custom_call.1} parent=75 // pred_check
          %p487 = pneg %p211
        $region86: #{tpu_custom_call.1} parent=75 // pred_check_branch
          %489 = sbr.rel (%p487) target = $region88
        $region87: #{tpu_custom_call.1} parent=75 // pred_region
          %490 = dma.done [#allocation9], 16
        $region88: #{tpu_custom_call.1} parent=75 // pred_fallthru
          _
        // Predicated region
        $region89: #{tpu_custom_call.1} parent=75 // pred_check
          %p491 = pneg %p232
        $region90: #{tpu_custom_call.1} parent=75 // pred_check_branch
          %493 = sbr.rel (%p491) target = $region92
        $region91: #{tpu_custom_call.1} parent=75 // pred_region
          %494 = dma.done [#allocation12], 256
        $region92: #{tpu_custom_call.1} parent=75 // pred_fallthru
          _
        // Predicated region
        $region93: #{tpu_custom_call.1} parent=75 // pred_check
          %p495 = pneg %p253
        $region94: #{tpu_custom_call.1} parent=75 // pred_check_branch
          %497 = sbr.rel (%p495) target = $region96
        $region95: #{tpu_custom_call.1} parent=75 // pred_region
          %498 = dma.done [#allocation12], 16
        $region96: #{tpu_custom_call.1} parent=75 // pred_fallthru
          _
        %p499 = scmp.lt.s32.totalorder %s35, 1
        %s500 = scalar_select %p499, %s35, 1
        %s501 = smul.addr %s500, 8
        %s502 = scalar_lea.vmem %s0, %s501
        %p503 = pneg %p64
        %p504 = pneg %p61
        %p505 = pneg %p85
        %p506 = pneg %p82
        %p507 = pneg %p106
        %p508 = pneg %p103
        %p509 = pneg %p127
        %p510 = pneg %p124
        %p511 = pneg %p148
        %p512 = pneg %p145
        %p513 = pneg %p169
        %p514 = pneg %p166
        %p515 = pneg %p190
        %p516 = pneg %p187
        %p517 = pneg %p211
        %p518 = pneg %p208
        %p519 = pneg %p232
        %p520 = pneg %p229
        %p521 = pneg %p253
        %p522 = pneg %p250
        %p523 = pneg %p274
        %p524 = pneg %p271
        %p525 = pneg %p295
        %p526 = pneg %p292
        %p527 = pneg %p316
        %p528 = pneg %p313
        %p529 = pneg %p337
        %p530 = pneg %p334
        %p531 = pneg %p365
        %p532 = pneg %p362
        %s533 = sand.u32 %s352, 1
        %s534 = scalar_lea.sflag [#allocation7], %s533
        %s535 = sand.u32 %s352, 1
        %s536 = smul.addr %s535, 8
        %s537 = scalar_lea.vmem [#allocation14], %s536
        %p538 = scmp.lt.s32.totalorder %s35, 1
        %s539 = scalar_select %p538, %s35, 1
        %s540 = smul.addr %s539, 8
        %s541 = scalar_lea.vmem %s0, %s540
        %p543 = scmp.eq.s32.totalorder %s36, 0
        // Predicated region
        $region97: #{tpu_custom_call.1} parent=75 // pred_check
          %p544 = pneg %p543
        $region98: #{tpu_custom_call.1} parent=75 // pred_check_branch
          %546 = sbr.rel (%p544) target = $region100
        $region99: #{tpu_custom_call.1} parent=75 // pred_region
          %v547 = vld [vmem:[%s541] sm:$0xff]
          %v548 = vld [vmem:[#allocation5] sm:$0xff]
          %v549 = vadd.f32 %v547, %v548
          %v550 = vpack.c.bf16 %v549, %v549
          %v551 = vld [vmem:[%s2] sm:$0xf]
          %v552 = vld [vmem:[%s2 + $0x4] sm:$0xf]
          %v553 = vld [vmem:[%s2 + $0x8] sm:$0xf]
          %v554 = vld [vmem:[%s2 + $0xc] sm:$0xf]
          %v555 = vld [vmem:[%s3] sm:$0x1]
          %v557 = vlaneseq
          %v558 = vshrl.u32 %v557, 7
          %v559 = vsub.s32 0, %v558
          %v560 = vrot.slane %v555, %v559
          %v566 = vunpack.c.l.b16 %v551
          %v567 = vunpack.c.l.b16 %v552
          %v568 = vunpack.c.l.b16 %v553
          %v569 = vunpack.c.l.b16 %v554
          %v570 = vpack.c.b16 %v567, %v566
          %v571 = vpack.c.b16 %v569, %v568
          %vm574 = vcmask 261120
          %v576 = vsel %vm574, %v550, 0
          %578 = vmatprep.subr.bf16.mxu0 0
          %579 = vmatpush1.bf16.msra.mxu0 0
          %580 = vmatprep.subr.bf16.mxu0 0
          %581 = vmatpush1.bf16.msra.mxu0 0
          %582 = vmatprep.subr.bf16.mxu0 0
          %583 = vmatpush1.bf16.msra.mxu0 0
          %584 = vmatprep.subr.bf16.mxu0 0
          %585 = vmatpush1.bf16.msra.mxu0 0
          %586 = vmatprep.subr.bf16.mxu0 0
          %587 = vmatpush1.bf16.msra.mxu0 0
          %588 = vmatprep.subr.bf16.mxu0 0
          %589 = vmatpush1.bf16.msra.mxu0 0
          %590 = vmatprep.subr.bf16.mxu0 0
          %591 = vmatpush1.bf16.msra.mxu0 %v571
          %592 = vmatprep.subr.bf16.mxu0 0
          %593 = vmatpush1.bf16.msra.mxu0 %v570
          %594 = vmatprep.subr.bf16.mxu0 0
          %595 = vmatpush2.bf16.msra.mxu0 0
          %596 = vmatprep.subr.bf16.mxu0 0
          %597 = vmatpush2.bf16.msra.mxu0 0
          %598 = vmatprep.subr.bf16.mxu0 0
          %599 = vmatpush2.bf16.msra.mxu0 0
          %600 = vmatprep.subr.bf16.mxu0 0
          %601 = vmatpush2.bf16.msra.mxu0 0
          %602 = vmatprep.subr.bf16.mxu0 0
          %603 = vmatpush2.bf16.msra.mxu0 0
          %604 = vmatprep.subr.bf16.mxu0 0
          %605 = vmatpush2.bf16.msra.mxu0 0
          %606 = vmatprep.subr.bf16.mxu0 0
          %607 = vmatpush2.bf16.msra.mxu0 0
          %608 = vmatprep.subr.bf16.mxu0 0
          %609 = vmatpush2.bf16.msra.mxu0 0
          %610 = vmatprep.mubr.bf16.mxu0 0
          %611 = vmatmul.mubr.bf16.gmra.mxu0 %v576
          %v612 = vpop.f32.mrf.mxu0
          %v613 = vadd.f32 %v560, %v612
          %v614 = vpop.f32.mrf.mxu0
          %v615 = vpop.f32.mrf.mxu0
          %v616 = vpop.f32.mrf.mxu0
          %617 = vdwg.mxu0
          %v618 = vpack.c.bf16 %v613, %v613
          %vm619 = vcmask 60416
          %620 = vst.msk [vmem:[#allocation2] sm:$0xf] %vm619, %v618
          %v622 = vunpack.c.l.b16 %v618
          %v623 = vpack.c.b16 %v622, %v622
          %624 = vrot.lane.b32.xlu0 %v623, 96
          %v625 = vpop.permute.xlu0 %624
          %627 = vst.msk [vmem:[#allocation3] sm:$0xf] %vm619, %v625
          %628 = vrot.lane.b32.xlu0 %v623, 64
          %v629 = vpop.permute.xlu0 %628
          %631 = vst.msk [vmem:[#allocation4] sm:$0xf] %vm619, %v629
          %632 = vrot.lane.b32.xlu0 %v623, 120
          %v633 = vpop.permute.xlu0 %632
          %s635 = scalar_lea.vmem [#allocation2], 4
          %636 = vst.msk [vmem:[%s635] sm:$0xf] %vm619, %v633
          %637 = vrot.lane.b32.xlu0 %v623, 88
          %v638 = vpop.permute.xlu0 %637
          %s640 = scalar_lea.vmem [#allocation3], 4
          %641 = vst.msk [vmem:[%s640] sm:$0xf] %vm619, %v638
          %642 = vrot.lane.b32.xlu0 %v623, 56
          %v643 = vpop.permute.xlu0 %642
          %s645 = scalar_lea.vmem [#allocation4], 4
          %646 = vst.msk [vmem:[%s645] sm:$0xf] %vm619, %v643
          %647 = vrot.lane.b32.xlu0 %v623, 112
          %v648 = vpop.permute.xlu0 %647
          %s650 = scalar_lea.vmem [#allocation2], 8
          %651 = vst.msk [vmem:[%s650] sm:$0xf] %vm619, %v648
          %652 = vrot.lane.b32.xlu0 %v623, 80
          %v653 = vpop.permute.xlu0 %652
          %s655 = scalar_lea.vmem [#allocation3], 8
          %656 = vst.msk [vmem:[%s655] sm:$0xf] %vm619, %v653
          %657 = vrot.lane.b32.xlu0 %v623, 48
          %v658 = vpop.permute.xlu0 %657
          %s660 = scalar_lea.vmem [#allocation4], 8
          %661 = vst.msk [vmem:[%s660] sm:$0xf] %vm619, %v658
          %662 = vrot.lane.b32.xlu0 %v623, 104
          %v663 = vpop.permute.xlu0 %662
          %s665 = scalar_lea.vmem [#allocation2], 12
          %666 = vst.msk [vmem:[%s665] sm:$0xf] %vm619, %v663
          %667 = vrot.lane.b32.xlu0 %v623, 72
          %v668 = vpop.permute.xlu0 %667
          %s670 = scalar_lea.vmem [#allocation3], 12
          %671 = vst.msk [vmem:[%s670] sm:$0xf] %vm619, %v668
          %672 = vrot.lane.b32.xlu0 %v623, 40
          %v673 = vpop.permute.xlu0 %672
          %s675 = scalar_lea.vmem [#allocation4], 12
          %676 = vst.msk [vmem:[%s675] sm:$0xf] %vm619, %v673
        $region100: #{tpu_custom_call.1} parent=75 // pred_fallthru
          _
        %v677 = vld [vmem:[%s541] sm:$0xff]
        %v678 = vld [vmem:[#allocation5] sm:$0xff]
        %v679 = vadd.f32 %v677, %v678
        %v680 = vld [vmem:[#allocation2] sm:$0xf]
        %v681 = vld [vmem:[#allocation2 + $0x4] sm:$0xf]
        %v682 = vld [vmem:[#allocation2 + $0x8] sm:$0xf]
        %v683 = vld [vmem:[#allocation2 + $0xc] sm:$0xf]
        %v684 = vld [vmem:[#allocation3] sm:$0xf]
        %v685 = vld [vmem:[#allocation3 + $0x4] sm:$0xf]
        %v686 = vld [vmem:[#allocation3 + $0x8] sm:$0xf]
        %v687 = vld [vmem:[#allocation3 + $0xc] sm:$0xf]
        %vm688 = vcmask 64512
        %v690 = vsel %vm688, %v680, 0
        %v693 = vsel %vm688, %v684, 0
        %695 = vmatprep.subr.bf16.mxu0 0
        %696 = vmatpush1.bf16.xpose.msra.mxu0 0
        %697 = vmatprep.subr.bf16.mxu0 0
        %698 = vmatpush1.bf16.xpose.msra.mxu0 0
        %699 = vmatprep.subr.bf16.mxu0 0
        %700 = vmatpush1.bf16.xpose.msra.mxu0 0
        %701 = vmatprep.subr.bf16.mxu0 0
        %702 = vmatpush1.bf16.xpose.msra.mxu0 0
        %703 = vmatprep.subr.bf16.mxu0 0
        %704 = vmatpush1.bf16.xpose.msra.mxu0 0
        %705 = vmatprep.subr.bf16.mxu0 0
        %706 = vmatpush1.bf16.xpose.msra.mxu0 0
        %707 = vmatprep.subr.bf16.mxu0 0
        %708 = vmatpush1.bf16.xpose.msra.mxu0 0
        %709 = vmatprep.subr.bf16.mxu0 0
        %710 = vmatpush1.bf16.xpose.msra.mxu0 %v693
        %711 = vmatprep.subr.bf16.mxu0 0
        %712 = vmatpush2.bf16.xpose.msra.mxu0 0
        %713 = vmatprep.subr.bf16.mxu0 0
        %714 = vmatpush2.bf16.xpose.msra.mxu0 0
        %715 = vmatprep.subr.bf16.mxu0 0
        %716 = vmatpush2.bf16.xpose.msra.mxu0 0
        %717 = vmatprep.subr.bf16.mxu0 0
        %718 = vmatpush2.bf16.xpose.msra.mxu0 0
        %719 = vmatprep.subr.bf16.mxu0 0
        %720 = vmatpush2.bf16.xpose.msra.mxu0 0
        %721 = vmatprep.subr.bf16.mxu0 0
        %722 = vmatpush2.bf16.xpose.msra.mxu0 0
        %723 = vmatprep.subr.bf16.mxu0 0
        %724 = vmatpush2.bf16.xpose.msra.mxu0 0
        %725 = vmatprep.subr.bf16.mxu0 0
        %726 = vmatpush2.bf16.xpose.msra.mxu0 0
        %727 = vmatprep.mubr.bf16.mxu0 0
        %728 = vmatmul.mubr.bf16.gmra.mxu0 %v690
        %v729 = vpop.f32.mrf.mxu0
        %v730 = vadd.f32 0.0, %v729
        %v731 = vpop.f32.mrf.mxu0
        %v732 = vpop.f32.mrf.mxu0
        %v733 = vpop.f32.mrf.mxu0
        %734 = vdwg.mxu0
        %v736 = vsel %vm688, %v681, 0
        %v739 = vsel %vm688, %v685, 0
        %741 = vmatprep.subr.bf16.mxu0 0
        %742 = vmatpush1.bf16.xpose.msra.mxu0 0
        %743 = vmatprep.subr.bf16.mxu0 0
        %744 = vmatpush1.bf16.xpose.msra.mxu0 0
        %745 = vmatprep.subr.bf16.mxu0 0
        %746 = vmatpush1.bf16.xpose.msra.mxu0 0
        %747 = vmatprep.subr.bf16.mxu0 0
        %748 = vmatpush1.bf16.xpose.msra.mxu0 0
        %749 = vmatprep.subr.bf16.mxu0 0
        %750 = vmatpush1.bf16.xpose.msra.mxu0 0
        %751 = vmatprep.subr.bf16.mxu0 0
        %752 = vmatpush1.bf16.xpose.msra.mxu0 0
        %753 = vmatprep.subr.bf16.mxu0 0
        %754 = vmatpush1.bf16.xpose.msra.mxu0 0
        %755 = vmatprep.subr.bf16.mxu0 0
        %756 = vmatpush1.bf16.xpose.msra.mxu0 %v739
        %757 = vmatprep.subr.bf16.mxu0 0
        %758 = vmatpush2.bf16.xpose.msra.mxu0 0
        %759 = vmatprep.subr.bf16.mxu0 0
        %760 = vmatpush2.bf16.xpose.msra.mxu0 0
        %761 = vmatprep.subr.bf16.mxu0 0
        %762 = vmatpush2.bf16.xpose.msra.mxu0 0
        %763 = vmatprep.subr.bf16.mxu0 0
        %764 = vmatpush2.bf16.xpose.msra.mxu0 0
        %765 = vmatprep.subr.bf16.mxu0 0
        %766 = vmatpush2.bf16.xpose.msra.mxu0 0
        %767 = vmatprep.subr.bf16.mxu0 0
        %768 = vmatpush2.bf16.xpose.msra.mxu0 0
        %769 = vmatprep.subr.bf16.mxu0 0
        %770 = vmatpush2.bf16.xpose.msra.mxu0 0
        %771 = vmatprep.subr.bf16.mxu0 0
        %772 = vmatpush2.bf16.xpose.msra.mxu0 0
        %773 = vmatprep.mubr.bf16.mxu0 0
        %774 = vmatmul.mubr.bf16.gmra.mxu0 %v736
        %v775 = vpop.f32.mrf.mxu0
        %v776 = vadd.f32 0.0, %v775
        %v777 = vpop.f32.mrf.mxu0
        %v778 = vpop.f32.mrf.mxu0
        %v779 = vpop.f32.mrf.mxu0
        %780 = vdwg.mxu0
        %v782 = vsel %vm688, %v682, 0
        %v785 = vsel %vm688, %v686, 0
        %787 = vmatprep.subr.bf16.mxu0 0
        %788 = vmatpush1.bf16.xpose.msra.mxu0 0
        %789 = vmatprep.subr.bf16.mxu0 0
        %790 = vmatpush1.bf16.xpose.msra.mxu0 0
        %791 = vmatprep.subr.bf16.mxu0 0
        %792 = vmatpush1.bf16.xpose.msra.mxu0 0
        %793 = vmatprep.subr.bf16.mxu0 0
        %794 = vmatpush1.bf16.xpose.msra.mxu0 0
        %795 = vmatprep.subr.bf16.mxu0 0
        %796 = vmatpush1.bf16.xpose.msra.mxu0 0
        %797 = vmatprep.subr.bf16.mxu0 0
        %798 = vmatpush1.bf16.xpose.msra.mxu0 0
        %799 = vmatprep.subr.bf16.mxu0 0
        %800 = vmatpush1.bf16.xpose.msra.mxu0 0
        %801 = vmatprep.subr.bf16.mxu0 0
        %802 = vmatpush1.bf16.xpose.msra.mxu0 %v785
        %803 = vmatprep.subr.bf16.mxu0 0
        %804 = vmatpush2.bf16.xpose.msra.mxu0 0
        %805 = vmatprep.subr.bf16.mxu0 0
        %806 = vmatpush2.bf16.xpose.msra.mxu0 0
        %807 = vmatprep.subr.bf16.mxu0 0
        %808 = vmatpush2.bf16.xpose.msra.mxu0 0
        %809 = vmatprep.subr.bf16.mxu0 0
        %810 = vmatpush2.bf16.xpose.msra.mxu0 0
        %811 = vmatprep.subr.bf16.mxu0 0
        %812 = vmatpush2.bf16.xpose.msra.mxu0 0
        %813 = vmatprep.subr.bf16.mxu0 0
        %814 = vmatpush2.bf16.xpose.msra.mxu0 0
        %815 = vmatprep.subr.bf16.mxu0 0
        %816 = vmatpush2.bf16.xpose.msra.mxu0 0
        %817 = vmatprep.subr.bf16.mxu0 0
        %818 = vmatpush2.bf16.xpose.msra.mxu0 0
        %819 = vmatprep.mubr.bf16.mxu0 0
        %820 = vmatmul.mubr.bf16.gmra.mxu0 %v782
        %v821 = vpop.f32.mrf.mxu0
        %v822 = vadd.f32 0.0, %v821
        %v823 = vpop.f32.mrf.mxu0
        %v824 = vpop.f32.mrf.mxu0
        %v825 = vpop.f32.mrf.mxu0
        %826 = vdwg.mxu0
        %v828 = vsel %vm688, %v683, 0
        %v831 = vsel %vm688, %v687, 0
        %833 = vmatprep.subr.bf16.mxu0 0
        %834 = vmatpush1.bf16.xpose.msra.mxu0 0
        %835 = vmatprep.subr.bf16.mxu0 0
        %836 = vmatpush1.bf16.xpose.msra.mxu0 0
        %837 = vmatprep.subr.bf16.mxu0 0
        %838 = vmatpush1.bf16.xpose.msra.mxu0 0
        %839 = vmatprep.subr.bf16.mxu0 0
        %840 = vmatpush1.bf16.xpose.msra.mxu0 0
        %841 = vmatprep.subr.bf16.mxu0 0
        %842 = vmatpush1.bf16.xpose.msra.mxu0 0
        %843 = vmatprep.subr.bf16.mxu0 0
        %844 = vmatpush1.bf16.xpose.msra.mxu0 0
        %845 = vmatprep.subr.bf16.mxu0 0
        %846 = vmatpush1.bf16.xpose.msra.mxu0 0
        %847 = vmatprep.subr.bf16.mxu0 0
        %848 = vmatpush1.bf16.xpose.msra.mxu0 %v831
        %849 = vmatprep.subr.bf16.mxu0 0
        %850 = vmatpush2.bf16.xpose.msra.mxu0 0
        %851 = vmatprep.subr.bf16.mxu0 0
        %852 = vmatpush2.bf16.xpose.msra.mxu0 0
        %853 = vmatprep.subr.bf16.mxu0 0
        %854 = vmatpush2.bf16.xpose.msra.mxu0 0
        %855 = vmatprep.subr.bf16.mxu0 0
        %856 = vmatpush2.bf16.xpose.msra.mxu0 0
        %857 = vmatprep.subr.bf16.mxu0 0
        %858 = vmatpush2.bf16.xpose.msra.mxu0 0
        %859 = vmatprep.subr.bf16.mxu0 0
        %860 = vmatpush2.bf16.xpose.msra.mxu0 0
        %861 = vmatprep.subr.bf16.mxu0 0
        %862 = vmatpush2.bf16.xpose.msra.mxu0 0
        %863 = vmatprep.subr.bf16.mxu0 0
        %864 = vmatpush2.bf16.xpose.msra.mxu0 0
        %865 = vmatprep.mubr.bf16.mxu0 0
        %866 = vmatmul.mubr.bf16.gmra.mxu0 %v828
        %v867 = vpop.f32.mrf.mxu0
        %v868 = vadd.f32 0.0, %v867
        %v869 = vpop.f32.mrf.mxu0
        %v870 = vpop.f32.mrf.mxu0
        %v871 = vpop.f32.mrf.mxu0
        %872 = vdwg.mxu0
        %v873 = vsel %vm688, %v730, -inf
        %874 = vmax.xlane.f32.xlu0 %v873
        %v875 = vpop.xlane.xlu0 %874
        %v876 = vsel %vm688, %v776, -inf
        %877 = vmax.xlane.f32.xlu0 %v876
        %v878 = vpop.xlane.xlu0 %877
        %v879 = vsel %vm688, %v822, -inf
        %880 = vmax.xlane.f32.xlu0 %v879
        %v881 = vpop.xlane.xlu0 %880
        %v882 = vsel %vm688, %v868, -inf
        %883 = vmax.xlane.f32.xlu0 %v882
        %v884 = vpop.xlane.xlu0 %883
        %v885 = vsub.f32 %v730, %v875
        %v886 = vsub.f32 %v776, %v878
        %v887 = vsub.f32 %v822, %v881
        %v888 = vsub.f32 %v868, %v884
        %v889 = vmul.f32 %v885, 1.442695
        %v890 = vpow.pop %v889
        %v891 = vmul.f32 %v886, 1.442695
        %v892 = vpow.pop %v891
        %v893 = vmul.f32 %v887, 1.442695
        %v894 = vpow.pop %v893
        %v895 = vmul.f32 %v888, 1.442695
        %v896 = vpow.pop %v895
        %v897 = vsel %vm688, %v890, 0.0
        %898 = vadd.xlane.f32.xlu0 %v897
        %v899 = vpop.xlane.xlu0 %898
        %v900 = vsel %vm688, %v892, 0.0
        %901 = vadd.xlane.f32.xlu0 %v900
        %v902 = vpop.xlane.xlu0 %901
        %v903 = vsel %vm688, %v894, 0.0
        %904 = vadd.xlane.f32.xlu0 %v903
        %v905 = vpop.xlane.xlu0 %904
        %v906 = vsel %vm688, %v896, 0.0
        %907 = vadd.xlane.f32.xlu0 %v906
        %v908 = vpop.xlane.xlu0 %907
        %v909 = vpack.c.bf16 %v890, %v890
        %v910 = vpack.c.bf16 %v892, %v892
        %v911 = vpack.c.bf16 %v894, %v894
        %v912 = vpack.c.bf16 %v896, %v896
        %v913 = vld [vmem:[#allocation4] sm:$0xf]
        %v914 = vld [vmem:[#allocation4 + $0x4] sm:$0xf]
        %v915 = vld [vmem:[#allocation4 + $0x8] sm:$0xf]
        %v916 = vld [vmem:[#allocation4 + $0xc] sm:$0xf]
        %v918 = vsel %vm688, %v909, 0
        %vm920 = vcmask 1043456
        %v922 = vsel %vm920, %v913, 0
        %924 = vmatprep.subr.bf16.mxu0 0
        %925 = vmatpush1.bf16.msra.mxu0 0
        %926 = vmatprep.subr.bf16.mxu0 0
        %927 = vmatpush1.bf16.msra.mxu0 0
        %928 = vmatprep.subr.bf16.mxu0 0
        %929 = vmatpush1.bf16.msra.mxu0 0
        %930 = vmatprep.subr.bf16.mxu0 0
        %931 = vmatpush1.bf16.msra.mxu0 0
        %932 = vmatprep.subr.bf16.mxu0 0
        %933 = vmatpush1.bf16.msra.mxu0 0
        %934 = vmatprep.subr.bf16.mxu0 0
        %935 = vmatpush1.bf16.msra.mxu0 0
        %936 = vmatprep.subr.bf16.mxu0 0
        %937 = vmatpush1.bf16.msra.mxu0 0
        %938 = vmatprep.subr.bf16.mxu0 0
        %939 = vmatpush1.bf16.msra.mxu0 %v922
        %940 = vmatprep.subr.bf16.mxu0 0
        %941 = vmatpush2.bf16.msra.mxu0 0
        %942 = vmatprep.subr.bf16.mxu0 0
        %943 = vmatpush2.bf16.msra.mxu0 0
        %944 = vmatprep.subr.bf16.mxu0 0
        %945 = vmatpush2.bf16.msra.mxu0 0
        %946 = vmatprep.subr.bf16.mxu0 0
        %947 = vmatpush2.bf16.msra.mxu0 0
        %948 = vmatprep.subr.bf16.mxu0 0
        %949 = vmatpush2.bf16.msra.mxu0 0
        %950 = vmatprep.subr.bf16.mxu0 0
        %951 = vmatpush2.bf16.msra.mxu0 0
        %952 = vmatprep.subr.bf16.mxu0 0
        %953 = vmatpush2.bf16.msra.mxu0 0
        %954 = vmatprep.subr.bf16.mxu0 0
        %955 = vmatpush2.bf16.msra.mxu0 0
        %956 = vmatprep.mubr.bf16.mxu0 0
        %957 = vmatmul.mubr.bf16.gmra.mxu0 %v918
        %v958 = vpop.f32.mrf.mxu0
        %v959 = vadd.f32 0.0, %v958
        %v960 = vpop.f32.mrf.mxu0
        %v961 = vpop.f32.mrf.mxu0
        %v962 = vpop.f32.mrf.mxu0
        %963 = vdwg.mxu0
        %v965 = vsel %vm688, %v910, 0
        %v968 = vsel %vm920, %v914, 0
        %970 = vmatprep.subr.bf16.mxu0 0
        %971 = vmatpush1.bf16.msra.mxu0 0
        %972 = vmatprep.subr.bf16.mxu0 0
        %973 = vmatpush1.bf16.msra.mxu0 0
        %974 = vmatprep.subr.bf16.mxu0 0
        %975 = vmatpush1.bf16.msra.mxu0 0
        %976 = vmatprep.subr.bf16.mxu0 0
        %977 = vmatpush1.bf16.msra.mxu0 0
        %978 = vmatprep.subr.bf16.mxu0 0
        %979 = vmatpush1.bf16.msra.mxu0 0
        %980 = vmatprep.subr.bf16.mxu0 0
        %981 = vmatpush1.bf16.msra.mxu0 0
        %982 = vmatprep.subr.bf16.mxu0 0
        %983 = vmatpush1.bf16.msra.mxu0 0
        %984 = vmatprep.subr.bf16.mxu0 0
        %985 = vmatpush1.bf16.msra.mxu0 %v968
        %986 = vmatprep.subr.bf16.mxu0 0
        %987 = vmatpush2.bf16.msra.mxu0 0
        %988 = vmatprep.subr.bf16.mxu0 0
        %989 = vmatpush2.bf16.msra.mxu0 0
        %990 = vmatprep.subr.bf16.mxu0 0
        %991 = vmatpush2.bf16.msra.mxu0 0
        %992 = vmatprep.subr.bf16.mxu0 0
        %993 = vmatpush2.bf16.msra.mxu0 0
        %994 = vmatprep.subr.bf16.mxu0 0
        %995 = vmatpush2.bf16.msra.mxu0 0
        %996 = vmatprep.subr.bf16.mxu0 0
        %997 = vmatpush2.bf16.msra.mxu0 0
        %998 = vmatprep.subr.bf16.mxu0 0
        %999 = vmatpush2.bf16.msra.mxu0 0
        %1000 = vmatprep.subr.bf16.mxu0 0
        %1001 = vmatpush2.bf16.msra.mxu0 0
        %1002 = vmatprep.mubr.bf16.mxu0 0
        %1003 = vmatmul.mubr.bf16.gmra.mxu0 %v965
        %v1004 = vpop.f32.mrf.mxu0
        %v1005 = vadd.f32 0.0, %v1004
        %v1006 = vpop.f32.mrf.mxu0
        %v1007 = vpop.f32.mrf.mxu0
        %v1008 = vpop.f32.mrf.mxu0
        %1009 = vdwg.mxu0
        %v1011 = vsel %vm688, %v911, 0
        %v1014 = vsel %vm920, %v915, 0
        %1016 = vmatprep.subr.bf16.mxu0 0
        %1017 = vmatpush1.bf16.msra.mxu0 0
        %1018 = vmatprep.subr.bf16.mxu0 0
        %1019 = vmatpush1.bf16.msra.mxu0 0
        %1020 = vmatprep.subr.bf16.mxu0 0
        %1021 = vmatpush1.bf16.msra.mxu0 0
        %1022 = vmatprep.subr.bf16.mxu0 0
        %1023 = vmatpush1.bf16.msra.mxu0 0
        %1024 = vmatprep.subr.bf16.mxu0 0
        %1025 = vmatpush1.bf16.msra.mxu0 0
        %1026 = vmatprep.subr.bf16.mxu0 0
        %1027 = vmatpush1.bf16.msra.mxu0 0
        %1028 = vmatprep.subr.bf16.mxu0 0
        %1029 = vmatpush1.bf16.msra.mxu0 0
        %1030 = vmatprep.subr.bf16.mxu0 0
        %1031 = vmatpush1.bf16.msra.mxu0 %v1014
        %1032 = vmatprep.subr.bf16.mxu0 0
        %1033 = vmatpush2.bf16.msra.mxu0 0
        %1034 = vmatprep.subr.bf16.mxu0 0
        %1035 = vmatpush2.bf16.msra.mxu0 0
        %1036 = vmatprep.subr.bf16.mxu0 0
        %1037 = vmatpush2.bf16.msra.mxu0 0
        %1038 = vmatprep.subr.bf16.mxu0 0
        %1039 = vmatpush2.bf16.msra.mxu0 0
        %1040 = vmatprep.subr.bf16.mxu0 0
        %1041 = vmatpush2.bf16.msra.mxu0 0
        %1042 = vmatprep.subr.bf16.mxu0 0
        %1043 = vmatpush2.bf16.msra.mxu0 0
        %1044 = vmatprep.subr.bf16.mxu0 0
        %1045 = vmatpush2.bf16.msra.mxu0 0
        %1046 = vmatprep.subr.bf16.mxu0 0
        %1047 = vmatpush2.bf16.msra.mxu0 0
        %1048 = vmatprep.mubr.bf16.mxu0 0
        %1049 = vmatmul.mubr.bf16.gmra.mxu0 %v1011
        %v1050 = vpop.f32.mrf.mxu0
        %v1051 = vadd.f32 0.0, %v1050
        %v1052 = vpop.f32.mrf.mxu0
        %v1053 = vpop.f32.mrf.mxu0
        %v1054 = vpop.f32.mrf.mxu0
        %1055 = vdwg.mxu0
        %v1057 = vsel %vm688, %v912, 0
        %v1060 = vsel %vm920, %v916, 0
        %1062 = vmatprep.subr.bf16.mxu0 0
        %1063 = vmatpush1.bf16.msra.mxu0 0
        %1064 = vmatprep.subr.bf16.mxu0 0
        %1065 = vmatpush1.bf16.msra.mxu0 0
        %1066 = vmatprep.subr.bf16.mxu0 0
        %1067 = vmatpush1.bf16.msra.mxu0 0
        %1068 = vmatprep.subr.bf16.mxu0 0
        %1069 = vmatpush1.bf16.msra.mxu0 0
        %1070 = vmatprep.subr.bf16.mxu0 0
        %1071 = vmatpush1.bf16.msra.mxu0 0
        %1072 = vmatprep.subr.bf16.mxu0 0
        %1073 = vmatpush1.bf16.msra.mxu0 0
        %1074 = vmatprep.subr.bf16.mxu0 0
        %1075 = vmatpush1.bf16.msra.mxu0 0
        %1076 = vmatprep.subr.bf16.mxu0 0
        %1077 = vmatpush1.bf16.msra.mxu0 %v1060
        %1078 = vmatprep.subr.bf16.mxu0 0
        %1079 = vmatpush2.bf16.msra.mxu0 0
        %1080 = vmatprep.subr.bf16.mxu0 0
        %1081 = vmatpush2.bf16.msra.mxu0 0
        %1082 = vmatprep.subr.bf16.mxu0 0
        %1083 = vmatpush2.bf16.msra.mxu0 0
        %1084 = vmatprep.subr.bf16.mxu0 0
        %1085 = vmatpush2.bf16.msra.mxu0 0
        %1086 = vmatprep.subr.bf16.mxu0 0
        %1087 = vmatpush2.bf16.msra.mxu0 0
        %1088 = vmatprep.subr.bf16.mxu0 0
        %1089 = vmatpush2.bf16.msra.mxu0 0
        %1090 = vmatprep.subr.bf16.mxu0 0
        %1091 = vmatpush2.bf16.msra.mxu0 0
        %1092 = vmatprep.subr.bf16.mxu0 0
        %1093 = vmatpush2.bf16.msra.mxu0 0
        %1094 = vmatprep.mubr.bf16.mxu0 0
        %1095 = vmatmul.mubr.bf16.gmra.mxu0 %v1057
        %v1096 = vpop.f32.mrf.mxu0
        %v1097 = vadd.f32 0.0, %v1096
        %v1098 = vpop.f32.mrf.mxu0
        %v1099 = vpop.f32.mrf.mxu0
        %v1100 = vpop.f32.mrf.mxu0
        %1101 = vdwg.mxu0
        %v1102 = vrcp.pop %v899
        %v1103 = vrcp.pop %v902
        %v1104 = vrcp.pop %v905
        %v1105 = vrcp.pop %v908
        %v1106 = vmul.f32 %v959, %v1102
        %v1107 = vmul.f32 %v1005, %v1103
        %v1108 = vmul.f32 %v1051, %v1104
        %v1109 = vmul.f32 %v1097, %v1105
        %v1110 = vpack.c.bf16 %v1106, %v1106
        %v1111 = vpack.c.bf16 %v1107, %v1107
        %v1112 = vpack.c.bf16 %v1108, %v1108
        %v1113 = vpack.c.bf16 %v1109, %v1109
        %v1114 = vld [vmem:[%s4] sm:$0xf]
        %v1115 = vld [vmem:[%s4 + $0x4] sm:$0xf]
        %v1116 = vld [vmem:[%s4 + $0x8] sm:$0xf]
        %v1117 = vld [vmem:[%s4 + $0xc] sm:$0xf]
        %v1119 = vsel %vm688, %v1110, 0
        %v1122 = vsel %vm920, %v1114, 0
        %1124 = vmatprep.subr.bf16.mxu0 0
        %1125 = vmatpush1.bf16.msra.mxu0 0
        %1126 = vmatprep.subr.bf16.mxu0 0
        %1127 = vmatpush1.bf16.msra.mxu0 0
        %1128 = vmatprep.subr.bf16.mxu0 0
        %1129 = vmatpush1.bf16.msra.mxu0 0
        %1130 = vmatprep.subr.bf16.mxu0 0
        %1131 = vmatpush1.bf16.msra.mxu0 0
        %1132 = vmatprep.subr.bf16.mxu0 0
        %1133 = vmatpush1.bf16.msra.mxu0 0
        %1134 = vmatprep.subr.bf16.mxu0 0
        %1135 = vmatpush1.bf16.msra.mxu0 0
        %1136 = vmatprep.subr.bf16.mxu0 0
        %1137 = vmatpush1.bf16.msra.mxu0 0
        %1138 = vmatprep.subr.bf16.mxu0 0
        %1139 = vmatpush1.bf16.msra.mxu0 %v1122
        %1140 = vmatprep.subr.bf16.mxu0 0
        %1141 = vmatpush2.bf16.msra.mxu0 0
        %1142 = vmatprep.subr.bf16.mxu0 0
        %1143 = vmatpush2.bf16.msra.mxu0 0
        %1144 = vmatprep.subr.bf16.mxu0 0
        %1145 = vmatpush2.bf16.msra.mxu0 0
        %1146 = vmatprep.subr.bf16.mxu0 0
        %1147 = vmatpush2.bf16.msra.mxu0 0
        %1148 = vmatprep.subr.bf16.mxu0 0
        %1149 = vmatpush2.bf16.msra.mxu0 0
        %1150 = vmatprep.subr.bf16.mxu0 0
        %1151 = vmatpush2.bf16.msra.mxu0 0
        %1152 = vmatprep.subr.bf16.mxu0 0
        %1153 = vmatpush2.bf16.msra.mxu0 0
        %1154 = vmatprep.subr.bf16.mxu0 0
        %1155 = vmatpush2.bf16.msra.mxu0 0
        %1156 = vmatprep.mubr.bf16.mxu0 0
        %1157 = vmatmul.mubr.bf16.gmra.mxu0 %v1119
        %v1158 = vpop.f32.mrf.mxu0
        %v1159 = vadd.f32 0.0, %v1158
        %v1160 = vpop.f32.mrf.mxu0
        %v1161 = vpop.f32.mrf.mxu0
        %v1162 = vpop.f32.mrf.mxu0
        %1163 = vdwg.mxu0
        %v1165 = vsel %vm688, %v1111, 0
        %v1168 = vsel %vm920, %v1115, 0
        %1170 = vmatprep.subr.bf16.mxu0 0
        %1171 = vmatpush1.bf16.msra.mxu0 0
        %1172 = vmatprep.subr.bf16.mxu0 0
        %1173 = vmatpush1.bf16.msra.mxu0 0
        %1174 = vmatprep.subr.bf16.mxu0 0
        %1175 = vmatpush1.bf16.msra.mxu0 0
        %1176 = vmatprep.subr.bf16.mxu0 0
        %1177 = vmatpush1.bf16.msra.mxu0 0
        %1178 = vmatprep.subr.bf16.mxu0 0
        %1179 = vmatpush1.bf16.msra.mxu0 0
        %1180 = vmatprep.subr.bf16.mxu0 0
        %1181 = vmatpush1.bf16.msra.mxu0 0
        %1182 = vmatprep.subr.bf16.mxu0 0
        %1183 = vmatpush1.bf16.msra.mxu0 0
        %1184 = vmatprep.subr.bf16.mxu0 0
        %1185 = vmatpush1.bf16.msra.mxu0 %v1168
        %1186 = vmatprep.subr.bf16.mxu0 0
        %1187 = vmatpush2.bf16.msra.mxu0 0
        %1188 = vmatprep.subr.bf16.mxu0 0
        %1189 = vmatpush2.bf16.msra.mxu0 0
        %1190 = vmatprep.subr.bf16.mxu0 0
        %1191 = vmatpush2.bf16.msra.mxu0 0
        %1192 = vmatprep.subr.bf16.mxu0 0
        %1193 = vmatpush2.bf16.msra.mxu0 0
        %1194 = vmatprep.subr.bf16.mxu0 0
        %1195 = vmatpush2.bf16.msra.mxu0 0
        %1196 = vmatprep.subr.bf16.mxu0 0
        %1197 = vmatpush2.bf16.msra.mxu0 0
        %1198 = vmatprep.subr.bf16.mxu0 0
        %1199 = vmatpush2.bf16.msra.mxu0 0
        %1200 = vmatprep.subr.bf16.mxu0 0
        %1201 = vmatpush2.bf16.msra.mxu0 0
        %1202 = vmatprep.mubr.bf16.mxu0 0
        %1203 = vmatmul.mubr.bf16.gmra.mxu0 %v1165
        %v1204 = vpop.f32.mrf.mxu0
        %v1205 = vadd.f32 0.0, %v1204
        %v1206 = vpop.f32.mrf.mxu0
        %v1207 = vpop.f32.mrf.mxu0
        %v1208 = vpop.f32.mrf.mxu0
        %1209 = vdwg.mxu0
        %v1211 = vsel %vm688, %v1112, 0
        %v1214 = vsel %vm920, %v1116, 0
        %1216 = vmatprep.subr.bf16.mxu0 0
        %1217 = vmatpush1.bf16.msra.mxu0 0
        %1218 = vmatprep.subr.bf16.mxu0 0
        %1219 = vmatpush1.bf16.msra.mxu0 0
        %1220 = vmatprep.subr.bf16.mxu0 0
        %1221 = vmatpush1.bf16.msra.mxu0 0
        %1222 = vmatprep.subr.bf16.mxu0 0
        %1223 = vmatpush1.bf16.msra.mxu0 0
        %1224 = vmatprep.subr.bf16.mxu0 0
        %1225 = vmatpush1.bf16.msra.mxu0 0
        %1226 = vmatprep.subr.bf16.mxu0 0
        %1227 = vmatpush1.bf16.msra.mxu0 0
        %1228 = vmatprep.subr.bf16.mxu0 0
        %1229 = vmatpush1.bf16.msra.mxu0 0
        %1230 = vmatprep.subr.bf16.mxu0 0
        %1231 = vmatpush1.bf16.msra.mxu0 %v1214
        %1232 = vmatprep.subr.bf16.mxu0 0
        %1233 = vmatpush2.bf16.msra.mxu0 0
        %1234 = vmatprep.subr.bf16.mxu0 0
        %1235 = vmatpush2.bf16.msra.mxu0 0
        %1236 = vmatprep.subr.bf16.mxu0 0
        %1237 = vmatpush2.bf16.msra.mxu0 0
        %1238 = vmatprep.subr.bf16.mxu0 0
        %1239 = vmatpush2.bf16.msra.mxu0 0
        %1240 = vmatprep.subr.bf16.mxu0 0
        %1241 = vmatpush2.bf16.msra.mxu0 0
        %1242 = vmatprep.subr.bf16.mxu0 0
        %1243 = vmatpush2.bf16.msra.mxu0 0
        %1244 = vmatprep.subr.bf16.mxu0 0
        %1245 = vmatpush2.bf16.msra.mxu0 0
        %1246 = vmatprep.subr.bf16.mxu0 0
        %1247 = vmatpush2.bf16.msra.mxu0 0
        %1248 = vmatprep.mubr.bf16.mxu0 0
        %1249 = vmatmul.mubr.bf16.gmra.mxu0 %v1211
        %v1250 = vpop.f32.mrf.mxu0
        %v1251 = vadd.f32 0.0, %v1250
        %v1252 = vpop.f32.mrf.mxu0
        %v1253 = vpop.f32.mrf.mxu0
        %v1254 = vpop.f32.mrf.mxu0
        %1255 = vdwg.mxu0
        %v1257 = vsel %vm688, %v1113, 0
        %v1260 = vsel %vm920, %v1117, 0
        %1262 = vmatprep.subr.bf16.mxu0 0
        %1263 = vmatpush1.bf16.msra.mxu0 0
        %1264 = vmatprep.subr.bf16.mxu0 0
        %1265 = vmatpush1.bf16.msra.mxu0 0
        %1266 = vmatprep.subr.bf16.mxu0 0
        %1267 = vmatpush1.bf16.msra.mxu0 0
        %1268 = vmatprep.subr.bf16.mxu0 0
        %1269 = vmatpush1.bf16.msra.mxu0 0
        %1270 = vmatprep.subr.bf16.mxu0 0
        %1271 = vmatpush1.bf16.msra.mxu0 0
        %1272 = vmatprep.subr.bf16.mxu0 0
        %1273 = vmatpush1.bf16.msra.mxu0 0
        %1274 = vmatprep.subr.bf16.mxu0 0
        %1275 = vmatpush1.bf16.msra.mxu0 0
        %1276 = vmatprep.subr.bf16.mxu0 0
        %1277 = vmatpush1.bf16.msra.mxu0 %v1260
        %1278 = vmatprep.subr.bf16.mxu0 0
        %1279 = vmatpush2.bf16.msra.mxu0 0
        %1280 = vmatprep.subr.bf16.mxu0 0
        %1281 = vmatpush2.bf16.msra.mxu0 0
        %1282 = vmatprep.subr.bf16.mxu0 0
        %1283 = vmatpush2.bf16.msra.mxu0 0
        %1284 = vmatprep.subr.bf16.mxu0 0
        %1285 = vmatpush2.bf16.msra.mxu0 0
        %1286 = vmatprep.subr.bf16.mxu0 0
        %1287 = vmatpush2.bf16.msra.mxu0 0
        %1288 = vmatprep.subr.bf16.mxu0 0
        %1289 = vmatpush2.bf16.msra.mxu0 0
        %1290 = vmatprep.subr.bf16.mxu0 0
        %1291 = vmatpush2.bf16.msra.mxu0 0
        %1292 = vmatprep.subr.bf16.mxu0 0
        %1293 = vmatpush2.bf16.msra.mxu0 0
        %1294 = vmatprep.mubr.bf16.mxu0 0
        %1295 = vmatmul.mubr.bf16.gmra.mxu0 %v1257
        %v1296 = vpop.f32.mrf.mxu0
        %v1297 = vadd.f32 0.0, %v1296
        %v1298 = vpop.f32.mrf.mxu0
        %v1299 = vpop.f32.mrf.mxu0
        %v1300 = vpop.f32.mrf.mxu0
        %1301 = vdwg.mxu0
        %vm1302 = vcmask 261120
        %v1303 = vsel %vm1302, %v1159, 0.0
        %v1304 = vsel %vm1302, %v1205, 0.0
        %v1305 = vadd.f32 %v1303, %v1304
        %v1306 = vsel %vm1302, %v1251, 0.0
        %v1307 = vadd.f32 %v1305, %v1306
        %v1308 = vsel %vm1302, %v1297, 0.0
        %v1309 = vadd.f32 %v1307, %v1308
        %v1310 = vld [vmem:[%s5] sm:$0x1]
        %v1312 = vlaneseq
        %v1313 = vshrl.u32 %v1312, 7
        %v1314 = vsub.s32 0, %v1313
        %v1315 = vrot.slane %v1310, %v1314
        %v1317 = vadd.f32 %v1309, %v1315
        %v1318 = vadd.f32 %v679, %v1317
        %v1319 = vsel %vm1302, %v1318, 0.0
        %1320 = vadd.xlane.f32.xlu0 %v1319
        %v1321 = vpop.xlane.xlu0 %1320
        %v1322 = vrcp.pop 32.0
        %v1323 = vmul.f32 %v1321, %v1322
        %v1324 = vsub.f32 %v1318, %v1323
        %v1325 = vmul.f32 %v1324, %v1324
        %v1326 = vsel %vm1302, %v1325, 0.0
        %1327 = vadd.xlane.f32.xlu0 %v1326
        %v1328 = vpop.xlane.xlu0 %1327
        %v1329 = vmul.f32 %v1328, %v1322
        %v1330 = vadd.f32 %v1329, 1e-05
        %v1331 = vrsqrt.pop %v1330
        %v1332 = vmul.f32 %v1324, %v1331
        %v1333 = vld [vmem:[#allocation8] sm:$0x1]
        %v1335 = vlaneseq
        %v1336 = vshrl.u32 %v1335, 7
        %v1337 = vsub.s32 0, %v1336
        %v1338 = vrot.slane %v1333, %v1337
        %v1340 = vmul.f32 %v1332, %v1338
        %v1341 = vld [vmem:[#allocation10] sm:$0x1]
        %v1343 = vlaneseq
        %v1344 = vshrl.u32 %v1343, 7
        %v1345 = vsub.s32 0, %v1344
        %v1346 = vrot.slane %v1341, %v1345
        %v1348 = vadd.f32 %v1340, %v1346
        %v1349 = vpack.c.bf16 %v1348, %v1348
        %v1350 = vld [vmem:[#allocation11] sm:$0xf]
        %v1351 = vld [vmem:[#allocation11 + $0x4] sm:$0xf]
        %v1352 = vld [vmem:[#allocation11 + $0x8] sm:$0xf]
        %v1353 = vld [vmem:[#allocation11 + $0xc] sm:$0xf]
        %v1354 = vld [vmem:[#allocation13] sm:$0x1]
        %v1356 = vlaneseq
        %v1357 = vshrl.u32 %v1356, 7
        %v1358 = vsub.s32 0, %v1357
        %v1359 = vrot.slane %v1354, %v1358
        %v1365 = vunpack.c.l.b16 %v1350
        %v1366 = vunpack.c.l.b16 %v1351
        %v1367 = vunpack.c.l.b16 %v1352
        %v1368 = vunpack.c.l.b16 %v1353
        %v1369 = vpack.c.b16 %v1366, %v1365
        %v1370 = vpack.c.b16 %v1368, %v1367
        %v1374 = vsel %vm1302, %v1349, 0
        %1376 = vmatprep.subr.bf16.mxu0 0
        %1377 = vmatpush1.bf16.msra.mxu0 0
        %1378 = vmatprep.subr.bf16.mxu0 0
        %1379 = vmatpush1.bf16.msra.mxu0 0
        %1380 = vmatprep.subr.bf16.mxu0 0
        %1381 = vmatpush1.bf16.msra.mxu0 0
        %1382 = vmatprep.subr.bf16.mxu0 0
        %1383 = vmatpush1.bf16.msra.mxu0 0
        %1384 = vmatprep.subr.bf16.mxu0 0
        %1385 = vmatpush1.bf16.msra.mxu0 0
        %1386 = vmatprep.subr.bf16.mxu0 0
        %1387 = vmatpush1.bf16.msra.mxu0 0
        %1388 = vmatprep.subr.bf16.mxu0 0
        %1389 = vmatpush1.bf16.msra.mxu0 %v1370
        %1390 = vmatprep.subr.bf16.mxu0 0
        %1391 = vmatpush1.bf16.msra.mxu0 %v1369
        %1392 = vmatprep.subr.bf16.mxu0 0
        %1393 = vmatpush2.bf16.msra.mxu0 0
        %1394 = vmatprep.subr.bf16.mxu0 0
        %1395 = vmatpush2.bf16.msra.mxu0 0
        %1396 = vmatprep.subr.bf16.mxu0 0
        %1397 = vmatpush2.bf16.msra.mxu0 0
        %1398 = vmatprep.subr.bf16.mxu0 0
        %1399 = vmatpush2.bf16.msra.mxu0 0
        %1400 = vmatprep.subr.bf16.mxu0 0
        %1401 = vmatpush2.bf16.msra.mxu0 0
        %1402 = vmatprep.subr.bf16.mxu0 0
        %1403 = vmatpush2.bf16.msra.mxu0 0
        %1404 = vmatprep.subr.bf16.mxu0 0
        %1405 = vmatpush2.bf16.msra.mxu0 0
        %1406 = vmatprep.subr.bf16.mxu0 0
        %1407 = vmatpush2.bf16.msra.mxu0 0
        %1408 = vmatprep.mubr.bf16.mxu0 0
        %1409 = vmatmul.mubr.bf16.gmra.mxu0 %v1374
        %v1410 = vpop.f32.mrf.mxu0
        %v1411 = vadd.f32 %v1359, %v1410
        %v1412 = vpop.f32.mrf.mxu0
        %v1413 = vpop.f32.mrf.mxu0
        %v1414 = vpop.f32.mrf.mxu0
        %1415 = vdwg.mxu0
        %v1416 = vmax.f32 %v1411, 0.0
        %v1417 = vpack.c.bf16 %v1416, %v1416
        %v1418 = vld [vmem:[%s10] sm:$0xf]
        %v1419 = vld [vmem:[%s10 + $0x4] sm:$0xf]
        %v1420 = vld [vmem:[%s10 + $0x8] sm:$0xf]
        %v1421 = vld [vmem:[%s10 + $0xc] sm:$0xf]
        %v1422 = vld [vmem:[%s10 + $0x10] sm:$0xf]
        %v1423 = vld [vmem:[%s10 + $0x14] sm:$0xf]
        %v1424 = vld [vmem:[%s10 + $0x18] sm:$0xf]
        %v1425 = vld [vmem:[%s10 + $0x1c] sm:$0xf]
        %v1426 = vld [vmem:[%s11] sm:$0x1]
        %v1428 = vlaneseq
        %v1429 = vshrl.u32 %v1428, 7
        %v1430 = vsub.s32 0, %v1429
        %v1431 = vrot.slane %v1426, %v1430
        %v1441 = vunpack.c.l.b16 %v1418
        %v1442 = vunpack.c.l.b16 %v1419
        %v1443 = vunpack.c.l.b16 %v1420
        %v1444 = vunpack.c.l.b16 %v1421
        %v1445 = vunpack.c.l.b16 %v1422
        %v1446 = vunpack.c.l.b16 %v1423
        %v1447 = vunpack.c.l.b16 %v1424
        %v1448 = vunpack.c.l.b16 %v1425
        %v1449 = vpack.c.b16 %v1442, %v1441
        %v1450 = vpack.c.b16 %v1444, %v1443
        %v1451 = vpack.c.b16 %v1446, %v1445
        %v1452 = vpack.c.b16 %v1448, %v1447
        %vm1457 = vcmask 523264
        %v1459 = vsel %vm1457, %v1417, 0
        %1461 = vmatprep.subr.bf16.mxu0 0
        %1462 = vmatpush1.bf16.msra.mxu0 0
        %1463 = vmatprep.subr.bf16.mxu0 0
        %1464 = vmatpush1.bf16.msra.mxu0 0
        %1465 = vmatprep.subr.bf16.mxu0 0
        %1466 = vmatpush1.bf16.msra.mxu0 0
        %1467 = vmatprep.subr.bf16.mxu0 0
        %1468 = vmatpush1.bf16.msra.mxu0 0
        %1469 = vmatprep.subr.bf16.mxu0 0
        %1470 = vmatpush1.bf16.msra.mxu0 %v1452
        %1471 = vmatprep.subr.bf16.mxu0 0
        %1472 = vmatpush1.bf16.msra.mxu0 %v1451
        %1473 = vmatprep.subr.bf16.mxu0 0
        %1474 = vmatpush1.bf16.msra.mxu0 %v1450
        %1475 = vmatprep.subr.bf16.mxu0 0
        %1476 = vmatpush1.bf16.msra.mxu0 %v1449
        %1477 = vmatprep.subr.bf16.mxu0 0
        %1478 = vmatpush2.bf16.msra.mxu0 0
        %1479 = vmatprep.subr.bf16.mxu0 0
        %1480 = vmatpush2.bf16.msra.mxu0 0
        %1481 = vmatprep.subr.bf16.mxu0 0
        %1482 = vmatpush2.bf16.msra.mxu0 0
        %1483 = vmatprep.subr.bf16.mxu0 0
        %1484 = vmatpush2.bf16.msra.mxu0 0
        %1485 = vmatprep.subr.bf16.mxu0 0
        %1486 = vmatpush2.bf16.msra.mxu0 0
        %1487 = vmatprep.subr.bf16.mxu0 0
        %1488 = vmatpush2.bf16.msra.mxu0 0
        %1489 = vmatprep.subr.bf16.mxu0 0
        %1490 = vmatpush2.bf16.msra.mxu0 0
        %1491 = vmatprep.subr.bf16.mxu0 0
        %1492 = vmatpush2.bf16.msra.mxu0 0
        %1493 = vmatprep.mubr.bf16.mxu0 0
        %1494 = vmatmul.mubr.bf16.gmra.mxu0 %v1459
        %v1495 = vpop.f32.mrf.mxu0
        %v1496 = vadd.f32 %v1431, %v1495
        %v1497 = vpop.f32.mrf.mxu0
        %v1498 = vpop.f32.mrf.mxu0
        %v1499 = vpop.f32.mrf.mxu0
        %1500 = vdwg.mxu0
        %v1501 = vadd.f32 %v1348, %v1496
        %v1502 = vsel %vm1302, %v1501, 0.0
        %1503 = vadd.xlane.f32.xlu0 %v1502
        %v1504 = vpop.xlane.xlu0 %1503
        %v1505 = vmul.f32 %v1504, %v1322
        %v1506 = vsub.f32 %v1501, %v1505
        %v1507 = vmul.f32 %v1506, %v1506
        %v1508 = vsel %vm1302, %v1507, 0.0
        %1509 = vadd.xlane.f32.xlu0 %v1508
        %v1510 = vpop.xlane.xlu0 %1509
        %v1511 = vmul.f32 %v1510, %v1322
        %v1512 = vadd.f32 %v1511, 1e-05
        %v1513 = vrsqrt.pop %v1512
        %v1514 = vmul.f32 %v1506, %v1513
        %v1515 = vld [vmem:[%s12] sm:$0x1]
        %v1517 = vlaneseq
        %v1518 = vshrl.u32 %v1517, 7
        %v1519 = vsub.s32 0, %v1518
        %v1520 = vrot.slane %v1515, %v1519
        %v1522 = vmul.f32 %v1514, %v1520
        %v1523 = vld [vmem:[%s13] sm:$0x1]
        %v1525 = vlaneseq
        %v1526 = vshrl.u32 %v1525, 7
        %v1527 = vsub.s32 0, %v1526
        %v1528 = vrot.slane %v1523, %v1527
        %v1530 = vadd.f32 %v1522, %v1528
        %1531 = vst.msk [vmem:[%s537] sm:$0xff] %vm1302, %v1530
        %s1532 = sand.u32 %s352, 1
        %s1533 = scalar_lea.sflag [#allocation7], %s1532
        %s1534 = sand.u32 %s352, 1
        %s1535 = smul.addr %s1534, 8
        %s1536 = scalar_lea.vmem [#allocation14], %s1535
        // Predicated region
        $region101: #{tpu_custom_call.1} parent=75 // pred_check
          %p1537 = pneg %p362
        $region102: #{tpu_custom_call.1} parent=75 // pred_check_branch
          %1539 = sbr.rel (%p1537) target = $region104
        $region103: #{tpu_custom_call.1} parent=75 // pred_region
          %s1541 = ssub.s32 128, 128
          %1542 = vsyncadd %s1533, %s1541
          %s1543 = sadd.s32 %s36, %s35
          %s1544 = smul.addr %s1543, 128
          %s1545 = scalar_lea.hbm %s14, %s1544
          %s1547 = sshll.u32 %s1536, 4
          %s1548 = int_to_ptr.vmem [resolvable:$true] %s1547
          %1550 = dma.vmem_to_hbm [thread:$0]  %s1548, 128, %s1545, %s1533
        $region104: #{tpu_custom_call.1} parent=75 // pred_fallthru
          _
      $region76: #{tpu_custom_call.1} parent=5 // pred_fallthru
        _
      %p1551 = scmp.le.s32.totalorder 2, %s26
      // Predicated region
      $region105: #{tpu_custom_call.1} parent=5 // pred_check
        %p1552 = pneg %p1551
      $region106: #{tpu_custom_call.1} parent=5 // pred_check_branch
        %1554 = sbr.rel (%p1552) target = $region108
      $region107: #{tpu_custom_call.1} parent=5 // pred_region
        %s1555 = ssub.s32 %s26, 2
        // Predicated region
        $region109: #{tpu_custom_call.1} parent=107 // pred_check
          %p1556 = pneg %p368
        $region110: #{tpu_custom_call.1} parent=107 // pred_check_branch
          %1558 = sbr.rel (%p1556) target = $region112
        $region111: #{tpu_custom_call.1} parent=107 // pred_region
          %s1559 = sand.u32 %s353, 1
          %s1560 = scalar_lea.sflag [#allocation7], %s1559
          %s1561 = sand.u32 %s353, 1
          %s1562 = smul.addr %s1561, 8
          %s1563 = scalar_lea.vmem [#allocation14], %s1562
          %1564 = dma.done %s1560, 128
        $region112: #{tpu_custom_call.1} parent=107 // pred_fallthru
          _
      $region108: #{tpu_custom_call.1} parent=5 // pred_fallthru
        _
    $region6: #{tpu_custom_call.1} parent=1 // loop_footer
      %s30 = sadd.s32 1, %s26
    $region7: #{tpu_custom_call.1} parent=1 // loop_footer_branch
      %25 = sbr.rel target = $region3
    $region8: #{tpu_custom_call.1} parent=1 // loop_exit
      _
    %1565 = vsyncpa [#allocation6], 1
    %s1566 = scalar_lea.sflag [#allocation6], 1
    %1567 = vsyncpa %s1566, 1
    %1568 = vsyncpa [#allocation9], 1
    %1569 = vsyncpa [#allocation12], 1
    %1570 = vsyncpa [#allocation7], 1
    %s1571 = scalar_lea.sflag [#allocation7], 1
    %1572 = vsyncpa %s1571, 1

</llo_original>
